<compile_context>
chip_gen: v7x
topology: tpu7x:2x2x1
jax: 0.10.0
libtpu: 0.0.40
codegen_flags: <defaults>
</compile_context>

<pallas_src>
import functools

import jax
import jax.numpy as jnp
from jax.experimental import pallas as pl
from jax.experimental.pallas import tpu as pltpu

_EPS = 1e-5
_DOT_DTYPE = jnp.bfloat16   # MXU operand dtype (accumulation stays f32)
_ACT_DTYPE = jnp.bfloat16   # HBM dtype for intermediate activations / x reads


def _vmem_capacity_bytes():
    """Per-core VMEM capacity; conservative fallback if the query fails."""
    try:
        info = pltpu.get_tpu_info()
        for attr in ("vmem_capacity_bytes", "vmem_bytes", "vmem_size_bytes"):
            v = getattr(info, attr, None)
            if isinstance(v, int) and v > 0:
                return v
    except Exception:
        pass
    return 64 << 20   # v7x per-TC value: safe lower bound everywhere


def _compiler_params(vmem_limit_bytes):
    return pltpu.CompilerParams(
        dimension_semantics=("parallel",),          # batch tiles are independent
        vmem_limit_bytes=int(vmem_limit_bytes),
    )


# --------------------------------------------------------------------------- #
# Stage kernels
# --------------------------------------------------------------------------- #
def _stage1_kernel(x_ref, w1_ref, h1_ref, s_ref, q_ref):
    """conv1 (1x1) in bf16 + per-tile BN1 partial statistics."""
    tb, hh, ww, cin = x_ref.shape
    cw = w1_ref.shape[1]
    mt = tb * hh * ww
    x = x_ref[...].reshape(mt, cin).astype(_DOT_DTYPE)
    h = jnp.dot(x, w1_ref[...], preferred_element_type=jnp.float32)     # (mt, cw) f32
    h1_ref[...] = h.reshape(tb, hh, ww, cw).astype(h1_ref.dtype)
    s_ref[...] = jnp.sum(h, axis=0, keepdims=True).reshape(1, 1, cw)
    q_ref[...] = jnp.sum(h * h, axis=0, keepdims=True).reshape(1, 1, cw)


def _stage2_kernel(h1_ref, sc_ref, sh_ref, w2_ref, h2_ref, s_ref, q_ref, pad_ref):
    """bn1 + relu -> bf16 padded slab -> conv2 (3x3, pad 1) + BN2 partial stats."""
    tb, hh, ww, cw = h1_ref.shape
    mt = tb * hh * ww

    # Zero only the 1-pixel halo (interior is fully overwritten below).  Done
    # every step: correct under megacore grid sharding (see module note).
    pad_ref[:, 0:1, :, :] = jnp.zeros((tb, 1, ww + 2, cw), pad_ref.dtype)
    pad_ref[:, hh + 1:hh + 2, :, :] = jnp.zeros((tb, 1, ww + 2, cw), pad_ref.dtype)
    pad_ref[:, 1:hh + 1, 0:1, :] = jnp.zeros((tb, hh, 1, cw), pad_ref.dtype)
    pad_ref[:, 1:hh + 1, ww + 1:ww + 2, :] = jnp.zeros((tb, hh, 1, cw), pad_ref.dtype)

    # bn1 (pre-folded scale/shift) + relu, written straight into the slab
    # interior already in bf16.
    sc = sc_ref[...].reshape(1, 1, 1, cw)
    sh = sh_ref[...].reshape(1, 1, 1, cw)
    a1 = jnp.maximum(h1_ref[...].astype(jnp.float32) * sc + sh, 0.0)
    pad_ref[:, 1:hh + 1, 1:ww + 1, :] = a1.astype(pad_ref.dtype)

    # 3x3 conv as 3 K-merged matmuls (one per dy, K = 3*cw).  bf16 operands,
    # f32 accumulation; the three partials are independent MXU pushes.
    parts = []
    for dy in range(3):
        strip = pad_ref[:, dy:dy + hh, :, :]                 # (tb, hh, ww+2, cw) bf16
        patch = jnp.concatenate(
            [strip[:, :, 0:ww, :],
             strip[:, :, 1:ww + 1, :],
             strip[:, :, 2:ww + 2, :]],
            axis=-1).reshape(mt, 3 * cw)                     # (mt, 3*cw) bf16
        parts.append(jnp.dot(patch, w2_ref[dy],
                             preferred_element_type=jnp.float32))
    acc = (parts[0] + parts[1]) + parts[2]
    h2_ref[...] = acc.reshape(tb, hh, ww, cw).astype(h2_ref.dtype)
    s_ref[...] = jnp.sum(acc, axis=0, keepdims=True).reshape(1, 1, cw)
    q_ref[...] = jnp.sum(acc * acc, axis=0, keepdims=True).reshape(1, 1, cw)


def _stage3_kernel(with_mid, h2_ref, sc_ref, sh_ref, w3_ref, *out_refs):
    """bn2 + relu (-> out_mid if requested) -> conv3 (1x1) + BN3 partial stats."""
    if with_mid:
        h3_ref, s_ref, q_ref, mid_ref = out_refs
    else:
        h3_ref, s_ref, q_ref = out_refs
    tb, hh, ww, cw = h2_ref.shape
    cout = w3_ref.shape[1]
    mt = tb * hh * ww
    sc = sc_ref[...].reshape(1, 1, 1, cw)
    sh = sh_ref[...].reshape(1, 1, 1, cw)
    a2 = jnp.maximum(h2_ref[...].astype(jnp.float32) * sc + sh, 0.0)
    if with_mid:
        mid_ref[...] = a2.astype(mid_ref.dtype)
    h = jnp.dot(a2.reshape(mt, cw).astype(_DOT_DTYPE), w3_ref[...],
                preferred_element_type=jnp.float32)
    h3_ref[...] = h.reshape(tb, hh, ww, cout).astype(h3_ref.dtype)
    s_ref[...] = jnp.sum(h, axis=0, keepdims=True).reshape(1, 1, cout)
    q_ref[...] = jnp.sum(h * h, axis=0, keepdims=True).reshape(1, 1, cout)


def _stage4_kernel(h3_ref, sc_ref, sh_ref, x_ref, out_ref):
    """bn3 + residual add (identity, downsample=None) + relu."""
    cout = out_ref.shape[-1]
    sc = sc_ref[...].reshape(1, 1, 1, cout)
    sh = sh_ref[...].reshape(1, 1, 1, cout)
    y = h3_ref[...].astype(jnp.float32) * sc + sh + x_ref[...].astype(jnp.float32)
    out_ref[...] = jnp.maximum(y, 0.0).astype(out_ref.dtype)


# --------------------------------------------------------------------------- #
# Host-side helpers
# --------------------------------------------------------------------------- #
def _bn_fold(s_part, q_part, gamma, beta, m_total):
    """Reduce per-tile partials -> folded BN scale/shift (training-mode stats)."""
    total = jnp.sum(s_part, axis=0)                  # (1, C)
    totsq = jnp.sum(q_part, axis=0)                  # (1, C)
    mean = total / m_total
    var = totsq / m_total - mean * mean              # biased variance (PyTorch BN fwd)
    inv = jax.lax.rsqrt(var + _EPS)
    scale = gamma * inv
    shift = beta - mean * scale
    return scale.astype(jnp.float32), shift.astype(jnp.float32)


def _pick_batch_tile(n, h, w, cin, cw, cout, budget_bytes):
    """Largest batch tile whose per-step working set (incl. weights, scratch,
    accumulators and double-buffered tiles) fits the VMEM budget; keeps >=2
    grid steps when possible so v7x's second TensorCore has work."""
    bf16, f32 = 2, 4
    hw = h * w
    # Per-image working sets per stage (double-buffered pipelined tiles).
    stage1 = 2 * hw * cin * bf16 + 2 * hw * cw * bf16
    stage2 = (2 * 2 * hw * cw * bf16                      # h1 in + h2 out tiles
              + (h + 2) * (w + 2) * cw * bf16             # bf16 padded slab scratch
              + hw * cw * f32                             # f32 conv2 accumulator
              + hw * 3 * cw * bf16)                       # K-merged patch temp
    stage3 = 2 * hw * cw * bf16 + 2 * hw * cout * bf16 + 2 * hw * cw * f32
    stage4 = 2 * hw * cout * bf16 + 2 * hw * cin * bf16 + 2 * hw * cout * f32
    bytes_per_img = max(stage1, stage2, stage3, stage4)
    # Weight + stat buffers (double-buffered, batch-tile independent).
    fixed = 2 * (cin * cw + 9 * cw * cw + cw * cout) * bf16 + 8 * max(cw, cout) * f32
    avail = max(budget_bytes - fixed, bytes_per_img)
    tb = int(max(1, min(n, avail // max(bytes_per_img, 1))))
    if tb >= n and n >= 2:          # keep nt >= 2 (megacore / pipelining)
        tb = n // 2
    while n % tb:
        tb -= 1
    return tb


def bottleneck_forward(x_nchw, prep, *, is_last=False, batch_tile=None):
    n, cin, h, w = x_nchw.shape
    cw = prep["w1"].shape[1]
    cout = prep["w3"].shape[1]
    assert cin == cout, "downsample=None requires inplanes == planes * expansion"

    vmem_cap = _vmem_capacity_bytes()
    vmem_limit = min(int(vmem_cap * 0.75), vmem_cap - (4 << 20))
    tb = batch_tile or _pick_batch_tile(n, h, w, cin, cw, cout,
                                        budget_bytes=int(vmem_limit * 0.5))
    assert n % tb == 0
    nt = n // tb
    m_total = float(n * h * w)

    # NCHW -> NHWC in bf16 (channels on the 128-lane axis; x is read twice).
    x = jnp.transpose(x_nchw.astype(_ACT_DTYPE), (0, 2, 3, 1))

    cp = _compiler_params(vmem_limit)

    def act_spec(c):
        return pl.BlockSpec((tb, h, w, c), lambda i: (i, 0, 0, 0))

    def stat_spec(c):
        return pl.BlockSpec((1, 1, c), lambda i: (i, 0, 0))

    def stat_shape(c):
        return jax.ShapeDtypeStruct((nt, 1, c), jnp.float32)

    def full_spec(shape):
        nd = len(shape)
        return pl.BlockSpec(shape, lambda i: (0,) * nd)

    # ---- stage 1: conv1 (1x1) + BN1 partial stats ---------------------------
    h1, s1, q1 = pl.pallas_call(
        _stage1_kernel,
        grid=(nt,),
        in_specs=[act_spec(cin), full_spec(prep["w1"].shape)],
        out_specs=(act_spec(cw), stat_spec(cw), stat_spec(cw)),
        out_shape=(jax.ShapeDtypeStruct((n, h, w, cw), _ACT_DTYPE),
                   stat_shape(cw), stat_shape(cw)),
        compiler_params=cp,
    )(x, prep["w1"])
    sc1, sh1 = _bn_fold(s1, q1, prep["g1"], prep["b1"], m_total)

    # ---- stage 2: bn1+relu -> conv2 (3x3, K-merged taps) + BN2 partial stats
    h2, s2, q2 = pl.pallas_call(
        _stage2_kernel,
        grid=(nt,),
        in_specs=[act_spec(cw), full_spec((1, cw)), full_spec((1, cw)),
                  full_spec(prep["w2"].shape)],
        out_specs=(act_spec(cw), stat_spec(cw), stat_spec(cw)),
        out_shape=(jax.ShapeDtypeStruct((n, h, w, cw), _ACT_DTYPE),
                   stat_shape(cw), stat_shape(cw)),
        scratch_shapes=[pltpu.VMEM((tb, h + 2, w + 2, cw), _DOT_DTYPE)],
        compiler_params=cp,
    )(h1, sc1, sh1, prep["w2"])
    sc2, sh2 = _bn_fold(s2, q2, prep["g2"], prep["b2"], m_total)

    # ---- stage 3: bn2+relu (-> out_mid) -> conv3 (1x1) + BN3 partial stats --
    out_shape3 = [jax.ShapeDtypeStruct((n, h, w, cout), _ACT_DTYPE),
                  stat_shape(cout), stat_shape(cout)]
    out_specs3 = [act_spec(cout), stat_spec(cout), stat_spec(cout)]
    if is_last:
        out_shape3.append(jax.ShapeDtypeStruct((n, h, w, cw), jnp.float32))
        out_specs3.append(act_spec(cw))
    res3 = pl.pallas_call(
        functools.partial(_stage3_kernel, is_last),
        grid=(nt,),
        in_specs=[act_spec(cw), full_spec((1, cw)), full_spec((1, cw)),
                  full_spec(prep["w3"].shape)],
        out_specs=tuple(out_specs3),
        out_shape=tuple(out_shape3),
        compiler_params=cp,
    )(h2, sc2, sh2, prep["w3"])
    if is_last:
        h3, s3, q3, mid = res3
    else:
        h3, s3, q3 = res3
    sc3, sh3 = _bn_fold(s3, q3, prep["g3"], prep["b3"], m_total)

    # ---- stage 4: bn3 + identity add + relu ---------------------------------
    out_nhwc = pl.pallas_call(
        _stage4_kernel,
        grid=(nt,),
        in_specs=[act_spec(cout), full_spec((1, cout)), full_spec((1, cout)),
                  act_spec(cin)],
        out_specs=act_spec(cout),
        out_shape=jax.ShapeDtypeStruct((n, h, w, cout), jnp.float32),
        compiler_params=cp,
    )(h3, sc3, sh3, x)

    out = jnp.transpose(out_nhwc, (0, 3, 1, 2))
    if is_last:
        return out, jnp.transpose(mid, (0, 3, 1, 2))
    return out


# --------------------------------------------------------------------------- #
# Parameters, reference, demo
# --------------------------------------------------------------------------- #
def init_params(key, inplanes, planes, base_width=64, groups=1):
    """Deterministic synthetic parameters matching the module's shapes (f32)."""
    width = int(planes * (base_width / 64.0)) * groups
    cout = planes * 4  # expansion
    ks = jax.random.split(key, 9)
    nrm = jax.random.normal
    return {
        "w1": nrm(ks[0], (inplanes, width), jnp.float32) * 0.1,       # torch (w,in,1,1)^T
        "g1": nrm(ks[1], (width,), jnp.float32) * 0.1 + 1.0,
        "b1": nrm(ks[2], (width,), jnp.float32) * 0.1,
        "w2": nrm(ks[3], (3, 3, width, width), jnp.float32) * 0.1,    # HWIO
        "g2": nrm(ks[4], (width,), jnp.float32) * 0.1 + 1.0,
        "b2": nrm(ks[5], (width,), jnp.float32) * 0.1,
        "w3": nrm(ks[6], (width, cout), jnp.float32) * 0.1,           # torch (out,w,1,1)^T
        "g3": nrm(ks[7], (cout,), jnp.float32) * 0.1 + 1.0,
        "b3": nrm(ks[8], (cout,), jnp.float32) * 0.1,
    }


def prepare_params(p):
    """Cast / lay out raw parameters for the kernels (bf16 weights, f32 BN).

    w2 (HWIO, 3x3) is laid out as (dy, dx*cin, cout) so each dy of the 3x3
    conv is one K = 3*width contraction against a dx-concatenated patch.
    """
    cw = p["w1"].shape[1]
    return {
        "w1": p["w1"].astype(_DOT_DTYPE),
        "w2": p["w2"].reshape(3, 3 * cw, cw).astype(_DOT_DTYPE),
        "w3": p["w3"].astype(_DOT_DTYPE),
        "g1": p["g1"].reshape(1, -1).astype(jnp.float32),
        "b1": p["b1"].reshape(1, -1).astype(jnp.float32),
        "g2": p["g2"].reshape(1, -1).astype(jnp.float32),
        "b2": p["b2"].reshape(1, -1).astype(jnp.float32),
        "g3": p["g3"].reshape(1, -1).astype(jnp.float32),
        "b3": p["b3"].reshape(1, -1).astype(jnp.float32),
    }


def _reference(x_nchw, p):
    """Pure-JAX f32 reference (same math, XLA convs) for a sanity check."""
    x = jnp.transpose(x_nchw, (0, 2, 3, 1)).astype(jnp.float32)

    def bn(h, g, b):
        mean = jnp.mean(h, axis=(0, 1, 2), keepdims=True)
        var = jnp.mean(jnp.square(h - mean), axis=(0, 1, 2), keepdims=True)
        return ((h - mean) * jax.lax.rsqrt(var + _EPS)
                * g.reshape(1, 1, 1, -1) + b.reshape(1, 1, 1, -1))

    h1 = jax.nn.relu(bn(jnp.einsum("nhwc,cd->nhwd", x, p["w1"]), p["g1"], p["b1"]))
    h2 = jax.lax.conv_general_dilated(h1, p["w2"], (1, 1), "SAME",
                                      dimension_numbers=("NHWC", "HWIO", "NHWC"))
    a2 = jax.nn.relu(bn(h2, p["g2"], p["b2"]))
    h3 = bn(jnp.einsum("nhwc,cd->nhwd", a2, p["w3"]), p["g3"], p["b3"])
    out = jax.nn.relu(h3 + x)
    return jnp.transpose(out, (0, 3, 1, 2)), jnp.transpose(a2, (0, 3, 1, 2))


if __name__ == "__main__":
    key = jax.random.PRNGKey(0)
    kx, kp = jax.random.split(key)

    # Small demo: planes=8 -> width=8, Cout=32, inplanes=32, 16x16 spatial.
    n, planes, h, w = 2, 8, 16, 16
    inplanes = planes * 4
    x = jax.random.normal(kx, (n, inplanes, h, w), jnp.float32)
    raw = init_params(kp, inplanes, planes)
    prep = prepare_params(raw)
    width = raw["w1"].shape[1]

    ref_out, ref_mid = _reference(x, raw)

    # batch_tile=1 -> grid of 2 tiles, exercising the tiled/two-pass-BN path.
    fwd = jax.jit(functools.partial(bottleneck_forward, batch_tile=1))
    out = jax.block_until_ready(fwd(x, prep))
    assert out.shape == (n, inplanes, h, w)
    err = jnp.abs(out - ref_out)
    tol = 5e-2 + 5e-2 * jnp.abs(ref_out)          # bf16 matmuls => mixed abs/rel check
    assert bool(jnp.all(err <= tol)), f"max abs err = {float(jnp.max(err))}"

    # is_last=True path also returns out_mid = relu(bn2(conv2(...))).
    fwd_last = jax.jit(functools.partial(bottleneck_forward, is_last=True, batch_tile=1))
    out2, mid = jax.block_until_ready(fwd_last(x, prep))
    assert out2.shape == (n, inplanes, h, w) and mid.shape == (n, width, h, w)
    err_m = jnp.abs(mid - ref_mid)
    tol_m = 5e-2 + 5e-2 * jnp.abs(ref_mid)
    assert bool(jnp.all(err_m <= tol_m)), f"max abs mid err = {float(jnp.max(err_m))}"

    print("KERNEL_OK")
</pallas_src>

<mosaic_0001>
module attributes {stable_mosaic.version = 11 : i64} {
  func.func @_stage1_kernel(%arg0: i32, %arg1: memref<1x16x16x32xbf16, #tpu.memory_space<vmem>>, %arg2: memref<32x8xbf16, #tpu.memory_space<vmem>>, %arg3: memref<1x16x16x8xbf16, #tpu.memory_space<vmem>>, %arg4: memref<1x1x8xf32, #tpu.memory_space<vmem>>, %arg5: memref<1x1x8xf32, #tpu.memory_space<vmem>>) attributes {dimension_semantics = [#tpu.dimension_semantics<parallel>], iteration_bounds = array<i64: 2>, scalar_prefetch = 0 : i64, scratch_operands = 0 : i64, tpu.core_type = #tpu.core_type<tc>, window_params = [{transform_indices = @transform_0, window_bounds = array<i64: 1, 16, 16, 32>}, {pipeline_mode = #tpu.pipeline_mode<synchronous>, transform_indices = @transform_1, window_bounds = array<i64: 32, 8>}, {transform_indices = @transform_2, window_bounds = array<i64: 1, 16, 16, 8>}, {transform_indices = @transform_3, window_bounds = array<i64: 1, 1, 8>}, {transform_indices = @transform_4, window_bounds = array<i64: 1, 1, 8>}]} {
    %c0 = arith.constant 0 : index
    %c0_0 = arith.constant 0 : index
    %c0_1 = arith.constant 0 : index
    %c0_2 = arith.constant 0 : index
    %0 = vector.load %arg1[%c0, %c0_0, %c0_1, %c0_2] : memref<1x16x16x32xbf16, #tpu.memory_space<vmem>>, vector<1x16x16x32xbf16>
    %1 = vector.shape_cast %0 : vector<1x16x16x32xbf16> to vector<256x32xbf16>
    %c0_3 = arith.constant 0 : index
    %c0_4 = arith.constant 0 : index
    %2 = vector.load %arg2[%c0_3, %c0_4] : memref<32x8xbf16, #tpu.memory_space<vmem>>, vector<32x8xbf16>
    %cst = arith.constant dense<0.000000e+00> : vector<256x8xf32>
    %3 = tpu.matmul %1, %2, %cst {dimension_numbers = #tpu.dot_dimension_numbers<[1], [0], [0], [1], [0, 0, 1, 1], [], []>} : vector<256x32xbf16>, vector<32x8xbf16>, vector<256x8xf32> -> vector<256x8xf32>
    %4 = vector.shape_cast %3 : vector<256x8xf32> to vector<1x16x16x8xf32>
    %5 = arith.truncf %4 : vector<1x16x16x8xf32> to vector<1x16x16x8xbf16>
    %c0_5 = arith.constant 0 : index
    %c0_6 = arith.constant 0 : index
    %c0_7 = arith.constant 0 : index
    %c0_8 = arith.constant 0 : index
    %6 = vector.load %arg3[%c0_5, %c0_6, %c0_7, %c0_8] : memref<1x16x16x8xbf16, #tpu.memory_space<vmem>>, vector<1x16x16x8xbf16>
    tpu.vector_store %arg3[%c0_5, %c0_6, %c0_7, %c0_8], %5 {strides = array<i32>} : memref<1x16x16x8xbf16, #tpu.memory_space<vmem>>, vector<1x16x16x8xbf16>,
    %cst_9 = arith.constant dense<0.000000e+00> : vector<8xf32>
    %7 = vector.multi_reduction <add>, %3, %cst_9 [0] : vector<256x8xf32> to vector<8xf32>
    %8 = vector.shape_cast %7 : vector<8xf32> to vector<1x8xf32>
    %9 = vector.shape_cast %8 : vector<1x8xf32> to vector<1x1x8xf32>
    %c0_10 = arith.constant 0 : index
    %c0_11 = arith.constant 0 : index
    %c0_12 = arith.constant 0 : index
    %10 = vector.load %arg4[%c0_10, %c0_11, %c0_12] : memref<1x1x8xf32, #tpu.memory_space<vmem>>, vector<1x1x8xf32>
    tpu.vector_store %arg4[%c0_10, %c0_11, %c0_12], %9 {strides = array<i32>} : memref<1x1x8xf32, #tpu.memory_space<vmem>>, vector<1x1x8xf32>,
    %11 = arith.mulf %3, %3 : vector<256x8xf32>
    %cst_13 = arith.constant dense<0.000000e+00> : vector<8xf32>
    %12 = vector.multi_reduction <add>, %11, %cst_13 [0] : vector<256x8xf32> to vector<8xf32>
    %13 = vector.shape_cast %12 : vector<8xf32> to vector<1x8xf32>
    %14 = vector.shape_cast %13 : vector<1x8xf32> to vector<1x1x8xf32>
    %c0_14 = arith.constant 0 : index
    %c0_15 = arith.constant 0 : index
    %c0_16 = arith.constant 0 : index
    %15 = vector.load %arg5[%c0_14, %c0_15, %c0_16] : memref<1x1x8xf32, #tpu.memory_space<vmem>>, vector<1x1x8xf32>
    tpu.vector_store %arg5[%c0_14, %c0_15, %c0_16], %14 {strides = array<i32>} : memref<1x1x8xf32, #tpu.memory_space<vmem>>, vector<1x1x8xf32>,
    return
  }
  func.func @transform_0(%arg0: i32) -> (i32, i32, i32, i32) {
    %c0_i32 = arith.constant 0 : i32
    %c0_i32_0 = arith.constant 0 : i32
    %c0_i32_1 = arith.constant 0 : i32
    %c0_i32_2 = arith.constant 0 : i32
    return %arg0, %c0_i32, %c0_i32_0, %c0_i32_1 : i32, i32, i32, i32
  }
  func.func @transform_1(%arg0: i32) -> (i32, i32) {
    %c0_i32 = arith.constant 0 : i32
    %c0_i32_0 = arith.constant 0 : i32
    %c0_i32_1 = arith.constant 0 : i32
    return %c0_i32, %c0_i32_0 : i32, i32
  }
  func.func @transform_2(%arg0: i32) -> (i32, i32, i32, i32) {
    %c0_i32 = arith.constant 0 : i32
    %c0_i32_0 = arith.constant 0 : i32
    %c0_i32_1 = arith.constant 0 : i32
    %c0_i32_2 = arith.constant 0 : i32
    return %arg0, %c0_i32, %c0_i32_0, %c0_i32_1 : i32, i32, i32, i32
  }
  func.func @transform_3(%arg0: i32) -> (i32, i32, i32) {
    %c0_i32 = arith.constant 0 : i32
    %c0_i32_0 = arith.constant 0 : i32
    %c0_i32_1 = arith.constant 0 : i32
    return %arg0, %c0_i32, %c0_i32_0 : i32, i32, i32
  }
  func.func @transform_4(%arg0: i32) -> (i32, i32, i32) {
    %c0_i32 = arith.constant 0 : i32
    %c0_i32_0 = arith.constant 0 : i32
    %c0_i32_1 = arith.constant 0 : i32
    return %arg0, %c0_i32, %c0_i32_0 : i32, i32, i32
  }
}

module attributes {stable_mosaic.version = 11 : i64} {
  func.func @_stage2_kernel(%arg0: i32, %arg1: memref<1x16x16x8xbf16, #tpu.memory_space<vmem>>, %arg2: memref<1x8xf32, #tpu.memory_space<vmem>>, %arg3: memref<1x8xf32, #tpu.memory_space<vmem>>, %arg4: memref<3x24x8xbf16, #tpu.memory_space<vmem>>, %arg5: memref<1x16x16x8xbf16, #tpu.memory_space<vmem>>, %arg6: memref<1x1x8xf32, #tpu.memory_space<vmem>>, %arg7: memref<1x1x8xf32, #tpu.memory_space<vmem>>, %arg8: memref<1x18x18x8xbf16, #tpu.memory_space<vmem>>) attributes {dimension_semantics = [#tpu.dimension_semantics<parallel>], iteration_bounds = array<i64: 2>, scalar_prefetch = 0 : i64, scratch_operands = 1 : i64, tpu.core_type = #tpu.core_type<tc>, window_params = [{transform_indices = @transform_0, window_bounds = array<i64: 1, 16, 16, 8>}, {pipeline_mode = #tpu.pipeline_mode<synchronous>, transform_indices = @transform_1, window_bounds = array<i64: 1, 8>}, {pipeline_mode = #tpu.pipeline_mode<synchronous>, transform_indices = @transform_2, window_bounds = array<i64: 1, 8>}, {pipeline_mode = #tpu.pipeline_mode<synchronous>, transform_indices = @transform_3, window_bounds = array<i64: 3, 24, 8>}, {transform_indices = @transform_4, window_bounds = array<i64: 1, 16, 16, 8>}, {transform_indices = @transform_5, window_bounds = array<i64: 1, 1, 8>}, {transform_indices = @transform_6, window_bounds = array<i64: 1, 1, 8>}]} {
    %cst = arith.constant 0.000000e+00 : bf16
    %0 = vector.broadcast %cst : bf16 to vector<1x1x18x8xbf16>
    %c0 = arith.constant 0 : index
    %c0_0 = arith.constant 0 : index
    %c0_1 = arith.constant 0 : index
    %c0_2 = arith.constant 0 : index
    %1 = vector.load %arg8[%c0, %c0_0, %c0_1, %c0_2] : memref<1x18x18x8xbf16, #tpu.memory_space<vmem>>, vector<1x1x18x8xbf16>
    tpu.vector_store %arg8[%c0, %c0_0, %c0_1, %c0_2], %0 {strides = array<i32>} : memref<1x18x18x8xbf16, #tpu.memory_space<vmem>>, vector<1x1x18x8xbf16>,
    %cst_3 = arith.constant 0.000000e+00 : bf16
    %2 = vector.broadcast %cst_3 : bf16 to vector<1x1x18x8xbf16>
    %c0_4 = arith.constant 0 : index
    %c17 = arith.constant 17 : index
    %c0_5 = arith.constant 0 : index
    %c0_6 = arith.constant 0 : index
    %3 = vector.load %arg8[%c0_4, %c17, %c0_5, %c0_6] : memref<1x18x18x8xbf16, #tpu.memory_space<vmem>>, vector<1x1x18x8xbf16>
    tpu.vector_store %arg8[%c0_4, %c17, %c0_5, %c0_6], %2 {strides = array<i32>} : memref<1x18x18x8xbf16, #tpu.memory_space<vmem>>, vector<1x1x18x8xbf16>,
    %cst_7 = arith.constant 0.000000e+00 : bf16
    %4 = vector.broadcast %cst_7 : bf16 to vector<1x16x1x8xbf16>
    %c0_8 = arith.constant 0 : index
    %c1 = arith.constant 1 : index
    %c0_9 = arith.constant 0 : index
    %c0_10 = arith.constant 0 : index
    %5 = vector.load %arg8[%c0_8, %c1, %c0_9, %c0_10] : memref<1x18x18x8xbf16, #tpu.memory_space<vmem>>, vector<1x16x1x8xbf16>
    tpu.vector_store %arg8[%c0_8, %c1, %c0_9, %c0_10], %4 {strides = array<i32>} : memref<1x18x18x8xbf16, #tpu.memory_space<vmem>>, vector<1x16x1x8xbf16>,
    %cst_11 = arith.constant 0.000000e+00 : bf16
    %6 = vector.broadcast %cst_11 : bf16 to vector<1x16x1x8xbf16>
    %c0_12 = arith.constant 0 : index
    %c1_13 = arith.constant 1 : index
    %c17_14 = arith.constant 17 : index
    %c0_15 = arith.constant 0 : index
    %7 = vector.load %arg8[%c0_12, %c1_13, %c17_14, %c0_15] : memref<1x18x18x8xbf16, #tpu.memory_space<vmem>>, vector<1x16x1x8xbf16>
    tpu.vector_store %arg8[%c0_12, %c1_13, %c17_14, %c0_15], %6 {strides = array<i32>} : memref<1x18x18x8xbf16, #tpu.memory_space<vmem>>, vector<1x16x1x8xbf16>,
    %c0_16 = arith.constant 0 : index
    %c0_17 = arith.constant 0 : index
    %8 = vector.load %arg2[%c0_16, %c0_17] : memref<1x8xf32, #tpu.memory_space<vmem>>, vector<1x8xf32>
    %9 = vector.shape_cast %8 : vector<1x8xf32> to vector<1x1x1x8xf32>
    %c0_18 = arith.constant 0 : index
    %c0_19 = arith.constant 0 : index
    %10 = vector.load %arg3[%c0_18, %c0_19] : memref<1x8xf32, #tpu.memory_space<vmem>>, vector<1x8xf32>
    %11 = vector.shape_cast %10 : vector<1x8xf32> to vector<1x1x1x8xf32>
    %c0_20 = arith.constant 0 : index
    %c0_21 = arith.constant 0 : index
    %c0_22 = arith.constant 0 : index
    %c0_23 = arith.constant 0 : index
    %12 = vector.load %arg1[%c0_20, %c0_21, %c0_22, %c0_23] : memref<1x16x16x8xbf16, #tpu.memory_space<vmem>>, vector<1x16x16x8xbf16>
    %13 = arith.extf %12 : vector<1x16x16x8xbf16> to vector<1x16x16x8xf32>
    %14 = vector.broadcast %9 : vector<1x1x1x8xf32> to vector<1x16x16x8xf32>
    %15 = arith.mulf %13, %14 : vector<1x16x16x8xf32>
    %16 = vector.broadcast %11 : vector<1x1x1x8xf32> to vector<1x16x16x8xf32>
    %17 = arith.addf %15, %16 : vector<1x16x16x8xf32>
    %cst_24 = arith.constant 0.000000e+00 : f32
    %18 = vector.broadcast %cst_24 : f32 to vector<1x16x16x8xf32>
    %19 = arith.maximumf %17, %18 : vector<1x16x16x8xf32>
    %20 = arith.truncf %19 : vector<1x16x16x8xf32> to vector<1x16x16x8xbf16>
    %c0_25 = arith.constant 0 : index
    %c1_26 = arith.constant 1 : index
    %c1_27 = arith.constant 1 : index
    %c0_28 = arith.constant 0 : index
    %21 = vector.load %arg8[%c0_25, %c1_26, %c1_27, %c0_28] : memref<1x18x18x8xbf16, #tpu.memory_space<vmem>>, vector<1x16x16x8xbf16>
    tpu.vector_store %arg8[%c0_25, %c1_26, %c1_27, %c0_28], %20 {strides = array<i32>} : memref<1x18x18x8xbf16, #tpu.memory_space<vmem>>, vector<1x16x16x8xbf16>,
    %c0_29 = arith.constant 0 : index
    %c0_30 = arith.constant 0 : index
    %c0_31 = arith.constant 0 : index
    %c0_32 = arith.constant 0 : index
    %22 = vector.load %arg8[%c0_29, %c0_30, %c0_31, %c0_32] : memref<1x18x18x8xbf16, #tpu.memory_space<vmem>>, vector<1x16x18x8xbf16>
    %23 = vector.extract_strided_slice %22 {offsets = [0, 0, 0, 0], sizes = [1, 16, 16, 8], strides = [1, 1, 1, 1]} : vector<1x16x18x8xbf16> to vector<1x16x16x8xbf16>
    %24 = vector.extract_strided_slice %22 {offsets = [0, 0, 1, 0], sizes = [1, 16, 16, 8], strides = [1, 1, 1, 1]} : vector<1x16x18x8xbf16> to vector<1x16x16x8xbf16>
    %25 = vector.extract_strided_slice %22 {offsets = [0, 0, 2, 0], sizes = [1, 16, 16, 8], strides = [1, 1, 1, 1]} : vector<1x16x18x8xbf16> to vector<1x16x16x8xbf16>
    %26 = tpu.concatenate %23, %24, %25 in 3 : vector<1x16x16x8xbf16>, vector<1x16x16x8xbf16>, vector<1x16x16x8xbf16> -> vector<1x16x16x24xbf16>
    %27 = vector.shape_cast %26 : vector<1x16x16x24xbf16> to vector<256x24xbf16>
    %c0_33 = arith.constant 0 : index
    %c0_34 = arith.constant 0 : index
    %c0_35 = arith.constant 0 : index
    %28 = vector.load %arg4[%c0_33, %c0_34, %c0_35] : memref<3x24x8xbf16, #tpu.memory_space<vmem>>, vector<1x24x8xbf16>
    %29 = vector.shape_cast %28 : vector<1x24x8xbf16> to vector<24x8xbf16>
    %cst_36 = arith.constant dense<0.000000e+00> : vector<256x8xf32>
    %30 = tpu.matmul %27, %29, %cst_36 {dimension_numbers = #tpu.dot_dimension_numbers<[1], [0], [0], [1], [0, 0, 1, 1], [], []>} : vector<256x24xbf16>, vector<24x8xbf16>, vector<256x8xf32> -> vector<256x8xf32>
    %c0_37 = arith.constant 0 : index
    %c1_38 = arith.constant 1 : index
    %c0_39 = arith.constant 0 : index
    %c0_40 = arith.constant 0 : index
    %31 = vector.load %arg8[%c0_37, %c1_38, %c0_39, %c0_40] : memref<1x18x18x8xbf16, #tpu.memory_space<vmem>>, vector<1x16x18x8xbf16>
    %32 = vector.extract_strided_slice %31 {offsets = [0, 0, 0, 0], sizes = [1, 16, 16, 8], strides = [1, 1, 1, 1]} : vector<1x16x18x8xbf16> to vector<1x16x16x8xbf16>
    %33 = vector.extract_strided_slice %31 {offsets = [0, 0, 1, 0], sizes = [1, 16, 16, 8], strides = [1, 1, 1, 1]} : vector<1x16x18x8xbf16> to vector<1x16x16x8xbf16>
    %34 = vector.extract_strided_slice %31 {offsets = [0, 0, 2, 0], sizes = [1, 16, 16, 8], strides = [1, 1, 1, 1]} : vector<1x16x18x8xbf16> to vector<1x16x16x8xbf16>
    %35 = tpu.concatenate %32, %33, %34 in 3 : vector<1x16x16x8xbf16>, vector<1x16x16x8xbf16>, vector<1x16x16x8xbf16> -> vector<1x16x16x24xbf16>
    %36 = vector.shape_cast %35 : vector<1x16x16x24xbf16> to vector<256x24xbf16>
    %c1_41 = arith.constant 1 : index
    %c0_42 = arith.constant 0 : index
    %c0_43 = arith.constant 0 : index
    %37 = vector.load %arg4[%c1_41, %c0_42, %c0_43] : memref<3x24x8xbf16, #tpu.memory_space<vmem>>, vector<1x24x8xbf16>
    %38 = vector.shape_cast %37 : vector<1x24x8xbf16> to vector<24x8xbf16>
    %cst_44 = arith.constant dense<0.000000e+00> : vector<256x8xf32>
    %39 = tpu.matmul %36, %38, %cst_44 {dimension_numbers = #tpu.dot_dimension_numbers<[1], [0], [0], [1], [0, 0, 1, 1], [], []>} : vector<256x24xbf16>, vector<24x8xbf16>, vector<256x8xf32> -> vector<256x8xf32>
    %c0_45 = arith.constant 0 : index
    %c2 = arith.constant 2 : index
    %c0_46 = arith.constant 0 : index
    %c0_47 = arith.constant 0 : index
    %40 = vector.load %arg8[%c0_45, %c2, %c0_46, %c0_47] : memref<1x18x18x8xbf16, #tpu.memory_space<vmem>>, vector<1x16x18x8xbf16>
    %41 = vector.extract_strided_slice %40 {offsets = [0, 0, 0, 0], sizes = [1, 16, 16, 8], strides = [1, 1, 1, 1]} : vector<1x16x18x8xbf16> to vector<1x16x16x8xbf16>
    %42 = vector.extract_strided_slice %40 {offsets = [0, 0, 1, 0], sizes = [1, 16, 16, 8], strides = [1, 1, 1, 1]} : vector<1x16x18x8xbf16> to vector<1x16x16x8xbf16>
    %43 = vector.extract_strided_slice %40 {offsets = [0, 0, 2, 0], sizes = [1, 16, 16, 8], strides = [1, 1, 1, 1]} : vector<1x16x18x8xbf16> to vector<1x16x16x8xbf16>
    %44 = tpu.concatenate %41, %42, %43 in 3 : vector<1x16x16x8xbf16>, vector<1x16x16x8xbf16>, vector<1x16x16x8xbf16> -> vector<1x16x16x24xbf16>
    %45 = vector.shape_cast %44 : vector<1x16x16x24xbf16> to vector<256x24xbf16>
    %c2_48 = arith.constant 2 : index
    %c0_49 = arith.constant 0 : index
    %c0_50 = arith.constant 0 : index
    %46 = vector.load %arg4[%c2_48, %c0_49, %c0_50] : memref<3x24x8xbf16, #tpu.memory_space<vmem>>, vector<1x24x8xbf16>
    %47 = vector.shape_cast %46 : vector<1x24x8xbf16> to vector<24x8xbf16>
    %cst_51 = arith.constant dense<0.000000e+00> : vector<256x8xf32>
    %48 = tpu.matmul %45, %47, %cst_51 {dimension_numbers = #tpu.dot_dimension_numbers<[1], [0], [0], [1], [0, 0, 1, 1], [], []>} : vector<256x24xbf16>, vector<24x8xbf16>, vector<256x8xf32> -> vector<256x8xf32>
    %49 = arith.addf %30, %39 : vector<256x8xf32>
    %50 = arith.addf %49, %48 : vector<256x8xf32>
    %51 = vector.shape_cast %50 : vector<256x8xf32> to vector<1x16x16x8xf32>
    %52 = arith.truncf %51 : vector<1x16x16x8xf32> to vector<1x16x16x8xbf16>
    %c0_52 = arith.constant 0 : index
    %c0_53 = arith.constant 0 : index
    %c0_54 = arith.constant 0 : index
    %c0_55 = arith.constant 0 : index
    %53 = vector.load %arg5[%c0_52, %c0_53, %c0_54, %c0_55] : memref<1x16x16x8xbf16, #tpu.memory_space<vmem>>, vector<1x16x16x8xbf16>
    tpu.vector_store %arg5[%c0_52, %c0_53, %c0_54, %c0_55], %52 {strides = array<i32>} : memref<1x16x16x8xbf16, #tpu.memory_space<vmem>>, vector<1x16x16x8xbf16>,
    %cst_56 = arith.constant dense<0.000000e+00> : vector<8xf32>
    %54 = vector.multi_reduction <add>, %50, %cst_56 [0] : vector<256x8xf32> to vector<8xf32>
    %55 = vector.shape_cast %54 : vector<8xf32> to vector<1x8xf32>
    %56 = vector.shape_cast %55 : vector<1x8xf32> to vector<1x1x8xf32>
    %c0_57 = arith.constant 0 : index
    %c0_58 = arith.constant 0 : index
    %c0_59 = arith.constant 0 : index
    %57 = vector.load %arg6[%c0_57, %c0_58, %c0_59] : memref<1x1x8xf32, #tpu.memory_space<vmem>>, vector<1x1x8xf32>
    tpu.vector_store %arg6[%c0_57, %c0_58, %c0_59], %56 {strides = array<i32>} : memref<1x1x8xf32, #tpu.memory_space<vmem>>, vector<1x1x8xf32>,
    %58 = arith.mulf %50, %50 : vector<256x8xf32>
    %cst_60 = arith.constant dense<0.000000e+00> : vector<8xf32>
    %59 = vector.multi_reduction <add>, %58, %cst_60 [0] : vector<256x8xf32> to vector<8xf32>
    %60 = vector.shape_cast %59 : vector<8xf32> to vector<1x8xf32>
    %61 = vector.shape_cast %60 : vector<1x8xf32> to vector<1x1x8xf32>
    %c0_61 = arith.constant 0 : index
    %c0_62 = arith.constant 0 : index
    %c0_63 = arith.constant 0 : index
    %62 = vector.load %arg7[%c0_61, %c0_62, %c0_63] : memref<1x1x8xf32, #tpu.memory_space<vmem>>, vector<1x1x8xf32>
    tpu.vector_store %arg7[%c0_61, %c0_62, %c0_63], %61 {strides = array<i32>} : memref<1x1x8xf32, #tpu.memory_space<vmem>>, vector<1x1x8xf32>,
    return
  }
  func.func @transform_0(%arg0: i32) -> (i32, i32, i32, i32) {
    %c0_i32 = arith.constant 0 : i32
    %c0_i32_0 = arith.constant 0 : i32
    %c0_i32_1 = arith.constant 0 : i32
    %c0_i32_2 = arith.constant 0 : i32
    return %arg0, %c0_i32, %c0_i32_0, %c0_i32_1 : i32, i32, i32, i32
  }
  func.func @transform_1(%arg0: i32) -> (i32, i32) {
    %c0_i32 = arith.constant 0 : i32
    %c0_i32_0 = arith.constant 0 : i32
    %c0_i32_1 = arith.constant 0 : i32
    return %c0_i32, %c0_i32_0 : i32, i32
  }
  func.func @transform_2(%arg0: i32) -> (i32, i32) {
    %c0_i32 = arith.constant 0 : i32
    %c0_i32_0 = arith.constant 0 : i32
    %c0_i32_1 = arith.constant 0 : i32
    return %c0_i32, %c0_i32_0 : i32, i32
  }
  func.func @transform_3(%arg0: i32) -> (i32, i32, i32) {
    %c0_i32 = arith.constant 0 : i32
    %c0_i32_0 = arith.constant 0 : i32
    %c0_i32_1 = arith.constant 0 : i32
    %c0_i32_2 = arith.constant 0 : i32
    return %c0_i32, %c0_i32_0, %c0_i32_1 : i32, i32, i32
  }
  func.func @transform_4(%arg0: i32) -> (i32, i32, i32, i32) {
    %c0_i32 = arith.constant 0 : i32
    %c0_i32_0 = arith.constant 0 : i32
    %c0_i32_1 = arith.constant 0 : i32
    %c0_i32_2 = arith.constant 0 : i32
    return %arg0, %c0_i32, %c0_i32_0, %c0_i32_1 : i32, i32, i32, i32
  }
  func.func @transform_5(%arg0: i32) -> (i32, i32, i32) {
    %c0_i32 = arith.constant 0 : i32
    %c0_i32_0 = arith.constant 0 : i32
    %c0_i32_1 = arith.constant 0 : i32
    return %arg0, %c0_i32, %c0_i32_0 : i32, i32, i32
  }
  func.func @transform_6(%arg0: i32) -> (i32, i32, i32) {
    %c0_i32 = arith.constant 0 : i32
    %c0_i32_0 = arith.constant 0 : i32
    %c0_i32_1 = arith.constant 0 : i32
    return %arg0, %c0_i32, %c0_i32_0 : i32, i32, i32
  }
}

module attributes {stable_mosaic.version = 11 : i64} {
  func.func @_stage4_kernel(%arg0: i32, %arg1: memref<1x16x16x32xbf16, #tpu.memory_space<vmem>>, %arg2: memref<1x32xf32, #tpu.memory_space<vmem>>, %arg3: memref<1x32xf32, #tpu.memory_space<vmem>>, %arg4: memref<1x16x16x32xbf16, #tpu.memory_space<vmem>>, %arg5: memref<1x16x16x32xf32, #tpu.memory_space<vmem>>) attributes {dimension_semantics = [#tpu.dimension_semantics<parallel>], iteration_bounds = array<i64: 2>, scalar_prefetch = 0 : i64, scratch_operands = 0 : i64, tpu.core_type = #tpu.core_type<tc>, window_params = [{transform_indices = @transform_0, window_bounds = array<i64: 1, 16, 16, 32>}, {pipeline_mode = #tpu.pipeline_mode<synchronous>, transform_indices = @transform_1, window_bounds = array<i64: 1, 32>}, {pipeline_mode = #tpu.pipeline_mode<synchronous>, transform_indices = @transform_2, window_bounds = array<i64: 1, 32>}, {transform_indices = @transform_3, window_bounds = array<i64: 1, 16, 16, 32>}, {transform_indices = @transform_4, window_bounds = array<i64: 1, 16, 16, 32>}]} {
    %c0 = arith.constant 0 : index
    %c0_0 = arith.constant 0 : index
    %0 = vector.load %arg2[%c0, %c0_0] : memref<1x32xf32, #tpu.memory_space<vmem>>, vector<1x32xf32>
    %1 = vector.shape_cast %0 : vector<1x32xf32> to vector<1x1x1x32xf32>
    %c0_1 = arith.constant 0 : index
    %c0_2 = arith.constant 0 : index
    %2 = vector.load %arg3[%c0_1, %c0_2] : memref<1x32xf32, #tpu.memory_space<vmem>>, vector<1x32xf32>
    %3 = vector.shape_cast %2 : vector<1x32xf32> to vector<1x1x1x32xf32>
    %c0_3 = arith.constant 0 : index
    %c0_4 = arith.constant 0 : index
    %c0_5 = arith.constant 0 : index
    %c0_6 = arith.constant 0 : index
    %4 = vector.load %arg1[%c0_3, %c0_4, %c0_5, %c0_6] : memref<1x16x16x32xbf16, #tpu.memory_space<vmem>>, vector<1x16x16x32xbf16>
    %5 = arith.extf %4 : vector<1x16x16x32xbf16> to vector<1x16x16x32xf32>
    %6 = vector.broadcast %1 : vector<1x1x1x32xf32> to vector<1x16x16x32xf32>
    %7 = arith.mulf %5, %6 : vector<1x16x16x32xf32>
    %8 = vector.broadcast %3 : vector<1x1x1x32xf32> to vector<1x16x16x32xf32>
    %9 = arith.addf %7, %8 : vector<1x16x16x32xf32>
    %c0_7 = arith.constant 0 : index
    %c0_8 = arith.constant 0 : index
    %c0_9 = arith.constant 0 : index
    %c0_10 = arith.constant 0 : index
    %10 = vector.load %arg4[%c0_7, %c0_8, %c0_9, %c0_10] : memref<1x16x16x32xbf16, #tpu.memory_space<vmem>>, vector<1x16x16x32xbf16>
    %11 = arith.extf %10 : vector<1x16x16x32xbf16> to vector<1x16x16x32xf32>
    %12 = arith.addf %9, %11 : vector<1x16x16x32xf32>
    %cst = arith.constant 0.000000e+00 : f32
    %13 = vector.broadcast %cst : f32 to vector<1x16x16x32xf32>
    %14 = arith.maximumf %12, %13 : vector<1x16x16x32xf32>
    %c0_11 = arith.constant 0 : index
    %c0_12 = arith.constant 0 : index
    %c0_13 = arith.constant 0 : index
    %c0_14 = arith.constant 0 : index
    %15 = vector.load %arg5[%c0_11, %c0_12, %c0_13, %c0_14] : memref<1x16x16x32xf32, #tpu.memory_space<vmem>>, vector<1x16x16x32xf32>
    tpu.vector_store %arg5[%c0_11, %c0_12, %c0_13, %c0_14], %14 {strides = array<i32>} : memref<1x16x16x32xf32, #tpu.memory_space<vmem>>, vector<1x16x16x32xf32>,
    return
  }
  func.func @transform_0(%arg0: i32) -> (i32, i32, i32, i32) {
    %c0_i32 = arith.constant 0 : i32
    %c0_i32_0 = arith.constant 0 : i32
    %c0_i32_1 = arith.constant 0 : i32
    %c0_i32_2 = arith.constant 0 : i32
    return %arg0, %c0_i32, %c0_i32_0, %c0_i32_1 : i32, i32, i32, i32
  }
  func.func @transform_1(%arg0: i32) -> (i32, i32) {
    %c0_i32 = arith.constant 0 : i32
    %c0_i32_0 = arith.constant 0 : i32
    %c0_i32_1 = arith.constant 0 : i32
    return %c0_i32, %c0_i32_0 : i32, i32
  }
  func.func @transform_2(%arg0: i32) -> (i32, i32) {
    %c0_i32 = arith.constant 0 : i32
    %c0_i32_0 = arith.constant 0 : i32
    %c0_i32_1 = arith.constant 0 : i32
    return %c0_i32, %c0_i32_0 : i32, i32
  }
  func.func @transform_3(%arg0: i32) -> (i32, i32, i32, i32) {
    %c0_i32 = arith.constant 0 : i32
    %c0_i32_0 = arith.constant 0 : i32
    %c0_i32_1 = arith.constant 0 : i32
    %c0_i32_2 = arith.constant 0 : i32
    return %arg0, %c0_i32, %c0_i32_0, %c0_i32_1 : i32, i32, i32, i32
  }
  func.func @transform_4(%arg0: i32) -> (i32, i32, i32, i32) {
    %c0_i32 = arith.constant 0 : i32
    %c0_i32_0 = arith.constant 0 : i32
    %c0_i32_1 = arith.constant 0 : i32
    %c0_i32_2 = arith.constant 0 : i32
    return %arg0, %c0_i32, %c0_i32_0, %c0_i32_1 : i32, i32, i32, i32
  }
}

module attributes {stable_mosaic.version = 11 : i64} {
  func.func @_stage3_kernel(%arg0: i32, %arg1: memref<1x16x16x8xbf16, #tpu.memory_space<vmem>>, %arg2: memref<1x8xf32, #tpu.memory_space<vmem>>, %arg3: memref<1x8xf32, #tpu.memory_space<vmem>>, %arg4: memref<8x32xbf16, #tpu.memory_space<vmem>>, %arg5: memref<1x16x16x32xbf16, #tpu.memory_space<vmem>>, %arg6: memref<1x1x32xf32, #tpu.memory_space<vmem>>, %arg7: memref<1x1x32xf32, #tpu.memory_space<vmem>>) attributes {dimension_semantics = [#tpu.dimension_semantics<parallel>], iteration_bounds = array<i64: 2>, scalar_prefetch = 0 : i64, scratch_operands = 0 : i64, tpu.core_type = #tpu.core_type<tc>, window_params = [{transform_indices = @transform_0, window_bounds = array<i64: 1, 16, 16, 8>}, {pipeline_mode = #tpu.pipeline_mode<synchronous>, transform_indices = @transform_1, window_bounds = array<i64: 1, 8>}, {pipeline_mode = #tpu.pipeline_mode<synchronous>, transform_indices = @transform_2, window_bounds = array<i64: 1, 8>}, {pipeline_mode = #tpu.pipeline_mode<synchronous>, transform_indices = @transform_3, window_bounds = array<i64: 8, 32>}, {transform_indices = @transform_4, window_bounds = array<i64: 1, 16, 16, 32>}, {transform_indices = @transform_5, window_bounds = array<i64: 1, 1, 32>}, {transform_indices = @transform_6, window_bounds = array<i64: 1, 1, 32>}]} {
    %c0 = arith.constant 0 : index
    %c0_0 = arith.constant 0 : index
    %0 = vector.load %arg2[%c0, %c0_0] : memref<1x8xf32, #tpu.memory_space<vmem>>, vector<1x8xf32>
    %1 = vector.shape_cast %0 : vector<1x8xf32> to vector<1x1x1x8xf32>
    %c0_1 = arith.constant 0 : index
    %c0_2 = arith.constant 0 : index
    %2 = vector.load %arg3[%c0_1, %c0_2] : memref<1x8xf32, #tpu.memory_space<vmem>>, vector<1x8xf32>
    %3 = vector.shape_cast %2 : vector<1x8xf32> to vector<1x1x1x8xf32>
    %c0_3 = arith.constant 0 : index
    %c0_4 = arith.constant 0 : index
    %c0_5 = arith.constant 0 : index
    %c0_6 = arith.constant 0 : index
    %4 = vector.load %arg1[%c0_3, %c0_4, %c0_5, %c0_6] : memref<1x16x16x8xbf16, #tpu.memory_space<vmem>>, vector<1x16x16x8xbf16>
    %5 = arith.extf %4 : vector<1x16x16x8xbf16> to vector<1x16x16x8xf32>
    %6 = vector.broadcast %1 : vector<1x1x1x8xf32> to vector<1x16x16x8xf32>
    %7 = arith.mulf %5, %6 : vector<1x16x16x8xf32>
    %8 = vector.broadcast %3 : vector<1x1x1x8xf32> to vector<1x16x16x8xf32>
    %9 = arith.addf %7, %8 : vector<1x16x16x8xf32>
    %cst = arith.constant 0.000000e+00 : f32
    %10 = vector.broadcast %cst : f32 to vector<1x16x16x8xf32>
    %11 = arith.maximumf %9, %10 : vector<1x16x16x8xf32>
    %12 = vector.shape_cast %11 : vector<1x16x16x8xf32> to vector<256x8xf32>
    %13 = arith.truncf %12 : vector<256x8xf32> to vector<256x8xbf16>
    %c0_7 = arith.constant 0 : index
    %c0_8 = arith.constant 0 : index
    %14 = vector.load %arg4[%c0_7, %c0_8] : memref<8x32xbf16, #tpu.memory_space<vmem>>, vector<8x32xbf16>
    %cst_9 = arith.constant dense<0.000000e+00> : vector<256x32xf32>
    %15 = tpu.matmul %13, %14, %cst_9 {dimension_numbers = #tpu.dot_dimension_numbers<[1], [0], [0], [1], [0, 0, 1, 1], [], []>} : vector<256x8xbf16>, vector<8x32xbf16>, vector<256x32xf32> -> vector<256x32xf32>
    %16 = vector.shape_cast %15 : vector<256x32xf32> to vector<1x16x16x32xf32>
    %17 = arith.truncf %16 : vector<1x16x16x32xf32> to vector<1x16x16x32xbf16>
    %c0_10 = arith.constant 0 : index
    %c0_11 = arith.constant 0 : index
    %c0_12 = arith.constant 0 : index
    %c0_13 = arith.constant 0 : index
    %18 = vector.load %arg5[%c0_10, %c0_11, %c0_12, %c0_13] : memref<1x16x16x32xbf16, #tpu.memory_space<vmem>>, vector<1x16x16x32xbf16>
    tpu.vector_store %arg5[%c0_10, %c0_11, %c0_12, %c0_13], %17 {strides = array<i32>} : memref<1x16x16x32xbf16, #tpu.memory_space<vmem>>, vector<1x16x16x32xbf16>,
    %cst_14 = arith.constant dense<0.000000e+00> : vector<32xf32>
    %19 = vector.multi_reduction <add>, %15, %cst_14 [0] : vector<256x32xf32> to vector<32xf32>
    %20 = vector.shape_cast %19 : vector<32xf32> to vector<1x32xf32>
    %21 = vector.shape_cast %20 : vector<1x32xf32> to vector<1x1x32xf32>
    %c0_15 = arith.constant 0 : index
    %c0_16 = arith.constant 0 : index
    %c0_17 = arith.constant 0 : index
    %22 = vector.load %arg6[%c0_15, %c0_16, %c0_17] : memref<1x1x32xf32, #tpu.memory_space<vmem>>, vector<1x1x32xf32>
    tpu.vector_store %arg6[%c0_15, %c0_16, %c0_17], %21 {strides = array<i32>} : memref<1x1x32xf32, #tpu.memory_space<vmem>>, vector<1x1x32xf32>,
    %23 = arith.mulf %15, %15 : vector<256x32xf32>
    %cst_18 = arith.constant dense<0.000000e+00> : vector<32xf32>
    %24 = vector.multi_reduction <add>, %23, %cst_18 [0] : vector<256x32xf32> to vector<32xf32>
    %25 = vector.shape_cast %24 : vector<32xf32> to vector<1x32xf32>
    %26 = vector.shape_cast %25 : vector<1x32xf32> to vector<1x1x32xf32>
    %c0_19 = arith.constant 0 : index
    %c0_20 = arith.constant 0 : index
    %c0_21 = arith.constant 0 : index
    %27 = vector.load %arg7[%c0_19, %c0_20, %c0_21] : memref<1x1x32xf32, #tpu.memory_space<vmem>>, vector<1x1x32xf32>
    tpu.vector_store %arg7[%c0_19, %c0_20, %c0_21], %26 {strides = array<i32>} : memref<1x1x32xf32, #tpu.memory_space<vmem>>, vector<1x1x32xf32>,
    return
  }
  func.func @transform_0(%arg0: i32) -> (i32, i32, i32, i32) {
    %c0_i32 = arith.constant 0 : i32
    %c0_i32_0 = arith.constant 0 : i32
    %c0_i32_1 = arith.constant 0 : i32
    %c0_i32_2 = arith.constant 0 : i32
    return %arg0, %c0_i32, %c0_i32_0, %c0_i32_1 : i32, i32, i32, i32
  }
  func.func @transform_1(%arg0: i32) -> (i32, i32) {
    %c0_i32 = arith.constant 0 : i32
    %c0_i32_0 = arith.constant 0 : i32
    %c0_i32_1 = arith.constant 0 : i32
    return %c0_i32, %c0_i32_0 : i32, i32
  }
  func.func @transform_2(%arg0: i32) -> (i32, i32) {
    %c0_i32 = arith.constant 0 : i32
    %c0_i32_0 = arith.constant 0 : i32
    %c0_i32_1 = arith.constant 0 : i32
    return %c0_i32, %c0_i32_0 : i32, i32
  }
  func.func @transform_3(%arg0: i32) -> (i32, i32) {
    %c0_i32 = arith.constant 0 : i32
    %c0_i32_0 = arith.constant 0 : i32
    %c0_i32_1 = arith.constant 0 : i32
    return %c0_i32, %c0_i32_0 : i32, i32
  }
  func.func @transform_4(%arg0: i32) -> (i32, i32, i32, i32) {
    %c0_i32 = arith.constant 0 : i32
    %c0_i32_0 = arith.constant 0 : i32
    %c0_i32_1 = arith.constant 0 : i32
    %c0_i32_2 = arith.constant 0 : i32
    return %arg0, %c0_i32, %c0_i32_0, %c0_i32_1 : i32, i32, i32, i32
  }
  func.func @transform_5(%arg0: i32) -> (i32, i32, i32) {
    %c0_i32 = arith.constant 0 : i32
    %c0_i32_0 = arith.constant 0 : i32
    %c0_i32_1 = arith.constant 0 : i32
    return %arg0, %c0_i32, %c0_i32_0 : i32, i32, i32
  }
  func.func @transform_6(%arg0: i32) -> (i32, i32, i32) {
    %c0_i32 = arith.constant 0 : i32
    %c0_i32_0 = arith.constant 0 : i32
    %c0_i32_1 = arith.constant 0 : i32
    return %arg0, %c0_i32, %c0_i32_0 : i32, i32, i32
  }
}

</mosaic_0001>

<llo_original>
// kernel: bottleneck_forward.7
$region0: #{bottleneck_forward.7}
  #allocation0 [shape = 'u32[]', space=smem, size = 0x4, offset = 0x4, fixed_abs, tag = 'smem constant byte address 0x4 - core index']
  #allocation1 [shape = 'u32[144,128]{1,0:T(1,128)}', space=vmem, size = 0x12000, scoped, tag = 'internal scratch']
  %s0 = inlined_call_operand.vmem [shape: bf16[2,16,16,32], index: 0, kind: input, shape index: {}]
  %s1 = inlined_call_operand.vmem [shape: f32[1,32], index: 1, kind: input, shape index: {}]
  %s2 = inlined_call_operand.vmem [shape: f32[1,32], index: 2, kind: input, shape index: {}]
  %s3 = inlined_call_operand.vmem [shape: bf16[2,16,16,32], index: 3, kind: input, shape index: {}]
  %s4 = inlined_call_operand.hbm [shape: f32[2,16,16,32], index: 4, kind: output, shape index: {}]
  %s5 = sld [smem:[#allocation0]]
  $region49: #{bottleneck_forward.7} parent=0
    _
  %s7 = ssub.s32 1, %s5
  %s8 = scalar_select 0, %s7, %s5
  $region1: #{bottleneck_forward.7} parent=0
    #allocation2 [shape = 'u8[262144]{0}', space=vmem, size = 0x40000, scoped, tag = 'output window, operand 0']
    #allocation3 [shape = 's32[2]{0}', space=sflag, size = 0x8, scoped, tag = 'scoped memory for bottleneck_forward.7']
    %9 = vsyncpa [#allocation3], 0
    %s10 = scalar_lea.sflag [#allocation3], 1
    %11 = vsyncpa %s10, 0
    loop: start=0, step=1, limit=4
    $region2: #{bottleneck_forward.7} parent=1 // loop_pre_header
      _
    $region3: #{bottleneck_forward.7} parent=1 // loop_header
      %s13 = sphi 0, %s17
      %p14 = scmp.ge.s32.totalorder %s13, 4
      %s23 = sphi 0, %s25
      %s26 = sphi 0, %s23
      %s27 = sphi 0, %s26
      %s43 = sphi 0, %s27
      %s47 = sphi 0, %s47
      %s49 = sphi 0, %s47
      %s50 = sphi 0, %s49
      %s64 = sphi 0, %s50
      %s68 = sphi 0, %s68
      %s70 = sphi 0, %s68
      %s71 = sphi 0, %s70
      %s85 = sphi 0, %s71
      %s91 = sphi 0, %s93
      %s94 = sphi 0, %s91
      %s95 = sphi 0, %s94
      %s111 = sphi 0, %s95
      %s117 = sphi 0, %s119
      %s120 = sphi 0, %s117
      %s121 = sphi 0, %s120
      %s137 = sphi 0, %s121
    $region4: #{bottleneck_forward.7} parent=1 // loop_header_branch
      %16 = sbr.rel (%p14) target = $region8
    $region5: #{bottleneck_forward.7} parent=1 // loop_body
      %s18 = ssub.s32 %s13, 1
      %s19 = ssub.s32 %s13, 2
      %s20 = sadd.s32 %s13, 1
      %s21 = ssub.s32 %s13, %s20
      %p22 = scmp.eq.s32.totalorder %s21, 0
      %s24 = sadd.s32 %s23, 1
      %s25 = scalar_select %p22, %s23, %s24
      %p28 = pneg %p22
      %p29 = scmp.eq.s32.totalorder %s13, 1
      %p30 = por %p28, %p29
      %p31 = scmp.ne.s32.totalorder %s23, %s26
      %p32 = scmp.eq.s32.totalorder %s13, 0
      %p33 = por %p31, %p32
      %p34 = scmp.ne.s32.totalorder %s23, %s26
      %p35 = scmp.eq.s32.totalorder %s18, 1
      %p36 = por %p34, %p35
      %p37 = scmp.ne.s32.totalorder %s26, %s27
      %p38 = scmp.eq.s32.totalorder %s18, 0
      %p39 = por %p37, %p38
      %p40 = scmp.ne.s32.totalorder %s26, %s27
      %p41 = scmp.eq.s32.totalorder %s19, 1
      %p42 = por %p40, %p41
      %p44 = scmp.ne.s32.totalorder %s27, %s43
      %p45 = scmp.eq.s32.totalorder %s19, 0
      %p46 = por %p44, %p45
      %s48 = sadd.s32 %s47, 1
      %p51 = scmp.eq.s32.totalorder %s13, 1
      %p52 = scmp.ne.s32.totalorder %s47, %s49
      %p53 = scmp.eq.s32.totalorder %s13, 0
      %p54 = por %p52, %p53
      %p55 = scmp.ne.s32.totalorder %s47, %s49
      %p56 = scmp.eq.s32.totalorder %s18, 1
      %p57 = por %p55, %p56
      %p58 = scmp.ne.s32.totalorder %s49, %s50
      %p59 = scmp.eq.s32.totalorder %s18, 0
      %p60 = por %p58, %p59
      %p61 = scmp.ne.s32.totalorder %s49, %s50
      %p62 = scmp.eq.s32.totalorder %s19, 1
      %p63 = por %p61, %p62
      %p65 = scmp.ne.s32.totalorder %s50, %s64
      %p66 = scmp.eq.s32.totalorder %s19, 0
      %p67 = por %p65, %p66
      %s69 = sadd.s32 %s68, 1
      %p72 = scmp.eq.s32.totalorder %s13, 1
      %p73 = scmp.ne.s32.totalorder %s68, %s70
      %p74 = scmp.eq.s32.totalorder %s13, 0
      %p75 = por %p73, %p74
      %p76 = scmp.ne.s32.totalorder %s68, %s70
      %p77 = scmp.eq.s32.totalorder %s18, 1
      %p78 = por %p76, %p77
      %p79 = scmp.ne.s32.totalorder %s70, %s71
      %p80 = scmp.eq.s32.totalorder %s18, 0
      %p81 = por %p79, %p80
      %p82 = scmp.ne.s32.totalorder %s70, %s71
      %p83 = scmp.eq.s32.totalorder %s19, 1
      %p84 = por %p82, %p83
      %p86 = scmp.ne.s32.totalorder %s71, %s85
      %p87 = scmp.eq.s32.totalorder %s19, 0
      %p88 = por %p86, %p87
      %s89 = ssub.s32 %s13, %s20
      %p90 = scmp.eq.s32.totalorder %s89, 0
      %s92 = sadd.s32 %s91, 1
      %s93 = scalar_select %p90, %s91, %s92
      %p96 = pneg %p90
      %p97 = scmp.eq.s32.totalorder %s13, 1
      %p98 = por %p96, %p97
      %p99 = scmp.ne.s32.totalorder %s91, %s94
      %p100 = scmp.eq.s32.totalorder %s13, 0
      %p101 = por %p99, %p100
      %p102 = scmp.ne.s32.totalorder %s91, %s94
      %p103 = scmp.eq.s32.totalorder %s18, 1
      %p104 = por %p102, %p103
      %p105 = scmp.ne.s32.totalorder %s94, %s95
      %p106 = scmp.eq.s32.totalorder %s18, 0
      %p107 = por %p105, %p106
      %p108 = scmp.ne.s32.totalorder %s94, %s95
      %p109 = scmp.eq.s32.totalorder %s19, 1
      %p110 = por %p108, %p109
      %p112 = scmp.ne.s32.totalorder %s95, %s111
      %p113 = scmp.eq.s32.totalorder %s19, 0
      %p114 = por %p112, %p113
      %s115 = ssub.s32 %s13, %s20
      %p116 = scmp.eq.s32.totalorder %s115, 0
      %s118 = sadd.s32 %s117, 1
      %s119 = scalar_select %p116, %s117, %s118
      %p122 = pneg %p116
      %p123 = scmp.eq.s32.totalorder %s13, 1
      %p124 = por %p122, %p123
      %p125 = scmp.ne.s32.totalorder %s117, %s120
      %p126 = scmp.eq.s32.totalorder %s13, 0
      %p127 = por %p125, %p126
      %p128 = scmp.ne.s32.totalorder %s117, %s120
      %p129 = scmp.eq.s32.totalorder %s18, 1
      %p130 = por %p128, %p129
      %p131 = scmp.ne.s32.totalorder %s120, %s121
      %p132 = scmp.eq.s32.totalorder %s18, 0
      %p133 = por %p131, %p132
      %p134 = scmp.ne.s32.totalorder %s120, %s121
      %p135 = scmp.eq.s32.totalorder %s19, 1
      %p136 = por %p134, %p135
      %p138 = scmp.ne.s32.totalorder %s121, %s137
      %p139 = scmp.eq.s32.totalorder %s19, 0
      %p140 = por %p138, %p139
      %p141 = scmp.le.s32.totalorder 1, %s13
      %p142 = scmp.lt.s32.totalorder %s13, 3
      %p143 = pnand %p141, %p142
      %p144 = pneg %p143
      // Predicated region
      $region9: #{bottleneck_forward.7} parent=5 // pred_check
        _
      $region10: #{bottleneck_forward.7} parent=5 // pred_check_branch
        %146 = sbr.rel (%p143) target = $region12
      $region11: #{bottleneck_forward.7} parent=5 // pred_region
        %s147 = ssub.s32 %s13, 1
        // Predicated region
        $region13: #{bottleneck_forward.7} parent=11 // pred_check
          %p148 = pneg %p60
        $region14: #{bottleneck_forward.7} parent=11 // pred_check_branch
          %150 = sbr.rel (%p148) target = $region16
        $region15: #{bottleneck_forward.7} parent=11 // pred_region
          _
        $region16: #{bottleneck_forward.7} parent=11 // pred_fallthru
          _
        // Predicated region
        $region17: #{bottleneck_forward.7} parent=11 // pred_check
          %p151 = pneg %p81
        $region18: #{bottleneck_forward.7} parent=11 // pred_check_branch
          %153 = sbr.rel (%p151) target = $region20
        $region19: #{bottleneck_forward.7} parent=11 // pred_region
          _
        $region20: #{bottleneck_forward.7} parent=11 // pred_fallthru
          _
      $region12: #{bottleneck_forward.7} parent=5 // pred_fallthru
        _
      %p154 = scmp.lt.s32.totalorder %s13, 2
      // Predicated region
      $region21: #{bottleneck_forward.7} parent=5 // pred_check
        %p155 = pneg %p154
      $region22: #{bottleneck_forward.7} parent=5 // pred_check_branch
        %157 = sbr.rel (%p155) target = $region24
      $region23: #{bottleneck_forward.7} parent=5 // pred_region
        // Predicated region
        $region25: #{bottleneck_forward.7} parent=23 // pred_check
          %p158 = pneg %p33
        $region26: #{bottleneck_forward.7} parent=23 // pred_check_branch
          %160 = sbr.rel (%p158) target = $region28
        $region27: #{bottleneck_forward.7} parent=23 // pred_region
          %p161 = scmp.lt.s32.totalorder %s13, 1
          %s162 = scalar_select %p161, %s13, 1
          %s163 = smul.addr %s162, 32
          %s164 = smul.addr %s163, 4
          %s165 = scalar_lea.vmem %s0, %s164
        $region28: #{bottleneck_forward.7} parent=23 // pred_fallthru
          _
        // Predicated region
        $region29: #{bottleneck_forward.7} parent=23 // pred_check
          %p166 = pneg %p101
        $region30: #{bottleneck_forward.7} parent=23 // pred_check_branch
          %168 = sbr.rel (%p166) target = $region32
        $region31: #{bottleneck_forward.7} parent=23 // pred_region
          %p169 = scmp.lt.s32.totalorder %s13, 1
          %s170 = scalar_select %p169, %s13, 1
          %s171 = smul.addr %s170, 32
          %s172 = smul.addr %s171, 4
          %s173 = scalar_lea.vmem %s3, %s172
        $region32: #{bottleneck_forward.7} parent=23 // pred_fallthru
          _
      $region24: #{bottleneck_forward.7} parent=5 // pred_fallthru
        _
      %p174 = scmp.le.s32.totalorder 1, %s13
      %p175 = scmp.lt.s32.totalorder %s13, 3
      %p176 = pnand %p174, %p175
      %p177 = pneg %p176
      // Predicated region
      $region33: #{bottleneck_forward.7} parent=5 // pred_check
        _
      $region34: #{bottleneck_forward.7} parent=5 // pred_check_branch
        %179 = sbr.rel (%p176) target = $region36
      $region35: #{bottleneck_forward.7} parent=5 // pred_region
        %s180 = ssub.s32 %s13, 1
        %p181 = scmp.lt.s32.totalorder %s18, 1
        %s182 = scalar_select %p181, %s18, 1
        %s183 = smul.addr %s182, 32
        %s184 = smul.addr %s183, 4
        %s185 = scalar_lea.vmem %s0, %s184
        %p186 = pneg %p39
        %p187 = pneg %p36
        %p188 = pneg %p60
        %p189 = pneg %p57
        %p190 = pneg %p81
        %p191 = pneg %p78
        %p192 = scmp.lt.s32.totalorder %s18, 1
        %s193 = scalar_select %p192, %s18, 1
        %s194 = smul.addr %s193, 32
        %s195 = smul.addr %s194, 4
        %s196 = scalar_lea.vmem %s3, %s195
        %p197 = pneg %p107
        %p198 = pneg %p104
        %p199 = pneg %p133
        %p200 = pneg %p130
        %s201 = sand.u32 %s120, 1
        %s202 = scalar_lea.sflag [#allocation3], %s201
        %s203 = sand.u32 %s120, 1
        %s204 = smul.addr %s203, 256
        %s205 = scalar_lea.vmem [#allocation2], %s204
        %p206 = scmp.lt.s32.totalorder %s18, 1
        %s207 = scalar_select %p206, %s18, 1
        %s208 = smul.addr %s207, 32
        %s209 = smul.addr %s208, 4
        %s210 = scalar_lea.vmem %s0, %s209
        %p211 = scmp.lt.s32.totalorder %s18, 1
        %s212 = scalar_select %p211, %s18, 1
        %s213 = smul.addr %s212, 32
        %s214 = smul.addr %s213, 4
        %s215 = scalar_lea.vmem %s3, %s214
        %v216 = vld [vmem:[%s1] sm:$0x1]
        %v217 = vld [vmem:[%s2] sm:$0x1]
        %v218 = vld [vmem:[%s210] sm:$0xf]
        %v219 = vld [vmem:[%s210 + $0x4] sm:$0xf]
        %v220 = vld [vmem:[%s210 + $0x8] sm:$0xf]
        %v221 = vld [vmem:[%s210 + $0xc] sm:$0xf]
        %v222 = vld [vmem:[%s210 + $0x10] sm:$0xf]
        %v223 = vld [vmem:[%s210 + $0x14] sm:$0xf]
        %v224 = vld [vmem:[%s210 + $0x18] sm:$0xf]
        %v225 = vld [vmem:[%s210 + $0x1c] sm:$0xf]
        %v226 = vld [vmem:[%s210 + $0x20] sm:$0xf]
        %v227 = vld [vmem:[%s210 + $0x24] sm:$0xf]
        %v228 = vld [vmem:[%s210 + $0x28] sm:$0xf]
        %v229 = vld [vmem:[%s210 + $0x2c] sm:$0xf]
        %v230 = vld [vmem:[%s210 + $0x30] sm:$0xf]
        %v231 = vld [vmem:[%s210 + $0x34] sm:$0xf]
        %v232 = vld [vmem:[%s210 + $0x38] sm:$0xf]
        %v233 = vld [vmem:[%s210 + $0x3c] sm:$0xf]
        %v234 = vld [vmem:[%s210 + $0x40] sm:$0xf]
        %v235 = vld [vmem:[%s210 + $0x44] sm:$0xf]
        %v236 = vld [vmem:[%s210 + $0x48] sm:$0xf]
        %v237 = vld [vmem:[%s210 + $0x4c] sm:$0xf]
        %v238 = vld [vmem:[%s210 + $0x50] sm:$0xf]
        %v239 = vld [vmem:[%s210 + $0x54] sm:$0xf]
        %v240 = vld [vmem:[%s210 + $0x58] sm:$0xf]
        %v241 = vld [vmem:[%s210 + $0x5c] sm:$0xf]
        %v242 = vld [vmem:[%s210 + $0x60] sm:$0xf]
        %v243 = vld [vmem:[%s210 + $0x64] sm:$0xf]
        %v244 = vld [vmem:[%s210 + $0x68] sm:$0xf]
        %v245 = vld [vmem:[%s210 + $0x6c] sm:$0xf]
        %v246 = vld [vmem:[%s210 + $0x70] sm:$0xf]
        %v247 = vld [vmem:[%s210 + $0x74] sm:$0xf]
        %v248 = vld [vmem:[%s210 + $0x78] sm:$0xf]
        %v249 = vld [vmem:[%s210 + $0x7c] sm:$0xf]
        %v250 = vunpack.c.l.bf16 %v218
        %v251 = vunpack.c.l.bf16 %v219
        %v252 = vunpack.c.l.bf16 %v220
        %v253 = vunpack.c.l.bf16 %v221
        %v254 = vunpack.c.l.bf16 %v222
        %v255 = vunpack.c.l.bf16 %v223
        %v256 = vunpack.c.l.bf16 %v224
        %v257 = vunpack.c.l.bf16 %v225
        %v258 = vunpack.c.l.bf16 %v226
        %v259 = vunpack.c.l.bf16 %v227
        %v260 = vunpack.c.l.bf16 %v228
        %v261 = vunpack.c.l.bf16 %v229
        %v262 = vunpack.c.l.bf16 %v230
        %v263 = vunpack.c.l.bf16 %v231
        %v264 = vunpack.c.l.bf16 %v232
        %v265 = vunpack.c.l.bf16 %v233
        %v266 = vunpack.c.l.bf16 %v234
        %v267 = vunpack.c.l.bf16 %v235
        %v268 = vunpack.c.l.bf16 %v236
        %v269 = vunpack.c.l.bf16 %v237
        %v270 = vunpack.c.l.bf16 %v238
        %v271 = vunpack.c.l.bf16 %v239
        %v272 = vunpack.c.l.bf16 %v240
        %v273 = vunpack.c.l.bf16 %v241
        %v274 = vunpack.c.l.bf16 %v242
        %v275 = vunpack.c.l.bf16 %v243
        %v276 = vunpack.c.l.bf16 %v244
        %v277 = vunpack.c.l.bf16 %v245
        %v278 = vunpack.c.l.bf16 %v246
        %v279 = vunpack.c.l.bf16 %v247
        %v280 = vunpack.c.l.bf16 %v248
        %v281 = vunpack.c.l.bf16 %v249
        %v283 = vlaneseq
        %v284 = vshrl.u32 %v283, 7
        %v285 = vsub.s32 0, %v284
        %v286 = vrot.slane %v216, %v285
        %v288 = vmul.f32 %v250, %v286
        %v289 = vmul.f32 %v251, %v286
        %v290 = vmul.f32 %v252, %v286
        %v291 = vmul.f32 %v253, %v286
        %v292 = vmul.f32 %v254, %v286
        %v293 = vmul.f32 %v255, %v286
        %v294 = vmul.f32 %v256, %v286
        %v295 = vmul.f32 %v257, %v286
        %v296 = vmul.f32 %v258, %v286
        %v297 = vmul.f32 %v259, %v286
        %v298 = vmul.f32 %v260, %v286
        %v299 = vmul.f32 %v261, %v286
        %v300 = vmul.f32 %v262, %v286
        %v301 = vmul.f32 %v263, %v286
        %v302 = vmul.f32 %v264, %v286
        %v303 = vmul.f32 %v265, %v286
        %v304 = vmul.f32 %v266, %v286
        %v305 = vmul.f32 %v267, %v286
        %v306 = vmul.f32 %v268, %v286
        %v307 = vmul.f32 %v269, %v286
        %v308 = vmul.f32 %v270, %v286
        %v309 = vmul.f32 %v271, %v286
        %v310 = vmul.f32 %v272, %v286
        %v311 = vmul.f32 %v273, %v286
        %v312 = vmul.f32 %v274, %v286
        %v313 = vmul.f32 %v275, %v286
        %v314 = vmul.f32 %v276, %v286
        %v315 = vmul.f32 %v277, %v286
        %v316 = vmul.f32 %v278, %v286
        %v317 = vmul.f32 %v279, %v286
        %v318 = vmul.f32 %v280, %v286
        %v319 = vmul.f32 %v281, %v286
        %v321 = vlaneseq
        %v322 = vshrl.u32 %v321, 7
        %v323 = vsub.s32 0, %v322
        %v324 = vrot.slane %v217, %v323
        %v326 = vadd.f32 %v288, %v324
        %v327 = vadd.f32 %v289, %v324
        %v328 = vadd.f32 %v290, %v324
        %v329 = vadd.f32 %v291, %v324
        %v330 = vadd.f32 %v292, %v324
        %v331 = vadd.f32 %v293, %v324
        %v332 = vadd.f32 %v294, %v324
        %v333 = vadd.f32 %v295, %v324
        %v334 = vadd.f32 %v296, %v324
        %v335 = vadd.f32 %v297, %v324
        %v336 = vadd.f32 %v298, %v324
        %v337 = vadd.f32 %v299, %v324
        %v338 = vadd.f32 %v300, %v324
        %v339 = vadd.f32 %v301, %v324
        %v340 = vadd.f32 %v302, %v324
        %v341 = vadd.f32 %v303, %v324
        %v342 = vadd.f32 %v304, %v324
        %v343 = vadd.f32 %v305, %v324
        %v344 = vadd.f32 %v306, %v324
        %v345 = vadd.f32 %v307, %v324
        %v346 = vadd.f32 %v308, %v324
        %v347 = vadd.f32 %v309, %v324
        %v348 = vadd.f32 %v310, %v324
        %v349 = vadd.f32 %v311, %v324
        %v350 = vadd.f32 %v312, %v324
        %v351 = vadd.f32 %v313, %v324
        %v352 = vadd.f32 %v314, %v324
        %v353 = vadd.f32 %v315, %v324
        %v354 = vadd.f32 %v316, %v324
        %v355 = vadd.f32 %v317, %v324
        %v356 = vadd.f32 %v318, %v324
        %v357 = vadd.f32 %v319, %v324
        %v358 = vld [vmem:[%s215] sm:$0xf]
        %v359 = vld [vmem:[%s215 + $0x4] sm:$0xf]
        %v360 = vld [vmem:[%s215 + $0x8] sm:$0xf]
        %v361 = vld [vmem:[%s215 + $0xc] sm:$0xf]
        %v362 = vld [vmem:[%s215 + $0x10] sm:$0xf]
        %v363 = vld [vmem:[%s215 + $0x14] sm:$0xf]
        %v364 = vld [vmem:[%s215 + $0x18] sm:$0xf]
        %v365 = vld [vmem:[%s215 + $0x1c] sm:$0xf]
        %v366 = vld [vmem:[%s215 + $0x20] sm:$0xf]
        %v367 = vld [vmem:[%s215 + $0x24] sm:$0xf]
        %v368 = vld [vmem:[%s215 + $0x28] sm:$0xf]
        %v369 = vld [vmem:[%s215 + $0x2c] sm:$0xf]
        %v370 = vld [vmem:[%s215 + $0x30] sm:$0xf]
        %v371 = vld [vmem:[%s215 + $0x34] sm:$0xf]
        %v372 = vld [vmem:[%s215 + $0x38] sm:$0xf]
        %v373 = vld [vmem:[%s215 + $0x3c] sm:$0xf]
        %v374 = vld [vmem:[%s215 + $0x40] sm:$0xf]
        %v375 = vld [vmem:[%s215 + $0x44] sm:$0xf]
        %v376 = vld [vmem:[%s215 + $0x48] sm:$0xf]
        %v377 = vld [vmem:[%s215 + $0x4c] sm:$0xf]
        %v378 = vld [vmem:[%s215 + $0x50] sm:$0xf]
        %v379 = vld [vmem:[%s215 + $0x54] sm:$0xf]
        %v380 = vld [vmem:[%s215 + $0x58] sm:$0xf]
        %v381 = vld [vmem:[%s215 + $0x5c] sm:$0xf]
        %v382 = vld [vmem:[%s215 + $0x60] sm:$0xf]
        %v383 = vld [vmem:[%s215 + $0x64] sm:$0xf]
        %v384 = vld [vmem:[%s215 + $0x68] sm:$0xf]
        %v385 = vld [vmem:[%s215 + $0x6c] sm:$0xf]
        %v386 = vld [vmem:[%s215 + $0x70] sm:$0xf]
        %v387 = vld [vmem:[%s215 + $0x74] sm:$0xf]
        %v388 = vld [vmem:[%s215 + $0x78] sm:$0xf]
        %v389 = vld [vmem:[%s215 + $0x7c] sm:$0xf]
        %v390 = vunpack.c.l.bf16 %v358
        %v391 = vunpack.c.l.bf16 %v359
        %v392 = vunpack.c.l.bf16 %v360
        %v393 = vunpack.c.l.bf16 %v361
        %v394 = vunpack.c.l.bf16 %v362
        %v395 = vunpack.c.l.bf16 %v363
        %v396 = vunpack.c.l.bf16 %v364
        %v397 = vunpack.c.l.bf16 %v365
        %v398 = vunpack.c.l.bf16 %v366
        %v399 = vunpack.c.l.bf16 %v367
        %v400 = vunpack.c.l.bf16 %v368
        %v401 = vunpack.c.l.bf16 %v369
        %v402 = vunpack.c.l.bf16 %v370
        %v403 = vunpack.c.l.bf16 %v371
        %v404 = vunpack.c.l.bf16 %v372
        %v405 = vunpack.c.l.bf16 %v373
        %v406 = vunpack.c.l.bf16 %v374
        %v407 = vunpack.c.l.bf16 %v375
        %v408 = vunpack.c.l.bf16 %v376
        %v409 = vunpack.c.l.bf16 %v377
        %v410 = vunpack.c.l.bf16 %v378
        %v411 = vunpack.c.l.bf16 %v379
        %v412 = vunpack.c.l.bf16 %v380
        %v413 = vunpack.c.l.bf16 %v381
        %v414 = vunpack.c.l.bf16 %v382
        %v415 = vunpack.c.l.bf16 %v383
        %v416 = vunpack.c.l.bf16 %v384
        %v417 = vunpack.c.l.bf16 %v385
        %v418 = vunpack.c.l.bf16 %v386
        %v419 = vunpack.c.l.bf16 %v387
        %v420 = vunpack.c.l.bf16 %v388
        %v421 = vunpack.c.l.bf16 %v389
        %v422 = vadd.f32 %v326, %v390
        %v423 = vadd.f32 %v327, %v391
        %v424 = vadd.f32 %v328, %v392
        %v425 = vadd.f32 %v329, %v393
        %v426 = vadd.f32 %v330, %v394
        %v427 = vadd.f32 %v331, %v395
        %v428 = vadd.f32 %v332, %v396
        %v429 = vadd.f32 %v333, %v397
        %v430 = vadd.f32 %v334, %v398
        %v431 = vadd.f32 %v335, %v399
        %v432 = vadd.f32 %v336, %v400
        %v433 = vadd.f32 %v337, %v401
        %v434 = vadd.f32 %v338, %v402
        %v435 = vadd.f32 %v339, %v403
        %v436 = vadd.f32 %v340, %v404
        %v437 = vadd.f32 %v341, %v405
        %v438 = vadd.f32 %v342, %v406
        %v439 = vadd.f32 %v343, %v407
        %v440 = vadd.f32 %v344, %v408
        %v441 = vadd.f32 %v345, %v409
        %v442 = vadd.f32 %v346, %v410
        %v443 = vadd.f32 %v347, %v411
        %v444 = vadd.f32 %v348, %v412
        %v445 = vadd.f32 %v349, %v413
        %v446 = vadd.f32 %v350, %v414
        %v447 = vadd.f32 %v351, %v415
        %v448 = vadd.f32 %v352, %v416
        %v449 = vadd.f32 %v353, %v417
        %v450 = vadd.f32 %v354, %v418
        %v451 = vadd.f32 %v355, %v419
        %v452 = vadd.f32 %v356, %v420
        %v453 = vadd.f32 %v357, %v421
        %v454 = vmax.f32 %v422, 0.0
        %v455 = vmax.f32 %v423, 0.0
        %v456 = vmax.f32 %v424, 0.0
        %v457 = vmax.f32 %v425, 0.0
        %v458 = vmax.f32 %v426, 0.0
        %v459 = vmax.f32 %v427, 0.0
        %v460 = vmax.f32 %v428, 0.0
        %v461 = vmax.f32 %v429, 0.0
        %v462 = vmax.f32 %v430, 0.0
        %v463 = vmax.f32 %v431, 0.0
        %v464 = vmax.f32 %v432, 0.0
        %v465 = vmax.f32 %v433, 0.0
        %v466 = vmax.f32 %v434, 0.0
        %v467 = vmax.f32 %v435, 0.0
        %v468 = vmax.f32 %v436, 0.0
        %v469 = vmax.f32 %v437, 0.0
        %v470 = vmax.f32 %v438, 0.0
        %v471 = vmax.f32 %v439, 0.0
        %v472 = vmax.f32 %v440, 0.0
        %v473 = vmax.f32 %v441, 0.0
        %v474 = vmax.f32 %v442, 0.0
        %v475 = vmax.f32 %v443, 0.0
        %v476 = vmax.f32 %v444, 0.0
        %v477 = vmax.f32 %v445, 0.0
        %v478 = vmax.f32 %v446, 0.0
        %v479 = vmax.f32 %v447, 0.0
        %v480 = vmax.f32 %v448, 0.0
        %v481 = vmax.f32 %v449, 0.0
        %v482 = vmax.f32 %v450, 0.0
        %v483 = vmax.f32 %v451, 0.0
        %v484 = vmax.f32 %v452, 0.0
        %v485 = vmax.f32 %v453, 0.0
        %vm486 = vcmask 261120
        %487 = vst.msk [vmem:[%s205] sm:$0xff] %vm486, %v454
        %488 = vst.msk [vmem:[%s205 + $0x8] sm:$0xff] %vm486, %v455
        %489 = vst.msk [vmem:[%s205 + $0x10] sm:$0xff] %vm486, %v456
        %490 = vst.msk [vmem:[%s205 + $0x18] sm:$0xff] %vm486, %v457
        %491 = vst.msk [vmem:[%s205 + $0x20] sm:$0xff] %vm486, %v458
        %492 = vst.msk [vmem:[%s205 + $0x28] sm:$0xff] %vm486, %v459
        %493 = vst.msk [vmem:[%s205 + $0x30] sm:$0xff] %vm486, %v460
        %494 = vst.msk [vmem:[%s205 + $0x38] sm:$0xff] %vm486, %v461
        %495 = vst.msk [vmem:[%s205 + $0x40] sm:$0xff] %vm486, %v462
        %496 = vst.msk [vmem:[%s205 + $0x48] sm:$0xff] %vm486, %v463
        %497 = vst.msk [vmem:[%s205 + $0x50] sm:$0xff] %vm486, %v464
        %498 = vst.msk [vmem:[%s205 + $0x58] sm:$0xff] %vm486, %v465
        %499 = vst.msk [vmem:[%s205 + $0x60] sm:$0xff] %vm486, %v466
        %500 = vst.msk [vmem:[%s205 + $0x68] sm:$0xff] %vm486, %v467
        %501 = vst.msk [vmem:[%s205 + $0x70] sm:$0xff] %vm486, %v468
        %502 = vst.msk [vmem:[%s205 + $0x78] sm:$0xff] %vm486, %v469
        %503 = vst.msk [vmem:[%s205 + $0x80] sm:$0xff] %vm486, %v470
        %504 = vst.msk [vmem:[%s205 + $0x88] sm:$0xff] %vm486, %v471
        %505 = vst.msk [vmem:[%s205 + $0x90] sm:$0xff] %vm486, %v472
        %506 = vst.msk [vmem:[%s205 + $0x98] sm:$0xff] %vm486, %v473
        %507 = vst.msk [vmem:[%s205 + $0xa0] sm:$0xff] %vm486, %v474
        %508 = vst.msk [vmem:[%s205 + $0xa8] sm:$0xff] %vm486, %v475
        %509 = vst.msk [vmem:[%s205 + $0xb0] sm:$0xff] %vm486, %v476
        %510 = vst.msk [vmem:[%s205 + $0xb8] sm:$0xff] %vm486, %v477
        %511 = vst.msk [vmem:[%s205 + $0xc0] sm:$0xff] %vm486, %v478
        %512 = vst.msk [vmem:[%s205 + $0xc8] sm:$0xff] %vm486, %v479
        %513 = vst.msk [vmem:[%s205 + $0xd0] sm:$0xff] %vm486, %v480
        %514 = vst.msk [vmem:[%s205 + $0xd8] sm:$0xff] %vm486, %v481
        %515 = vst.msk [vmem:[%s205 + $0xe0] sm:$0xff] %vm486, %v482
        %516 = vst.msk [vmem:[%s205 + $0xe8] sm:$0xff] %vm486, %v483
        %517 = vst.msk [vmem:[%s205 + $0xf0] sm:$0xff] %vm486, %v484
        %518 = vst.msk [vmem:[%s205 + $0xf8] sm:$0xff] %vm486, %v485
        %s519 = sand.u32 %s120, 1
        %s520 = scalar_lea.sflag [#allocation3], %s519
        %s521 = sand.u32 %s120, 1
        %s522 = smul.addr %s521, 256
        %s523 = scalar_lea.vmem [#allocation2], %s522
        // Predicated region
        $region37: #{bottleneck_forward.7} parent=35 // pred_check
          %p524 = pneg %p130
        $region38: #{bottleneck_forward.7} parent=35 // pred_check_branch
          %526 = sbr.rel (%p524) target = $region40
        $region39: #{bottleneck_forward.7} parent=35 // pred_region
          %s528 = ssub.s32 4096, 4096
          %529 = vsyncadd %s520, %s528
          %s530 = smul.addr %s18, 32
          %s531 = smul.addr %s530, 128
          %s532 = scalar_lea.hbm %s4, %s531
          %s533 = sshll.u32 %s523, 4
          %s534 = int_to_ptr.vmem [resolvable:$true] %s533
          %539 = dma.vmem_to_hbm [thread:$0]  %s534, 4096, %s532, %s520, 128, 128, 8
        $region40: #{bottleneck_forward.7} parent=35 // pred_fallthru
          _
      $region36: #{bottleneck_forward.7} parent=5 // pred_fallthru
        _
      %p540 = scmp.le.s32.totalorder 2, %s13
      // Predicated region
      $region41: #{bottleneck_forward.7} parent=5 // pred_check
        %p541 = pneg %p540
      $region42: #{bottleneck_forward.7} parent=5 // pred_check_branch
        %543 = sbr.rel (%p541) target = $region44
      $region43: #{bottleneck_forward.7} parent=5 // pred_region
        %s544 = ssub.s32 %s13, 2
        // Predicated region
        $region45: #{bottleneck_forward.7} parent=43 // pred_check
          %p545 = pneg %p136
        $region46: #{bottleneck_forward.7} parent=43 // pred_check_branch
          %547 = sbr.rel (%p545) target = $region48
        $region47: #{bottleneck_forward.7} parent=43 // pred_region
          %s548 = sand.u32 %s121, 1
          %s549 = scalar_lea.sflag [#allocation3], %s548
          %s550 = sand.u32 %s121, 1
          %s551 = smul.addr %s550, 256
          %s552 = scalar_lea.vmem [#allocation2], %s551
          %553 = dma.done %s549, 4096
        $region48: #{bottleneck_forward.7} parent=43 // pred_fallthru
          _
      $region44: #{bottleneck_forward.7} parent=5 // pred_fallthru
        _
    $region6: #{bottleneck_forward.7} parent=1 // loop_footer
      %s17 = sadd.s32 1, %s13
    $region7: #{bottleneck_forward.7} parent=1 // loop_footer_branch
      %12 = sbr.rel target = $region3
    $region8: #{bottleneck_forward.7} parent=1 // loop_exit
      _
    %554 = vsyncpa [#allocation3], 1
    %s555 = scalar_lea.sflag [#allocation3], 1
    %556 = vsyncpa %s555, 1

// kernel: bottleneck_forward.4
$region0: #{bottleneck_forward.4}
  #allocation0 [shape = 'u32[]', space=smem, size = 0x4, offset = 0x4, fixed_abs, tag = 'smem constant byte address 0x4 - core index']
  #allocation1 [shape = 'u32[144,128]{1,0:T(1,128)}', space=vmem, size = 0x12000, scoped, tag = 'internal scratch']
  %s0 = inlined_call_operand.vmem [shape: bf16[2,16,16,32], index: 0, kind: input, shape index: {}]
  %s1 = inlined_call_operand.vmem [shape: bf16[32,8], index: 1, kind: input, shape index: {}]
  %s2 = inlined_call_operand.vmem [shape: bf16[2,16,16,8], index: 2, kind: output, shape index: {0}]
  %s3 = inlined_call_operand.vmem [shape: f32[2,1,8], index: 3, kind: output, shape index: {1}]
  %s4 = inlined_call_operand.vmem [shape: f32[2,1,8], index: 4, kind: output, shape index: {2}]
  %5 = xla_tuple %s2, %s3, %s4
  %s6 = sld [smem:[#allocation0]]
  $region57: #{bottleneck_forward.4} parent=0
    _
  %s8 = ssub.s32 1, %s6
  %s9 = scalar_select 0, %s8, %s6
  loop: start=0, step=1, limit=4
  $region2: #{bottleneck_forward.4} parent=0 // loop_pre_header
    _
  $region3: #{bottleneck_forward.4} parent=0 // loop_header
    %s11 = sphi 0, %s15
    %p12 = scmp.ge.s32.totalorder %s11, 4
    %s21 = sphi 0, %s23
    %s24 = sphi 0, %s21
    %s25 = sphi 0, %s24
    %s41 = sphi 0, %s25
    %s45 = sphi 0, %s45
    %s47 = sphi 0, %s45
    %s48 = sphi 0, %s47
    %s62 = sphi 0, %s48
    %s68 = sphi 0, %s70
    %s71 = sphi 0, %s68
    %s72 = sphi 0, %s71
    %s88 = sphi 0, %s72
    %s94 = sphi 0, %s96
    %s97 = sphi 0, %s94
    %s98 = sphi 0, %s97
    %s114 = sphi 0, %s98
    %s120 = sphi 0, %s122
    %s123 = sphi 0, %s120
    %s124 = sphi 0, %s123
    %s140 = sphi 0, %s124
  $region4: #{bottleneck_forward.4} parent=0 // loop_header_branch
    %14 = sbr.rel (%p12) target = $region8
  $region5: #{bottleneck_forward.4} parent=0 // loop_body
    %s16 = ssub.s32 %s11, 1
    %s17 = ssub.s32 %s11, 2
    %s18 = sadd.s32 %s11, 1
    %s19 = ssub.s32 %s11, %s18
    %p20 = scmp.eq.s32.totalorder %s19, 0
    %s22 = sadd.s32 %s21, 1
    %s23 = scalar_select %p20, %s21, %s22
    %p26 = pneg %p20
    %p27 = scmp.eq.s32.totalorder %s11, 1
    %p28 = por %p26, %p27
    %p29 = scmp.ne.s32.totalorder %s21, %s24
    %p30 = scmp.eq.s32.totalorder %s11, 0
    %p31 = por %p29, %p30
    %p32 = scmp.ne.s32.totalorder %s21, %s24
    %p33 = scmp.eq.s32.totalorder %s16, 1
    %p34 = por %p32, %p33
    %p35 = scmp.ne.s32.totalorder %s24, %s25
    %p36 = scmp.eq.s32.totalorder %s16, 0
    %p37 = por %p35, %p36
    %p38 = scmp.ne.s32.totalorder %s24, %s25
    %p39 = scmp.eq.s32.totalorder %s17, 1
    %p40 = por %p38, %p39
    %p42 = scmp.ne.s32.totalorder %s25, %s41
    %p43 = scmp.eq.s32.totalorder %s17, 0
    %p44 = por %p42, %p43
    %s46 = sadd.s32 %s45, 1
    %p49 = scmp.eq.s32.totalorder %s11, 1
    %p50 = scmp.ne.s32.totalorder %s45, %s47
    %p51 = scmp.eq.s32.totalorder %s11, 0
    %p52 = por %p50, %p51
    %p53 = scmp.ne.s32.totalorder %s45, %s47
    %p54 = scmp.eq.s32.totalorder %s16, 1
    %p55 = por %p53, %p54
    %p56 = scmp.ne.s32.totalorder %s47, %s48
    %p57 = scmp.eq.s32.totalorder %s16, 0
    %p58 = por %p56, %p57
    %p59 = scmp.ne.s32.totalorder %s47, %s48
    %p60 = scmp.eq.s32.totalorder %s17, 1
    %p61 = por %p59, %p60
    %p63 = scmp.ne.s32.totalorder %s48, %s62
    %p64 = scmp.eq.s32.totalorder %s17, 0
    %p65 = por %p63, %p64
    %s66 = ssub.s32 %s11, %s18
    %p67 = scmp.eq.s32.totalorder %s66, 0
    %s69 = sadd.s32 %s68, 1
    %s70 = scalar_select %p67, %s68, %s69
    %p73 = pneg %p67
    %p74 = scmp.eq.s32.totalorder %s11, 1
    %p75 = por %p73, %p74
    %p76 = scmp.ne.s32.totalorder %s68, %s71
    %p77 = scmp.eq.s32.totalorder %s11, 0
    %p78 = por %p76, %p77
    %p79 = scmp.ne.s32.totalorder %s68, %s71
    %p80 = scmp.eq.s32.totalorder %s16, 1
    %p81 = por %p79, %p80
    %p82 = scmp.ne.s32.totalorder %s71, %s72
    %p83 = scmp.eq.s32.totalorder %s16, 0
    %p84 = por %p82, %p83
    %p85 = scmp.ne.s32.totalorder %s71, %s72
    %p86 = scmp.eq.s32.totalorder %s17, 1
    %p87 = por %p85, %p86
    %p89 = scmp.ne.s32.totalorder %s72, %s88
    %p90 = scmp.eq.s32.totalorder %s17, 0
    %p91 = por %p89, %p90
    %s92 = ssub.s32 %s11, %s18
    %p93 = scmp.eq.s32.totalorder %s92, 0
    %s95 = sadd.s32 %s94, 1
    %s96 = scalar_select %p93, %s94, %s95
    %p99 = pneg %p93
    %p100 = scmp.eq.s32.totalorder %s11, 1
    %p101 = por %p99, %p100
    %p102 = scmp.ne.s32.totalorder %s94, %s97
    %p103 = scmp.eq.s32.totalorder %s11, 0
    %p104 = por %p102, %p103
    %p105 = scmp.ne.s32.totalorder %s94, %s97
    %p106 = scmp.eq.s32.totalorder %s16, 1
    %p107 = por %p105, %p106
    %p108 = scmp.ne.s32.totalorder %s97, %s98
    %p109 = scmp.eq.s32.totalorder %s16, 0
    %p110 = por %p108, %p109
    %p111 = scmp.ne.s32.totalorder %s97, %s98
    %p112 = scmp.eq.s32.totalorder %s17, 1
    %p113 = por %p111, %p112
    %p115 = scmp.ne.s32.totalorder %s98, %s114
    %p116 = scmp.eq.s32.totalorder %s17, 0
    %p117 = por %p115, %p116
    %s118 = ssub.s32 %s11, %s18
    %p119 = scmp.eq.s32.totalorder %s118, 0
    %s121 = sadd.s32 %s120, 1
    %s122 = scalar_select %p119, %s120, %s121
    %p125 = pneg %p119
    %p126 = scmp.eq.s32.totalorder %s11, 1
    %p127 = por %p125, %p126
    %p128 = scmp.ne.s32.totalorder %s120, %s123
    %p129 = scmp.eq.s32.totalorder %s11, 0
    %p130 = por %p128, %p129
    %p131 = scmp.ne.s32.totalorder %s120, %s123
    %p132 = scmp.eq.s32.totalorder %s16, 1
    %p133 = por %p131, %p132
    %p134 = scmp.ne.s32.totalorder %s123, %s124
    %p135 = scmp.eq.s32.totalorder %s16, 0
    %p136 = por %p134, %p135
    %p137 = scmp.ne.s32.totalorder %s123, %s124
    %p138 = scmp.eq.s32.totalorder %s17, 1
    %p139 = por %p137, %p138
    %p141 = scmp.ne.s32.totalorder %s124, %s140
    %p142 = scmp.eq.s32.totalorder %s17, 0
    %p143 = por %p141, %p142
    %p144 = scmp.le.s32.totalorder 1, %s11
    %p145 = scmp.lt.s32.totalorder %s11, 3
    %p146 = pnand %p144, %p145
    %p147 = pneg %p146
    // Predicated region
    $region9: #{bottleneck_forward.4} parent=5 // pred_check
      _
    $region10: #{bottleneck_forward.4} parent=5 // pred_check_branch
      %149 = sbr.rel (%p146) target = $region12
    $region11: #{bottleneck_forward.4} parent=5 // pred_region
      %s150 = ssub.s32 %s11, 1
      // Predicated region
      $region13: #{bottleneck_forward.4} parent=11 // pred_check
        %p151 = pneg %p58
      $region14: #{bottleneck_forward.4} parent=11 // pred_check_branch
        %153 = sbr.rel (%p151) target = $region16
      $region15: #{bottleneck_forward.4} parent=11 // pred_region
        _
      $region16: #{bottleneck_forward.4} parent=11 // pred_fallthru
        _
    $region12: #{bottleneck_forward.4} parent=5 // pred_fallthru
      _
    %p154 = scmp.lt.s32.totalorder %s11, 2
    // Predicated region
    $region17: #{bottleneck_forward.4} parent=5 // pred_check
      %p155 = pneg %p154
    $region18: #{bottleneck_forward.4} parent=5 // pred_check_branch
      %157 = sbr.rel (%p155) target = $region20
    $region19: #{bottleneck_forward.4} parent=5 // pred_region
      // Predicated region
      $region21: #{bottleneck_forward.4} parent=19 // pred_check
        %p158 = pneg %p31
      $region22: #{bottleneck_forward.4} parent=19 // pred_check_branch
        %160 = sbr.rel (%p158) target = $region24
      $region23: #{bottleneck_forward.4} parent=19 // pred_region
        %p161 = scmp.lt.s32.totalorder %s11, 1
        %s162 = scalar_select %p161, %s11, 1
        %s163 = smul.addr %s162, 32
        %s164 = smul.addr %s163, 4
        %s165 = scalar_lea.vmem %s0, %s164
      $region24: #{bottleneck_forward.4} parent=19 // pred_fallthru
        _
    $region20: #{bottleneck_forward.4} parent=5 // pred_fallthru
      _
    %p166 = scmp.le.s32.totalorder 1, %s11
    %p167 = scmp.lt.s32.totalorder %s11, 3
    %p168 = pnand %p166, %p167
    %p169 = pneg %p168
    // Predicated region
    $region25: #{bottleneck_forward.4} parent=5 // pred_check
      _
    $region26: #{bottleneck_forward.4} parent=5 // pred_check_branch
      %171 = sbr.rel (%p168) target = $region28
    $region27: #{bottleneck_forward.4} parent=5 // pred_region
      %s172 = ssub.s32 %s11, 1
      %p173 = scmp.lt.s32.totalorder %s16, 1
      %s174 = scalar_select %p173, %s16, 1
      %s175 = smul.addr %s174, 32
      %s176 = smul.addr %s175, 4
      %s177 = scalar_lea.vmem %s0, %s176
      %p178 = pneg %p37
      %p179 = pneg %p34
      %p180 = pneg %p58
      %p181 = pneg %p55
      %p182 = pneg %p84
      %p183 = pneg %p81
      %p184 = scmp.lt.s32.totalorder %s16, 1
      %s185 = scalar_select %p184, %s16, 1
      %s186 = smul.addr %s185, 32
      %s187 = smul.addr %s186, 4
      %s188 = scalar_lea.vmem %s2, %s187
      %p189 = pneg %p110
      %p190 = pneg %p107
      %p191 = scmp.lt.s32.totalorder %s16, 1
      %s192 = scalar_select %p191, %s16, 1
      %s193 = scalar_lea.vmem %s3, %s192
      %p194 = pneg %p136
      %p195 = pneg %p133
      %p196 = scmp.lt.s32.totalorder %s16, 1
      %s197 = scalar_select %p196, %s16, 1
      %s198 = scalar_lea.vmem %s4, %s197
      %p199 = scmp.lt.s32.totalorder %s16, 1
      %s200 = scalar_select %p199, %s16, 1
      %s201 = smul.addr %s200, 32
      %s202 = smul.addr %s201, 4
      %s203 = scalar_lea.vmem %s0, %s202
      %p204 = scmp.lt.s32.totalorder %s16, 1
      %s205 = scalar_select %p204, %s16, 1
      %s206 = smul.addr %s205, 32
      %s207 = smul.addr %s206, 4
      %s208 = scalar_lea.vmem %s2, %s207
      %p209 = scmp.lt.s32.totalorder %s16, 1
      %s210 = scalar_select %p209, %s16, 1
      %s211 = scalar_lea.vmem %s3, %s210
      %p212 = scmp.lt.s32.totalorder %s16, 1
      %s213 = scalar_select %p212, %s16, 1
      %s214 = scalar_lea.vmem %s4, %s213
      %v216 = vld [vmem:[%s203] sm:$0xf]
      %v217 = vld [vmem:[%s203 + $0x4] sm:$0xf]
      %v218 = vld [vmem:[%s203 + $0x8] sm:$0xf]
      %v219 = vld [vmem:[%s203 + $0xc] sm:$0xf]
      %v220 = vld [vmem:[%s203 + $0x10] sm:$0xf]
      %v221 = vld [vmem:[%s203 + $0x14] sm:$0xf]
      %v222 = vld [vmem:[%s203 + $0x18] sm:$0xf]
      %v223 = vld [vmem:[%s203 + $0x1c] sm:$0xf]
      %v224 = vld [vmem:[%s203 + $0x20] sm:$0xf]
      %v225 = vld [vmem:[%s203 + $0x24] sm:$0xf]
      %v226 = vld [vmem:[%s203 + $0x28] sm:$0xf]
      %v227 = vld [vmem:[%s203 + $0x2c] sm:$0xf]
      %v228 = vld [vmem:[%s203 + $0x30] sm:$0xf]
      %v229 = vld [vmem:[%s203 + $0x34] sm:$0xf]
      %v230 = vld [vmem:[%s203 + $0x38] sm:$0xf]
      %v231 = vld [vmem:[%s203 + $0x3c] sm:$0xf]
      %v232 = vld [vmem:[%s203 + $0x40] sm:$0xf]
      %v233 = vld [vmem:[%s203 + $0x44] sm:$0xf]
      %v234 = vld [vmem:[%s203 + $0x48] sm:$0xf]
      %v235 = vld [vmem:[%s203 + $0x4c] sm:$0xf]
      %v236 = vld [vmem:[%s203 + $0x50] sm:$0xf]
      %v237 = vld [vmem:[%s203 + $0x54] sm:$0xf]
      %v238 = vld [vmem:[%s203 + $0x58] sm:$0xf]
      %v239 = vld [vmem:[%s203 + $0x5c] sm:$0xf]
      %v240 = vld [vmem:[%s203 + $0x60] sm:$0xf]
      %v241 = vld [vmem:[%s203 + $0x64] sm:$0xf]
      %v242 = vld [vmem:[%s203 + $0x68] sm:$0xf]
      %v243 = vld [vmem:[%s203 + $0x6c] sm:$0xf]
      %v244 = vld [vmem:[%s203 + $0x70] sm:$0xf]
      %v245 = vld [vmem:[%s203 + $0x74] sm:$0xf]
      %v246 = vld [vmem:[%s203 + $0x78] sm:$0xf]
      %v247 = vld [vmem:[%s203 + $0x7c] sm:$0xf]
      %v248 = vld [vmem:[%s1] sm:$0xf]
      %v249 = vld [vmem:[%s1 + $0x4] sm:$0xf]
      %v250 = vld [vmem:[%s1 + $0x8] sm:$0xf]
      %v251 = vld [vmem:[%s1 + $0xc] sm:$0xf]
      %v284 = vunpack.c.l.b16 %v216
      %v285 = vunpack.c.l.b16 %v217
      %v286 = vunpack.c.l.b16 %v218
      %v287 = vunpack.c.l.b16 %v219
      %v288 = vunpack.c.l.b16 %v220
      %v289 = vunpack.c.l.b16 %v221
      %v290 = vunpack.c.l.b16 %v222
      %v291 = vunpack.c.l.b16 %v223
      %v292 = vunpack.c.l.b16 %v224
      %v293 = vunpack.c.l.b16 %v225
      %v294 = vunpack.c.l.b16 %v226
      %v295 = vunpack.c.l.b16 %v227
      %v296 = vunpack.c.l.b16 %v228
      %v297 = vunpack.c.l.b16 %v229
      %v298 = vunpack.c.l.b16 %v230
      %v299 = vunpack.c.l.b16 %v231
      %v300 = vunpack.c.l.b16 %v232
      %v301 = vunpack.c.l.b16 %v233
      %v302 = vunpack.c.l.b16 %v234
      %v303 = vunpack.c.l.b16 %v235
      %v304 = vunpack.c.l.b16 %v236
      %v305 = vunpack.c.l.b16 %v237
      %v306 = vunpack.c.l.b16 %v238
      %v307 = vunpack.c.l.b16 %v239
      %v308 = vunpack.c.l.b16 %v240
      %v309 = vunpack.c.l.b16 %v241
      %v310 = vunpack.c.l.b16 %v242
      %v311 = vunpack.c.l.b16 %v243
      %v312 = vunpack.c.l.b16 %v244
      %v313 = vunpack.c.l.b16 %v245
      %v314 = vunpack.c.l.b16 %v246
      %v315 = vunpack.c.l.b16 %v247
      %v316 = vpack.c.b16 %v285, %v284
      %v317 = vpack.c.b16 %v287, %v286
      %v318 = vpack.c.b16 %v289, %v288
      %v319 = vpack.c.b16 %v291, %v290
      %v320 = vpack.c.b16 %v293, %v292
      %v321 = vpack.c.b16 %v295, %v294
      %v322 = vpack.c.b16 %v297, %v296
      %v323 = vpack.c.b16 %v299, %v298
      %v324 = vpack.c.b16 %v301, %v300
      %v325 = vpack.c.b16 %v303, %v302
      %v326 = vpack.c.b16 %v305, %v304
      %v327 = vpack.c.b16 %v307, %v306
      %v328 = vpack.c.b16 %v309, %v308
      %v329 = vpack.c.b16 %v311, %v310
      %v330 = vpack.c.b16 %v313, %v312
      %v331 = vpack.c.b16 %v315, %v314
      %v336 = vunpack.c.l.b16 %v248
      %v337 = vunpack.c.l.b16 %v249
      %v338 = vunpack.c.l.b16 %v250
      %v339 = vunpack.c.l.b16 %v251
      %v340 = vpack.c.b16 %v337, %v336
      %v341 = vpack.c.b16 %v339, %v338
      %vm344 = vcmask 261120
      %v346 = vsel %vm344, %v316, 0
      %v349 = vsel %vm344, %v317, 0
      %v352 = vsel %vm344, %v318, 0
      %v355 = vsel %vm344, %v319, 0
      %v358 = vsel %vm344, %v320, 0
      %v361 = vsel %vm344, %v321, 0
      %v364 = vsel %vm344, %v322, 0
      %v367 = vsel %vm344, %v323, 0
      %v370 = vsel %vm344, %v324, 0
      %v373 = vsel %vm344, %v325, 0
      %v376 = vsel %vm344, %v326, 0
      %v379 = vsel %vm344, %v327, 0
      %v382 = vsel %vm344, %v328, 0
      %v385 = vsel %vm344, %v329, 0
      %v388 = vsel %vm344, %v330, 0
      %v391 = vsel %vm344, %v331, 0
      %393 = vmatprep.subr.bf16.mxu0 0
      %394 = vmatpush1.bf16.msra.mxu0 %v340
      %395 = vmatprep.subr.bf16.mxu0 0
      %396 = vmatpush1.bf16.msra.mxu0 %v341
      %397 = vmatprep.subr.bf16.mxu0 0
      %398 = vmatpush1.bf16.msra.mxu0 0
      %399 = vmatprep.subr.bf16.mxu0 0
      %400 = vmatpush1.bf16.msra.mxu0 0
      %401 = vmatprep.subr.bf16.mxu0 0
      %402 = vmatpush1.bf16.msra.mxu0 0
      %403 = vmatprep.subr.bf16.mxu0 0
      %404 = vmatpush1.bf16.msra.mxu0 0
      %405 = vmatprep.subr.bf16.mxu0 0
      %406 = vmatpush1.bf16.msra.mxu0 0
      %407 = vmatprep.subr.bf16.mxu0 0
      %408 = vmatpush1.bf16.msra.mxu0 0
      %409 = vmatprep.subr.bf16.mxu0 0
      %410 = vmatpush1.bf16.msra.mxu0 0
      %411 = vmatprep.subr.bf16.mxu0 0
      %412 = vmatpush1.bf16.msra.mxu0 0
      %413 = vmatprep.subr.bf16.mxu0 0
      %414 = vmatpush1.bf16.msra.mxu0 0
      %415 = vmatprep.subr.bf16.mxu0 0
      %416 = vmatpush1.bf16.msra.mxu0 0
      %417 = vmatprep.subr.bf16.mxu0 0
      %418 = vmatpush1.bf16.msra.mxu0 0
      %419 = vmatprep.subr.bf16.mxu0 0
      %420 = vmatpush1.bf16.msra.mxu0 0
      %421 = vmatprep.subr.bf16.mxu0 0
      %422 = vmatpush1.bf16.msra.mxu0 0
      %423 = vmatprep.subr.bf16.mxu0 0
      %424 = vmatpush1.bf16.msra.mxu0 0
      %425 = vmatprep.mubr.bf16.mxu0 0
      %426 = vmatmul.mubr.bf16.gmra.mrb[0].mxu0 %v346
      %v427 = vpop.f32.mrb[0].mxu0
      %v428 = vadd.f32 0.0, %v427
      %v429 = vpop.f32.mrb[0].mxu0
      %v430 = vpop.f32.mrb[0].mxu0
      %v431 = vadd.f32 0.0, %v430
      %v432 = vpop.f32.mrb[0].mxu0
      %433 = vmatprep.mubr.bf16.mxu0 0
      %434 = vmatmul.mubr.bf16.gmra.mrb[0].mxu0 %v349
      %v435 = vpop.f32.mrb[0].mxu0
      %v436 = vadd.f32 0.0, %v435
      %v437 = vpop.f32.mrb[0].mxu0
      %v438 = vpop.f32.mrb[0].mxu0
      %v439 = vadd.f32 0.0, %v438
      %v440 = vpop.f32.mrb[0].mxu0
      %441 = vmatprep.mubr.bf16.mxu0 0
      %442 = vmatmul.mubr.bf16.gmra.mrb[0].mxu0 %v352
      %v443 = vpop.f32.mrb[0].mxu0
      %v444 = vadd.f32 0.0, %v443
      %v445 = vpop.f32.mrb[0].mxu0
      %v446 = vpop.f32.mrb[0].mxu0
      %v447 = vadd.f32 0.0, %v446
      %v448 = vpop.f32.mrb[0].mxu0
      %449 = vmatprep.mubr.bf16.mxu0 0
      %450 = vmatmul.mubr.bf16.gmra.mrb[0].mxu0 %v355
      %v451 = vpop.f32.mrb[0].mxu0
      %v452 = vadd.f32 0.0, %v451
      %v453 = vpop.f32.mrb[0].mxu0
      %v454 = vpop.f32.mrb[0].mxu0
      %v455 = vadd.f32 0.0, %v454
      %v456 = vpop.f32.mrb[0].mxu0
      %457 = vmatprep.mubr.bf16.mxu0 0
      %458 = vmatmul.mubr.bf16.gmra.mrb[0].mxu0 %v358
      %v459 = vpop.f32.mrb[0].mxu0
      %v460 = vadd.f32 0.0, %v459
      %v461 = vpop.f32.mrb[0].mxu0
      %v462 = vpop.f32.mrb[0].mxu0
      %v463 = vadd.f32 0.0, %v462
      %v464 = vpop.f32.mrb[0].mxu0
      %465 = vmatprep.mubr.bf16.mxu0 0
      %466 = vmatmul.mubr.bf16.gmra.mrb[0].mxu0 %v361
      %v467 = vpop.f32.mrb[0].mxu0
      %v468 = vadd.f32 0.0, %v467
      %v469 = vpop.f32.mrb[0].mxu0
      %v470 = vpop.f32.mrb[0].mxu0
      %v471 = vadd.f32 0.0, %v470
      %v472 = vpop.f32.mrb[0].mxu0
      %473 = vmatprep.mubr.bf16.mxu0 0
      %474 = vmatmul.mubr.bf16.gmra.mrb[0].mxu0 %v364
      %v475 = vpop.f32.mrb[0].mxu0
      %v476 = vadd.f32 0.0, %v475
      %v477 = vpop.f32.mrb[0].mxu0
      %v478 = vpop.f32.mrb[0].mxu0
      %v479 = vadd.f32 0.0, %v478
      %v480 = vpop.f32.mrb[0].mxu0
      %481 = vmatprep.mubr.bf16.mxu0 0
      %482 = vmatmul.mubr.bf16.gmra.mrb[0].mxu0 %v367
      %v483 = vpop.f32.mrb[0].mxu0
      %v484 = vadd.f32 0.0, %v483
      %v485 = vpop.f32.mrb[0].mxu0
      %v486 = vpop.f32.mrb[0].mxu0
      %v487 = vadd.f32 0.0, %v486
      %v488 = vpop.f32.mrb[0].mxu0
      %489 = vmatprep.mubr.bf16.mxu0 0
      %490 = vmatmul.mubr.bf16.gmra.mrb[0].mxu0 %v370
      %v491 = vpop.f32.mrb[0].mxu0
      %v492 = vadd.f32 0.0, %v491
      %v493 = vpop.f32.mrb[0].mxu0
      %v494 = vpop.f32.mrb[0].mxu0
      %v495 = vadd.f32 0.0, %v494
      %v496 = vpop.f32.mrb[0].mxu0
      %497 = vmatprep.mubr.bf16.mxu0 0
      %498 = vmatmul.mubr.bf16.gmra.mrb[0].mxu0 %v373
      %v499 = vpop.f32.mrb[0].mxu0
      %v500 = vadd.f32 0.0, %v499
      %v501 = vpop.f32.mrb[0].mxu0
      %v502 = vpop.f32.mrb[0].mxu0
      %v503 = vadd.f32 0.0, %v502
      %v504 = vpop.f32.mrb[0].mxu0
      %505 = vmatprep.mubr.bf16.mxu0 0
      %506 = vmatmul.mubr.bf16.gmra.mrb[0].mxu0 %v376
      %v507 = vpop.f32.mrb[0].mxu0
      %v508 = vadd.f32 0.0, %v507
      %v509 = vpop.f32.mrb[0].mxu0
      %v510 = vpop.f32.mrb[0].mxu0
      %v511 = vadd.f32 0.0, %v510
      %v512 = vpop.f32.mrb[0].mxu0
      %513 = vmatprep.mubr.bf16.mxu0 0
      %514 = vmatmul.mubr.bf16.gmra.mrb[0].mxu0 %v379
      %v515 = vpop.f32.mrb[0].mxu0
      %v516 = vadd.f32 0.0, %v515
      %v517 = vpop.f32.mrb[0].mxu0
      %v518 = vpop.f32.mrb[0].mxu0
      %v519 = vadd.f32 0.0, %v518
      %v520 = vpop.f32.mrb[0].mxu0
      %521 = vmatprep.mubr.bf16.mxu0 0
      %522 = vmatmul.mubr.bf16.gmra.mrb[0].mxu0 %v382
      %v523 = vpop.f32.mrb[0].mxu0
      %v524 = vadd.f32 0.0, %v523
      %v525 = vpop.f32.mrb[0].mxu0
      %v526 = vpop.f32.mrb[0].mxu0
      %v527 = vadd.f32 0.0, %v526
      %v528 = vpop.f32.mrb[0].mxu0
      %529 = vmatprep.mubr.bf16.mxu0 0
      %530 = vmatmul.mubr.bf16.gmra.mrb[0].mxu0 %v385
      %v531 = vpop.f32.mrb[0].mxu0
      %v532 = vadd.f32 0.0, %v531
      %v533 = vpop.f32.mrb[0].mxu0
      %v534 = vpop.f32.mrb[0].mxu0
      %v535 = vadd.f32 0.0, %v534
      %v536 = vpop.f32.mrb[0].mxu0
      %537 = vmatprep.mubr.bf16.mxu0 0
      %538 = vmatmul.mubr.bf16.gmra.mrb[0].mxu0 %v388
      %v539 = vpop.f32.mrb[0].mxu0
      %v540 = vadd.f32 0.0, %v539
      %v541 = vpop.f32.mrb[0].mxu0
      %v542 = vpop.f32.mrb[0].mxu0
      %v543 = vadd.f32 0.0, %v542
      %v544 = vpop.f32.mrb[0].mxu0
      %545 = vmatprep.mubr.bf16.mxu0 0
      %546 = vmatmul.mubr.bf16.gmra.mrb[0].mxu0 %v391
      %v547 = vpop.f32.mrb[0].mxu0
      %v548 = vadd.f32 0.0, %v547
      %v549 = vpop.f32.mrb[0].mxu0
      %v550 = vpop.f32.mrb[0].mxu0
      %v551 = vadd.f32 0.0, %v550
      %v552 = vpop.f32.mrb[0].mxu0
      %553 = vdwg.mxu0
      %v554 = vpack.c.bf16 %v431, %v428
      %v555 = vpack.c.bf16 %v439, %v436
      %v556 = vpack.c.bf16 %v447, %v444
      %v557 = vpack.c.bf16 %v455, %v452
      %v558 = vpack.c.bf16 %v463, %v460
      %v559 = vpack.c.bf16 %v471, %v468
      %v560 = vpack.c.bf16 %v479, %v476
      %v561 = vpack.c.bf16 %v487, %v484
      %v562 = vpack.c.bf16 %v495, %v492
      %v563 = vpack.c.bf16 %v503, %v500
      %v564 = vpack.c.bf16 %v511, %v508
      %v565 = vpack.c.bf16 %v519, %v516
      %v566 = vpack.c.bf16 %v527, %v524
      %v567 = vpack.c.bf16 %v535, %v532
      %v568 = vpack.c.bf16 %v543, %v540
      %v569 = vpack.c.bf16 %v551, %v548
      %v586 = vunpack.c.l.b16 %v554
      %v587 = vunpack.c.h.b16 %v554
      %v588 = vunpack.c.l.b16 %v555
      %v589 = vunpack.c.h.b16 %v555
      %v590 = vunpack.c.l.b16 %v556
      %v591 = vunpack.c.h.b16 %v556
      %v592 = vunpack.c.l.b16 %v557
      %v593 = vunpack.c.h.b16 %v557
      %v594 = vunpack.c.l.b16 %v558
      %v595 = vunpack.c.h.b16 %v558
      %v596 = vunpack.c.l.b16 %v559
      %v597 = vunpack.c.h.b16 %v559
      %v598 = vunpack.c.l.b16 %v560
      %v599 = vunpack.c.h.b16 %v560
      %v600 = vunpack.c.l.b16 %v561
      %v601 = vunpack.c.h.b16 %v561
      %v602 = vunpack.c.l.b16 %v562
      %v603 = vunpack.c.h.b16 %v562
      %v604 = vunpack.c.l.b16 %v563
      %v605 = vunpack.c.h.b16 %v563
      %v606 = vunpack.c.l.b16 %v564
      %v607 = vunpack.c.h.b16 %v564
      %v608 = vunpack.c.l.b16 %v565
      %v609 = vunpack.c.h.b16 %v565
      %v610 = vunpack.c.l.b16 %v566
      %v611 = vunpack.c.h.b16 %v566
      %v612 = vunpack.c.l.b16 %v567
      %v613 = vunpack.c.h.b16 %v567
      %v614 = vunpack.c.l.b16 %v568
      %v615 = vunpack.c.h.b16 %v568
      %v616 = vunpack.c.l.b16 %v569
      %v617 = vunpack.c.h.b16 %v569
      %v618 = vpack.c.b16 %v586, %v586
      %v619 = vpack.c.b16 %v587, %v587
      %v620 = vpack.c.b16 %v588, %v588
      %v621 = vpack.c.b16 %v589, %v589
      %v622 = vpack.c.b16 %v590, %v590
      %v623 = vpack.c.b16 %v591, %v591
      %v624 = vpack.c.b16 %v592, %v592
      %v625 = vpack.c.b16 %v593, %v593
      %v626 = vpack.c.b16 %v594, %v594
      %v627 = vpack.c.b16 %v595, %v595
      %v628 = vpack.c.b16 %v596, %v596
      %v629 = vpack.c.b16 %v597, %v597
      %v630 = vpack.c.b16 %v598, %v598
      %v631 = vpack.c.b16 %v599, %v599
      %v632 = vpack.c.b16 %v600, %v600
      %v633 = vpack.c.b16 %v601, %v601
      %v634 = vpack.c.b16 %v602, %v602
      %v635 = vpack.c.b16 %v603, %v603
      %v636 = vpack.c.b16 %v604, %v604
      %v637 = vpack.c.b16 %v605, %v605
      %v638 = vpack.c.b16 %v606, %v606
      %v639 = vpack.c.b16 %v607, %v607
      %v640 = vpack.c.b16 %v608, %v608
      %v641 = vpack.c.b16 %v609, %v609
      %v642 = vpack.c.b16 %v610, %v610
      %v643 = vpack.c.b16 %v611, %v611
      %v644 = vpack.c.b16 %v612, %v612
      %v645 = vpack.c.b16 %v613, %v613
      %v646 = vpack.c.b16 %v614, %v614
      %v647 = vpack.c.b16 %v615, %v615
      %v648 = vpack.c.b16 %v616, %v616
      %v649 = vpack.c.b16 %v617, %v617
      %vm682 = vcmask 60416
      %683 = vst.msk [vmem:[%s208] sm:$0xf] %vm682, %v618
      %684 = vst.msk [vmem:[%s208 + $0x4] sm:$0xf] %vm682, %v619
      %685 = vst.msk [vmem:[%s208 + $0x8] sm:$0xf] %vm682, %v620
      %686 = vst.msk [vmem:[%s208 + $0xc] sm:$0xf] %vm682, %v621
      %687 = vst.msk [vmem:[%s208 + $0x10] sm:$0xf] %vm682, %v622
      %688 = vst.msk [vmem:[%s208 + $0x14] sm:$0xf] %vm682, %v623
      %689 = vst.msk [vmem:[%s208 + $0x18] sm:$0xf] %vm682, %v624
      %690 = vst.msk [vmem:[%s208 + $0x1c] sm:$0xf] %vm682, %v625
      %691 = vst.msk [vmem:[%s208 + $0x20] sm:$0xf] %vm682, %v626
      %692 = vst.msk [vmem:[%s208 + $0x24] sm:$0xf] %vm682, %v627
      %693 = vst.msk [vmem:[%s208 + $0x28] sm:$0xf] %vm682, %v628
      %694 = vst.msk [vmem:[%s208 + $0x2c] sm:$0xf] %vm682, %v629
      %695 = vst.msk [vmem:[%s208 + $0x30] sm:$0xf] %vm682, %v630
      %696 = vst.msk [vmem:[%s208 + $0x34] sm:$0xf] %vm682, %v631
      %697 = vst.msk [vmem:[%s208 + $0x38] sm:$0xf] %vm682, %v632
      %698 = vst.msk [vmem:[%s208 + $0x3c] sm:$0xf] %vm682, %v633
      %699 = vst.msk [vmem:[%s208 + $0x40] sm:$0xf] %vm682, %v634
      %700 = vst.msk [vmem:[%s208 + $0x44] sm:$0xf] %vm682, %v635
      %701 = vst.msk [vmem:[%s208 + $0x48] sm:$0xf] %vm682, %v636
      %702 = vst.msk [vmem:[%s208 + $0x4c] sm:$0xf] %vm682, %v637
      %703 = vst.msk [vmem:[%s208 + $0x50] sm:$0xf] %vm682, %v638
      %704 = vst.msk [vmem:[%s208 + $0x54] sm:$0xf] %vm682, %v639
      %705 = vst.msk [vmem:[%s208 + $0x58] sm:$0xf] %vm682, %v640
      %706 = vst.msk [vmem:[%s208 + $0x5c] sm:$0xf] %vm682, %v641
      %707 = vst.msk [vmem:[%s208 + $0x60] sm:$0xf] %vm682, %v642
      %708 = vst.msk [vmem:[%s208 + $0x64] sm:$0xf] %vm682, %v643
      %709 = vst.msk [vmem:[%s208 + $0x68] sm:$0xf] %vm682, %v644
      %710 = vst.msk [vmem:[%s208 + $0x6c] sm:$0xf] %vm682, %v645
      %711 = vst.msk [vmem:[%s208 + $0x70] sm:$0xf] %vm682, %v646
      %712 = vst.msk [vmem:[%s208 + $0x74] sm:$0xf] %vm682, %v647
      %713 = vst.msk [vmem:[%s208 + $0x78] sm:$0xf] %vm682, %v648
      %714 = vst.msk [vmem:[%s208 + $0x7c] sm:$0xf] %vm682, %v649
      %vm715 = vcmask 64512
      %v716 = vsel %vm715, %v428, 0.0
      %v717 = vsel %vm715, %v431, 0.0
      %v718 = vadd.f32 %v716, %v717
      %v719 = vsel %vm715, %v436, 0.0
      %v720 = vadd.f32 %v718, %v719
      %v721 = vsel %vm715, %v439, 0.0
      %v722 = vadd.f32 %v720, %v721
      %v723 = vsel %vm715, %v444, 0.0
      %v724 = vadd.f32 %v722, %v723
      %v725 = vsel %vm715, %v447, 0.0
      %v726 = vadd.f32 %v724, %v725
      %v727 = vsel %vm715, %v452, 0.0
      %v728 = vadd.f32 %v726, %v727
      %v729 = vsel %vm715, %v455, 0.0
      %v730 = vadd.f32 %v728, %v729
      %v731 = vsel %vm715, %v460, 0.0
      %v732 = vadd.f32 %v730, %v731
      %v733 = vsel %vm715, %v463, 0.0
      %v734 = vadd.f32 %v732, %v733
      %v735 = vsel %vm715, %v468, 0.0
      %v736 = vadd.f32 %v734, %v735
      %v737 = vsel %vm715, %v471, 0.0
      %v738 = vadd.f32 %v736, %v737
      %v739 = vsel %vm715, %v476, 0.0
      %v740 = vadd.f32 %v738, %v739
      %v741 = vsel %vm715, %v479, 0.0
      %v742 = vadd.f32 %v740, %v741
      %v743 = vsel %vm715, %v484, 0.0
      %v744 = vadd.f32 %v742, %v743
      %v745 = vsel %vm715, %v487, 0.0
      %v746 = vadd.f32 %v744, %v745
      %v747 = vsel %vm715, %v492, 0.0
      %v748 = vadd.f32 %v746, %v747
      %v749 = vsel %vm715, %v495, 0.0
      %v750 = vadd.f32 %v748, %v749
      %v751 = vsel %vm715, %v500, 0.0
      %v752 = vadd.f32 %v750, %v751
      %v753 = vsel %vm715, %v503, 0.0
      %v754 = vadd.f32 %v752, %v753
      %v755 = vsel %vm715, %v508, 0.0
      %v756 = vadd.f32 %v754, %v755
      %v757 = vsel %vm715, %v511, 0.0
      %v758 = vadd.f32 %v756, %v757
      %v759 = vsel %vm715, %v516, 0.0
      %v760 = vadd.f32 %v758, %v759
      %v761 = vsel %vm715, %v519, 0.0
      %v762 = vadd.f32 %v760, %v761
      %v763 = vsel %vm715, %v524, 0.0
      %v764 = vadd.f32 %v762, %v763
      %v765 = vsel %vm715, %v527, 0.0
      %v766 = vadd.f32 %v764, %v765
      %v767 = vsel %vm715, %v532, 0.0
      %v768 = vadd.f32 %v766, %v767
      %v769 = vsel %vm715, %v535, 0.0
      %v770 = vadd.f32 %v768, %v769
      %v771 = vsel %vm715, %v540, 0.0
      %v772 = vadd.f32 %v770, %v771
      %v773 = vsel %vm715, %v543, 0.0
      %v774 = vadd.f32 %v772, %v773
      %v775 = vsel %vm715, %v548, 0.0
      %v776 = vadd.f32 %v774, %v775
      %v777 = vsel %vm715, %v551, 0.0
      %v778 = vadd.f32 %v776, %v777
      %v779 = vrot.slane %v778, 4
      %v780 = vadd.f32 %v778, %v779
      %v781 = vrot.slane %v780, 2
      %v782 = vadd.f32 %v780, %v781
      %v783 = vrot.slane %v782, 1
      %v784 = vadd.f32 %v782, %v783
      %vm785 = vcmask 57344
      %786 = vst.msk [vmem:[%s211] sm:$0x1] %vm785, %v784
      %v787 = vmul.f32 %v428, %v428
      %v788 = vmul.f32 %v431, %v431
      %v789 = vmul.f32 %v436, %v436
      %v790 = vmul.f32 %v439, %v439
      %v791 = vmul.f32 %v444, %v444
      %v792 = vmul.f32 %v447, %v447
      %v793 = vmul.f32 %v452, %v452
      %v794 = vmul.f32 %v455, %v455
      %v795 = vmul.f32 %v460, %v460
      %v796 = vmul.f32 %v463, %v463
      %v797 = vmul.f32 %v468, %v468
      %v798 = vmul.f32 %v471, %v471
      %v799 = vmul.f32 %v476, %v476
      %v800 = vmul.f32 %v479, %v479
      %v801 = vmul.f32 %v484, %v484
      %v802 = vmul.f32 %v487, %v487
      %v803 = vmul.f32 %v492, %v492
      %v804 = vmul.f32 %v495, %v495
      %v805 = vmul.f32 %v500, %v500
      %v806 = vmul.f32 %v503, %v503
      %v807 = vmul.f32 %v508, %v508
      %v808 = vmul.f32 %v511, %v511
      %v809 = vmul.f32 %v516, %v516
      %v810 = vmul.f32 %v519, %v519
      %v811 = vmul.f32 %v524, %v524
      %v812 = vmul.f32 %v527, %v527
      %v813 = vmul.f32 %v532, %v532
      %v814 = vmul.f32 %v535, %v535
      %v815 = vmul.f32 %v540, %v540
      %v816 = vmul.f32 %v543, %v543
      %v817 = vmul.f32 %v548, %v548
      %v818 = vmul.f32 %v551, %v551
      %v819 = vsel %vm715, %v787, 0.0
      %v820 = vsel %vm715, %v788, 0.0
      %v821 = vadd.f32 %v819, %v820
      %v822 = vsel %vm715, %v789, 0.0
      %v823 = vadd.f32 %v821, %v822
      %v824 = vsel %vm715, %v790, 0.0
      %v825 = vadd.f32 %v823, %v824
      %v826 = vsel %vm715, %v791, 0.0
      %v827 = vadd.f32 %v825, %v826
      %v828 = vsel %vm715, %v792, 0.0
      %v829 = vadd.f32 %v827, %v828
      %v830 = vsel %vm715, %v793, 0.0
      %v831 = vadd.f32 %v829, %v830
      %v832 = vsel %vm715, %v794, 0.0
      %v833 = vadd.f32 %v831, %v832
      %v834 = vsel %vm715, %v795, 0.0
      %v835 = vadd.f32 %v833, %v834
      %v836 = vsel %vm715, %v796, 0.0
      %v837 = vadd.f32 %v835, %v836
      %v838 = vsel %vm715, %v797, 0.0
      %v839 = vadd.f32 %v837, %v838
      %v840 = vsel %vm715, %v798, 0.0
      %v841 = vadd.f32 %v839, %v840
      %v842 = vsel %vm715, %v799, 0.0
      %v843 = vadd.f32 %v841, %v842
      %v844 = vsel %vm715, %v800, 0.0
      %v845 = vadd.f32 %v843, %v844
      %v846 = vsel %vm715, %v801, 0.0
      %v847 = vadd.f32 %v845, %v846
      %v848 = vsel %vm715, %v802, 0.0
      %v849 = vadd.f32 %v847, %v848
      %v850 = vsel %vm715, %v803, 0.0
      %v851 = vadd.f32 %v849, %v850
      %v852 = vsel %vm715, %v804, 0.0
      %v853 = vadd.f32 %v851, %v852
      %v854 = vsel %vm715, %v805, 0.0
      %v855 = vadd.f32 %v853, %v854
      %v856 = vsel %vm715, %v806, 0.0
      %v857 = vadd.f32 %v855, %v856
      %v858 = vsel %vm715, %v807, 0.0
      %v859 = vadd.f32 %v857, %v858
      %v860 = vsel %vm715, %v808, 0.0
      %v861 = vadd.f32 %v859, %v860
      %v862 = vsel %vm715, %v809, 0.0
      %v863 = vadd.f32 %v861, %v862
      %v864 = vsel %vm715, %v810, 0.0
      %v865 = vadd.f32 %v863, %v864
      %v866 = vsel %vm715, %v811, 0.0
      %v867 = vadd.f32 %v865, %v866
      %v868 = vsel %vm715, %v812, 0.0
      %v869 = vadd.f32 %v867, %v868
      %v870 = vsel %vm715, %v813, 0.0
      %v871 = vadd.f32 %v869, %v870
      %v872 = vsel %vm715, %v814, 0.0
      %v873 = vadd.f32 %v871, %v872
      %v874 = vsel %vm715, %v815, 0.0
      %v875 = vadd.f32 %v873, %v874
      %v876 = vsel %vm715, %v816, 0.0
      %v877 = vadd.f32 %v875, %v876
      %v878 = vsel %vm715, %v817, 0.0
      %v879 = vadd.f32 %v877, %v878
      %v880 = vsel %vm715, %v818, 0.0
      %v881 = vadd.f32 %v879, %v880
      %v882 = vrot.slane %v881, 4
      %v883 = vadd.f32 %v881, %v882
      %v884 = vrot.slane %v883, 2
      %v885 = vadd.f32 %v883, %v884
      %v886 = vrot.slane %v885, 1
      %v887 = vadd.f32 %v885, %v886
      %888 = vst.msk [vmem:[%s214] sm:$0x1] %vm785, %v887
      %p889 = scmp.lt.s32.totalorder %s16, 1
      %s890 = scalar_select %p889, %s16, 1
      %s891 = smul.addr %s890, 32
      %s892 = smul.addr %s891, 4
      %s893 = scalar_lea.vmem %s2, %s892
      %p894 = scmp.lt.s32.totalorder %s16, 1
      %s895 = scalar_select %p894, %s16, 1
      %s896 = scalar_lea.vmem %s3, %s895
      %p897 = scmp.lt.s32.totalorder %s16, 1
      %s898 = scalar_select %p897, %s16, 1
      %s899 = scalar_lea.vmem %s4, %s898
      // Predicated region
      $region29: #{bottleneck_forward.4} parent=27 // pred_check
        %p900 = pneg %p81
      $region30: #{bottleneck_forward.4} parent=27 // pred_check_branch
        %902 = sbr.rel (%p900) target = $region32
      $region31: #{bottleneck_forward.4} parent=27 // pred_region
        _
      $region32: #{bottleneck_forward.4} parent=27 // pred_fallthru
        _
      // Predicated region
      $region33: #{bottleneck_forward.4} parent=27 // pred_check
        %p903 = pneg %p107
      $region34: #{bottleneck_forward.4} parent=27 // pred_check_branch
        %905 = sbr.rel (%p903) target = $region36
      $region35: #{bottleneck_forward.4} parent=27 // pred_region
        _
      $region36: #{bottleneck_forward.4} parent=27 // pred_fallthru
        _
      // Predicated region
      $region37: #{bottleneck_forward.4} parent=27 // pred_check
        %p906 = pneg %p133
      $region38: #{bottleneck_forward.4} parent=27 // pred_check_branch
        %908 = sbr.rel (%p906) target = $region40
      $region39: #{bottleneck_forward.4} parent=27 // pred_region
        _
      $region40: #{bottleneck_forward.4} parent=27 // pred_fallthru
        _
    $region28: #{bottleneck_forward.4} parent=5 // pred_fallthru
      _
    %p909 = scmp.le.s32.totalorder 2, %s11
    // Predicated region
    $region41: #{bottleneck_forward.4} parent=5 // pred_check
      %p910 = pneg %p909
    $region42: #{bottleneck_forward.4} parent=5 // pred_check_branch
      %912 = sbr.rel (%p910) target = $region44
    $region43: #{bottleneck_forward.4} parent=5 // pred_region
      %s913 = ssub.s32 %s11, 2
      // Predicated region
      $region45: #{bottleneck_forward.4} parent=43 // pred_check
        %p914 = pneg %p87
      $region46: #{bottleneck_forward.4} parent=43 // pred_check_branch
        %916 = sbr.rel (%p914) target = $region48
      $region47: #{bottleneck_forward.4} parent=43 // pred_region
        %p917 = scmp.lt.s32.totalorder %s17, 1
        %s918 = scalar_select %p917, %s17, 1
        %s919 = smul.addr %s918, 32
        %s920 = smul.addr %s919, 4
        %s921 = scalar_lea.vmem %s2, %s920
      $region48: #{bottleneck_forward.4} parent=43 // pred_fallthru
        _
      // Predicated region
      $region49: #{bottleneck_forward.4} parent=43 // pred_check
        %p922 = pneg %p113
      $region50: #{bottleneck_forward.4} parent=43 // pred_check_branch
        %924 = sbr.rel (%p922) target = $region52
      $region51: #{bottleneck_forward.4} parent=43 // pred_region
        %p925 = scmp.lt.s32.totalorder %s17, 1
        %s926 = scalar_select %p925, %s17, 1
        %s927 = scalar_lea.vmem %s3, %s926
      $region52: #{bottleneck_forward.4} parent=43 // pred_fallthru
        _
      // Predicated region
      $region53: #{bottleneck_forward.4} parent=43 // pred_check
        %p928 = pneg %p139
      $region54: #{bottleneck_forward.4} parent=43 // pred_check_branch
        %930 = sbr.rel (%p928) target = $region56
      $region55: #{bottleneck_forward.4} parent=43 // pred_region
        %p931 = scmp.lt.s32.totalorder %s17, 1
        %s932 = scalar_select %p931, %s17, 1
        %s933 = scalar_lea.vmem %s4, %s932
      $region56: #{bottleneck_forward.4} parent=43 // pred_fallthru
        _
    $region44: #{bottleneck_forward.4} parent=5 // pred_fallthru
      _
  $region6: #{bottleneck_forward.4} parent=0 // loop_footer
    %s15 = sadd.s32 1, %s11
  $region7: #{bottleneck_forward.4} parent=0 // loop_footer_branch
    %10 = sbr.rel target = $region3
  $region8: #{bottleneck_forward.4} parent=0 // loop_exit
    _

// kernel: bottleneck_forward.6
$region0: #{bottleneck_forward.6}
  #allocation0 [shape = 'u32[]', space=smem, size = 0x4, offset = 0x4, fixed_abs, tag = 'smem constant byte address 0x4 - core index']
  #allocation1 [shape = 'u32[144,128]{1,0:T(1,128)}', space=vmem, size = 0x12000, scoped, tag = 'internal scratch']
  %s0 = inlined_call_operand.vmem [shape: bf16[2,16,16,8], index: 0, kind: input, shape index: {}]
  %s1 = inlined_call_operand.vmem [shape: f32[1,8], index: 1, kind: input, shape index: {}]
  %s2 = inlined_call_operand.vmem [shape: f32[1,8], index: 2, kind: input, shape index: {}]
  %s3 = inlined_call_operand.vmem [shape: bf16[8,32], index: 3, kind: input, shape index: {}]
  %s4 = inlined_call_operand.vmem [shape: bf16[2,16,16,32], index: 4, kind: output, shape index: {0}]
  %s5 = inlined_call_operand.vmem [shape: f32[2,1,32], index: 5, kind: output, shape index: {1}]
  %s6 = inlined_call_operand.vmem [shape: f32[2,1,32], index: 6, kind: output, shape index: {2}]
  %7 = xla_tuple %s4, %s5, %s6
  %s8 = sld [smem:[#allocation0]]
  $region65: #{bottleneck_forward.6} parent=0
    _
  %s10 = ssub.s32 1, %s8
  %s11 = scalar_select 0, %s10, %s8
  loop: start=0, step=1, limit=4
  $region2: #{bottleneck_forward.6} parent=0 // loop_pre_header
    _
  $region3: #{bottleneck_forward.6} parent=0 // loop_header
    %s13 = sphi 0, %s17
    %p14 = scmp.ge.s32.totalorder %s13, 4
    %s23 = sphi 0, %s25
    %s26 = sphi 0, %s23
    %s27 = sphi 0, %s26
    %s43 = sphi 0, %s27
    %s47 = sphi 0, %s47
    %s49 = sphi 0, %s47
    %s50 = sphi 0, %s49
    %s64 = sphi 0, %s50
    %s68 = sphi 0, %s68
    %s70 = sphi 0, %s68
    %s71 = sphi 0, %s70
    %s85 = sphi 0, %s71
    %s89 = sphi 0, %s89
    %s91 = sphi 0, %s89
    %s92 = sphi 0, %s91
    %s106 = sphi 0, %s92
    %s112 = sphi 0, %s114
    %s115 = sphi 0, %s112
    %s116 = sphi 0, %s115
    %s132 = sphi 0, %s116
    %s138 = sphi 0, %s140
    %s141 = sphi 0, %s138
    %s142 = sphi 0, %s141
    %s158 = sphi 0, %s142
    %s164 = sphi 0, %s166
    %s167 = sphi 0, %s164
    %s168 = sphi 0, %s167
    %s184 = sphi 0, %s168
  $region4: #{bottleneck_forward.6} parent=0 // loop_header_branch
    %16 = sbr.rel (%p14) target = $region8
  $region5: #{bottleneck_forward.6} parent=0 // loop_body
    %s18 = ssub.s32 %s13, 1
    %s19 = ssub.s32 %s13, 2
    %s20 = sadd.s32 %s13, 1
    %s21 = ssub.s32 %s13, %s20
    %p22 = scmp.eq.s32.totalorder %s21, 0
    %s24 = sadd.s32 %s23, 1
    %s25 = scalar_select %p22, %s23, %s24
    %p28 = pneg %p22
    %p29 = scmp.eq.s32.totalorder %s13, 1
    %p30 = por %p28, %p29
    %p31 = scmp.ne.s32.totalorder %s23, %s26
    %p32 = scmp.eq.s32.totalorder %s13, 0
    %p33 = por %p31, %p32
    %p34 = scmp.ne.s32.totalorder %s23, %s26
    %p35 = scmp.eq.s32.totalorder %s18, 1
    %p36 = por %p34, %p35
    %p37 = scmp.ne.s32.totalorder %s26, %s27
    %p38 = scmp.eq.s32.totalorder %s18, 0
    %p39 = por %p37, %p38
    %p40 = scmp.ne.s32.totalorder %s26, %s27
    %p41 = scmp.eq.s32.totalorder %s19, 1
    %p42 = por %p40, %p41
    %p44 = scmp.ne.s32.totalorder %s27, %s43
    %p45 = scmp.eq.s32.totalorder %s19, 0
    %p46 = por %p44, %p45
    %s48 = sadd.s32 %s47, 1
    %p51 = scmp.eq.s32.totalorder %s13, 1
    %p52 = scmp.ne.s32.totalorder %s47, %s49
    %p53 = scmp.eq.s32.totalorder %s13, 0
    %p54 = por %p52, %p53
    %p55 = scmp.ne.s32.totalorder %s47, %s49
    %p56 = scmp.eq.s32.totalorder %s18, 1
    %p57 = por %p55, %p56
    %p58 = scmp.ne.s32.totalorder %s49, %s50
    %p59 = scmp.eq.s32.totalorder %s18, 0
    %p60 = por %p58, %p59
    %p61 = scmp.ne.s32.totalorder %s49, %s50
    %p62 = scmp.eq.s32.totalorder %s19, 1
    %p63 = por %p61, %p62
    %p65 = scmp.ne.s32.totalorder %s50, %s64
    %p66 = scmp.eq.s32.totalorder %s19, 0
    %p67 = por %p65, %p66
    %s69 = sadd.s32 %s68, 1
    %p72 = scmp.eq.s32.totalorder %s13, 1
    %p73 = scmp.ne.s32.totalorder %s68, %s70
    %p74 = scmp.eq.s32.totalorder %s13, 0
    %p75 = por %p73, %p74
    %p76 = scmp.ne.s32.totalorder %s68, %s70
    %p77 = scmp.eq.s32.totalorder %s18, 1
    %p78 = por %p76, %p77
    %p79 = scmp.ne.s32.totalorder %s70, %s71
    %p80 = scmp.eq.s32.totalorder %s18, 0
    %p81 = por %p79, %p80
    %p82 = scmp.ne.s32.totalorder %s70, %s71
    %p83 = scmp.eq.s32.totalorder %s19, 1
    %p84 = por %p82, %p83
    %p86 = scmp.ne.s32.totalorder %s71, %s85
    %p87 = scmp.eq.s32.totalorder %s19, 0
    %p88 = por %p86, %p87
    %s90 = sadd.s32 %s89, 1
    %p93 = scmp.eq.s32.totalorder %s13, 1
    %p94 = scmp.ne.s32.totalorder %s89, %s91
    %p95 = scmp.eq.s32.totalorder %s13, 0
    %p96 = por %p94, %p95
    %p97 = scmp.ne.s32.totalorder %s89, %s91
    %p98 = scmp.eq.s32.totalorder %s18, 1
    %p99 = por %p97, %p98
    %p100 = scmp.ne.s32.totalorder %s91, %s92
    %p101 = scmp.eq.s32.totalorder %s18, 0
    %p102 = por %p100, %p101
    %p103 = scmp.ne.s32.totalorder %s91, %s92
    %p104 = scmp.eq.s32.totalorder %s19, 1
    %p105 = por %p103, %p104
    %p107 = scmp.ne.s32.totalorder %s92, %s106
    %p108 = scmp.eq.s32.totalorder %s19, 0
    %p109 = por %p107, %p108
    %s110 = ssub.s32 %s13, %s20
    %p111 = scmp.eq.s32.totalorder %s110, 0
    %s113 = sadd.s32 %s112, 1
    %s114 = scalar_select %p111, %s112, %s113
    %p117 = pneg %p111
    %p118 = scmp.eq.s32.totalorder %s13, 1
    %p119 = por %p117, %p118
    %p120 = scmp.ne.s32.totalorder %s112, %s115
    %p121 = scmp.eq.s32.totalorder %s13, 0
    %p122 = por %p120, %p121
    %p123 = scmp.ne.s32.totalorder %s112, %s115
    %p124 = scmp.eq.s32.totalorder %s18, 1
    %p125 = por %p123, %p124
    %p126 = scmp.ne.s32.totalorder %s115, %s116
    %p127 = scmp.eq.s32.totalorder %s18, 0
    %p128 = por %p126, %p127
    %p129 = scmp.ne.s32.totalorder %s115, %s116
    %p130 = scmp.eq.s32.totalorder %s19, 1
    %p131 = por %p129, %p130
    %p133 = scmp.ne.s32.totalorder %s116, %s132
    %p134 = scmp.eq.s32.totalorder %s19, 0
    %p135 = por %p133, %p134
    %s136 = ssub.s32 %s13, %s20
    %p137 = scmp.eq.s32.totalorder %s136, 0
    %s139 = sadd.s32 %s138, 1
    %s140 = scalar_select %p137, %s138, %s139
    %p143 = pneg %p137
    %p144 = scmp.eq.s32.totalorder %s13, 1
    %p145 = por %p143, %p144
    %p146 = scmp.ne.s32.totalorder %s138, %s141
    %p147 = scmp.eq.s32.totalorder %s13, 0
    %p148 = por %p146, %p147
    %p149 = scmp.ne.s32.totalorder %s138, %s141
    %p150 = scmp.eq.s32.totalorder %s18, 1
    %p151 = por %p149, %p150
    %p152 = scmp.ne.s32.totalorder %s141, %s142
    %p153 = scmp.eq.s32.totalorder %s18, 0
    %p154 = por %p152, %p153
    %p155 = scmp.ne.s32.totalorder %s141, %s142
    %p156 = scmp.eq.s32.totalorder %s19, 1
    %p157 = por %p155, %p156
    %p159 = scmp.ne.s32.totalorder %s142, %s158
    %p160 = scmp.eq.s32.totalorder %s19, 0
    %p161 = por %p159, %p160
    %s162 = ssub.s32 %s13, %s20
    %p163 = scmp.eq.s32.totalorder %s162, 0
    %s165 = sadd.s32 %s164, 1
    %s166 = scalar_select %p163, %s164, %s165
    %p169 = pneg %p163
    %p170 = scmp.eq.s32.totalorder %s13, 1
    %p171 = por %p169, %p170
    %p172 = scmp.ne.s32.totalorder %s164, %s167
    %p173 = scmp.eq.s32.totalorder %s13, 0
    %p174 = por %p172, %p173
    %p175 = scmp.ne.s32.totalorder %s164, %s167
    %p176 = scmp.eq.s32.totalorder %s18, 1
    %p177 = por %p175, %p176
    %p178 = scmp.ne.s32.totalorder %s167, %s168
    %p179 = scmp.eq.s32.totalorder %s18, 0
    %p180 = por %p178, %p179
    %p181 = scmp.ne.s32.totalorder %s167, %s168
    %p182 = scmp.eq.s32.totalorder %s19, 1
    %p183 = por %p181, %p182
    %p185 = scmp.ne.s32.totalorder %s168, %s184
    %p186 = scmp.eq.s32.totalorder %s19, 0
    %p187 = por %p185, %p186
    %p188 = scmp.le.s32.totalorder 1, %s13
    %p189 = scmp.lt.s32.totalorder %s13, 3
    %p190 = pnand %p188, %p189
    %p191 = pneg %p190
    // Predicated region
    $region9: #{bottleneck_forward.6} parent=5 // pred_check
      _
    $region10: #{bottleneck_forward.6} parent=5 // pred_check_branch
      %193 = sbr.rel (%p190) target = $region12
    $region11: #{bottleneck_forward.6} parent=5 // pred_region
      %s194 = ssub.s32 %s13, 1
      // Predicated region
      $region13: #{bottleneck_forward.6} parent=11 // pred_check
        %p195 = pneg %p60
      $region14: #{bottleneck_forward.6} parent=11 // pred_check_branch
        %197 = sbr.rel (%p195) target = $region16
      $region15: #{bottleneck_forward.6} parent=11 // pred_region
        _
      $region16: #{bottleneck_forward.6} parent=11 // pred_fallthru
        _
      // Predicated region
      $region17: #{bottleneck_forward.6} parent=11 // pred_check
        %p198 = pneg %p81
      $region18: #{bottleneck_forward.6} parent=11 // pred_check_branch
        %200 = sbr.rel (%p198) target = $region20
      $region19: #{bottleneck_forward.6} parent=11 // pred_region
        _
      $region20: #{bottleneck_forward.6} parent=11 // pred_fallthru
        _
      // Predicated region
      $region21: #{bottleneck_forward.6} parent=11 // pred_check
        %p201 = pneg %p102
      $region22: #{bottleneck_forward.6} parent=11 // pred_check_branch
        %203 = sbr.rel (%p201) target = $region24
      $region23: #{bottleneck_forward.6} parent=11 // pred_region
        _
      $region24: #{bottleneck_forward.6} parent=11 // pred_fallthru
        _
    $region12: #{bottleneck_forward.6} parent=5 // pred_fallthru
      _
    %p204 = scmp.lt.s32.totalorder %s13, 2
    // Predicated region
    $region25: #{bottleneck_forward.6} parent=5 // pred_check
      %p205 = pneg %p204
    $region26: #{bottleneck_forward.6} parent=5 // pred_check_branch
      %207 = sbr.rel (%p205) target = $region28
    $region27: #{bottleneck_forward.6} parent=5 // pred_region
      // Predicated region
      $region29: #{bottleneck_forward.6} parent=27 // pred_check
        %p208 = pneg %p33
      $region30: #{bottleneck_forward.6} parent=27 // pred_check_branch
        %210 = sbr.rel (%p208) target = $region32
      $region31: #{bottleneck_forward.6} parent=27 // pred_region
        %p211 = scmp.lt.s32.totalorder %s13, 1
        %s212 = scalar_select %p211, %s13, 1
        %s213 = smul.addr %s212, 32
        %s214 = smul.addr %s213, 4
        %s215 = scalar_lea.vmem %s0, %s214
      $region32: #{bottleneck_forward.6} parent=27 // pred_fallthru
        _
    $region28: #{bottleneck_forward.6} parent=5 // pred_fallthru
      _
    %p216 = scmp.le.s32.totalorder 1, %s13
    %p217 = scmp.lt.s32.totalorder %s13, 3
    %p218 = pnand %p216, %p217
    %p219 = pneg %p218
    // Predicated region
    $region33: #{bottleneck_forward.6} parent=5 // pred_check
      _
    $region34: #{bottleneck_forward.6} parent=5 // pred_check_branch
      %221 = sbr.rel (%p218) target = $region36
    $region35: #{bottleneck_forward.6} parent=5 // pred_region
      %s222 = ssub.s32 %s13, 1
      %p223 = scmp.lt.s32.totalorder %s18, 1
      %s224 = scalar_select %p223, %s18, 1
      %s225 = smul.addr %s224, 32
      %s226 = smul.addr %s225, 4
      %s227 = scalar_lea.vmem %s0, %s226
      %p228 = pneg %p39
      %p229 = pneg %p36
      %p230 = pneg %p60
      %p231 = pneg %p57
      %p232 = pneg %p81
      %p233 = pneg %p78
      %p234 = pneg %p102
      %p235 = pneg %p99
      %p236 = pneg %p128
      %p237 = pneg %p125
      %p238 = scmp.lt.s32.totalorder %s18, 1
      %s239 = scalar_select %p238, %s18, 1
      %s240 = smul.addr %s239, 32
      %s241 = smul.addr %s240, 4
      %s242 = scalar_lea.vmem %s4, %s241
      %p243 = pneg %p154
      %p244 = pneg %p151
      %p245 = scmp.lt.s32.totalorder %s18, 1
      %s246 = scalar_select %p245, %s18, 1
      %s247 = scalar_lea.vmem %s5, %s246
      %p248 = pneg %p180
      %p249 = pneg %p177
      %p250 = scmp.lt.s32.totalorder %s18, 1
      %s251 = scalar_select %p250, %s18, 1
      %s252 = scalar_lea.vmem %s6, %s251
      %p253 = scmp.lt.s32.totalorder %s18, 1
      %s254 = scalar_select %p253, %s18, 1
      %s255 = smul.addr %s254, 32
      %s256 = smul.addr %s255, 4
      %s257 = scalar_lea.vmem %s0, %s256
      %p258 = scmp.lt.s32.totalorder %s18, 1
      %s259 = scalar_select %p258, %s18, 1
      %s260 = smul.addr %s259, 32
      %s261 = smul.addr %s260, 4
      %s262 = scalar_lea.vmem %s4, %s261
      %p263 = scmp.lt.s32.totalorder %s18, 1
      %s264 = scalar_select %p263, %s18, 1
      %s265 = scalar_lea.vmem %s5, %s264
      %p266 = scmp.lt.s32.totalorder %s18, 1
      %s267 = scalar_select %p266, %s18, 1
      %s268 = scalar_lea.vmem %s6, %s267
      %v270 = vld [vmem:[%s1] sm:$0x1]
      %v271 = vld [vmem:[%s2] sm:$0x1]
      %v272 = vld [vmem:[%s257] sm:$0xf]
      %v273 = vld [vmem:[%s257 + $0x4] sm:$0xf]
      %v274 = vld [vmem:[%s257 + $0x8] sm:$0xf]
      %v275 = vld [vmem:[%s257 + $0xc] sm:$0xf]
      %v276 = vld [vmem:[%s257 + $0x10] sm:$0xf]
      %v277 = vld [vmem:[%s257 + $0x14] sm:$0xf]
      %v278 = vld [vmem:[%s257 + $0x18] sm:$0xf]
      %v279 = vld [vmem:[%s257 + $0x1c] sm:$0xf]
      %v280 = vld [vmem:[%s257 + $0x20] sm:$0xf]
      %v281 = vld [vmem:[%s257 + $0x24] sm:$0xf]
      %v282 = vld [vmem:[%s257 + $0x28] sm:$0xf]
      %v283 = vld [vmem:[%s257 + $0x2c] sm:$0xf]
      %v284 = vld [vmem:[%s257 + $0x30] sm:$0xf]
      %v285 = vld [vmem:[%s257 + $0x34] sm:$0xf]
      %v286 = vld [vmem:[%s257 + $0x38] sm:$0xf]
      %v287 = vld [vmem:[%s257 + $0x3c] sm:$0xf]
      %v288 = vld [vmem:[%s257 + $0x40] sm:$0xf]
      %v289 = vld [vmem:[%s257 + $0x44] sm:$0xf]
      %v290 = vld [vmem:[%s257 + $0x48] sm:$0xf]
      %v291 = vld [vmem:[%s257 + $0x4c] sm:$0xf]
      %v292 = vld [vmem:[%s257 + $0x50] sm:$0xf]
      %v293 = vld [vmem:[%s257 + $0x54] sm:$0xf]
      %v294 = vld [vmem:[%s257 + $0x58] sm:$0xf]
      %v295 = vld [vmem:[%s257 + $0x5c] sm:$0xf]
      %v296 = vld [vmem:[%s257 + $0x60] sm:$0xf]
      %v297 = vld [vmem:[%s257 + $0x64] sm:$0xf]
      %v298 = vld [vmem:[%s257 + $0x68] sm:$0xf]
      %v299 = vld [vmem:[%s257 + $0x6c] sm:$0xf]
      %v300 = vld [vmem:[%s257 + $0x70] sm:$0xf]
      %v301 = vld [vmem:[%s257 + $0x74] sm:$0xf]
      %v302 = vld [vmem:[%s257 + $0x78] sm:$0xf]
      %v303 = vld [vmem:[%s257 + $0x7c] sm:$0xf]
      %v304 = vunpack.c.l.bf16 %v272
      %v305 = vunpack.c.l.bf16 %v273
      %v306 = vunpack.c.l.bf16 %v274
      %v307 = vunpack.c.l.bf16 %v275
      %v308 = vunpack.c.l.bf16 %v276
      %v309 = vunpack.c.l.bf16 %v277
      %v310 = vunpack.c.l.bf16 %v278
      %v311 = vunpack.c.l.bf16 %v279
      %v312 = vunpack.c.l.bf16 %v280
      %v313 = vunpack.c.l.bf16 %v281
      %v314 = vunpack.c.l.bf16 %v282
      %v315 = vunpack.c.l.bf16 %v283
      %v316 = vunpack.c.l.bf16 %v284
      %v317 = vunpack.c.l.bf16 %v285
      %v318 = vunpack.c.l.bf16 %v286
      %v319 = vunpack.c.l.bf16 %v287
      %v320 = vunpack.c.l.bf16 %v288
      %v321 = vunpack.c.l.bf16 %v289
      %v322 = vunpack.c.l.bf16 %v290
      %v323 = vunpack.c.l.bf16 %v291
      %v324 = vunpack.c.l.bf16 %v292
      %v325 = vunpack.c.l.bf16 %v293
      %v326 = vunpack.c.l.bf16 %v294
      %v327 = vunpack.c.l.bf16 %v295
      %v328 = vunpack.c.l.bf16 %v296
      %v329 = vunpack.c.l.bf16 %v297
      %v330 = vunpack.c.l.bf16 %v298
      %v331 = vunpack.c.l.bf16 %v299
      %v332 = vunpack.c.l.bf16 %v300
      %v333 = vunpack.c.l.bf16 %v301
      %v334 = vunpack.c.l.bf16 %v302
      %v335 = vunpack.c.l.bf16 %v303
      %v337 = vlaneseq
      %v338 = vshrl.u32 %v337, 7
      %v339 = vsub.s32 0, %v338
      %v340 = vrot.slane %v270, %v339
      %v342 = vmul.f32 %v304, %v340
      %v343 = vmul.f32 %v305, %v340
      %v344 = vmul.f32 %v306, %v340
      %v345 = vmul.f32 %v307, %v340
      %v346 = vmul.f32 %v308, %v340
      %v347 = vmul.f32 %v309, %v340
      %v348 = vmul.f32 %v310, %v340
      %v349 = vmul.f32 %v311, %v340
      %v350 = vmul.f32 %v312, %v340
      %v351 = vmul.f32 %v313, %v340
      %v352 = vmul.f32 %v314, %v340
      %v353 = vmul.f32 %v315, %v340
      %v354 = vmul.f32 %v316, %v340
      %v355 = vmul.f32 %v317, %v340
      %v356 = vmul.f32 %v318, %v340
      %v357 = vmul.f32 %v319, %v340
      %v358 = vmul.f32 %v320, %v340
      %v359 = vmul.f32 %v321, %v340
      %v360 = vmul.f32 %v322, %v340
      %v361 = vmul.f32 %v323, %v340
      %v362 = vmul.f32 %v324, %v340
      %v363 = vmul.f32 %v325, %v340
      %v364 = vmul.f32 %v326, %v340
      %v365 = vmul.f32 %v327, %v340
      %v366 = vmul.f32 %v328, %v340
      %v367 = vmul.f32 %v329, %v340
      %v368 = vmul.f32 %v330, %v340
      %v369 = vmul.f32 %v331, %v340
      %v370 = vmul.f32 %v332, %v340
      %v371 = vmul.f32 %v333, %v340
      %v372 = vmul.f32 %v334, %v340
      %v373 = vmul.f32 %v335, %v340
      %v375 = vlaneseq
      %v376 = vshrl.u32 %v375, 7
      %v377 = vsub.s32 0, %v376
      %v378 = vrot.slane %v271, %v377
      %v380 = vadd.f32 %v342, %v378
      %v381 = vadd.f32 %v343, %v378
      %v382 = vadd.f32 %v344, %v378
      %v383 = vadd.f32 %v345, %v378
      %v384 = vadd.f32 %v346, %v378
      %v385 = vadd.f32 %v347, %v378
      %v386 = vadd.f32 %v348, %v378
      %v387 = vadd.f32 %v349, %v378
      %v388 = vadd.f32 %v350, %v378
      %v389 = vadd.f32 %v351, %v378
      %v390 = vadd.f32 %v352, %v378
      %v391 = vadd.f32 %v353, %v378
      %v392 = vadd.f32 %v354, %v378
      %v393 = vadd.f32 %v355, %v378
      %v394 = vadd.f32 %v356, %v378
      %v395 = vadd.f32 %v357, %v378
      %v396 = vadd.f32 %v358, %v378
      %v397 = vadd.f32 %v359, %v378
      %v398 = vadd.f32 %v360, %v378
      %v399 = vadd.f32 %v361, %v378
      %v400 = vadd.f32 %v362, %v378
      %v401 = vadd.f32 %v363, %v378
      %v402 = vadd.f32 %v364, %v378
      %v403 = vadd.f32 %v365, %v378
      %v404 = vadd.f32 %v366, %v378
      %v405 = vadd.f32 %v367, %v378
      %v406 = vadd.f32 %v368, %v378
      %v407 = vadd.f32 %v369, %v378
      %v408 = vadd.f32 %v370, %v378
      %v409 = vadd.f32 %v371, %v378
      %v410 = vadd.f32 %v372, %v378
      %v411 = vadd.f32 %v373, %v378
      %v412 = vmax.f32 %v380, 0.0
      %v413 = vmax.f32 %v381, 0.0
      %v414 = vmax.f32 %v382, 0.0
      %v415 = vmax.f32 %v383, 0.0
      %v416 = vmax.f32 %v384, 0.0
      %v417 = vmax.f32 %v385, 0.0
      %v418 = vmax.f32 %v386, 0.0
      %v419 = vmax.f32 %v387, 0.0
      %v420 = vmax.f32 %v388, 0.0
      %v421 = vmax.f32 %v389, 0.0
      %v422 = vmax.f32 %v390, 0.0
      %v423 = vmax.f32 %v391, 0.0
      %v424 = vmax.f32 %v392, 0.0
      %v425 = vmax.f32 %v393, 0.0
      %v426 = vmax.f32 %v394, 0.0
      %v427 = vmax.f32 %v395, 0.0
      %v428 = vmax.f32 %v396, 0.0
      %v429 = vmax.f32 %v397, 0.0
      %v430 = vmax.f32 %v398, 0.0
      %v431 = vmax.f32 %v399, 0.0
      %v432 = vmax.f32 %v400, 0.0
      %v433 = vmax.f32 %v401, 0.0
      %v434 = vmax.f32 %v402, 0.0
      %v435 = vmax.f32 %v403, 0.0
      %v436 = vmax.f32 %v404, 0.0
      %v437 = vmax.f32 %v405, 0.0
      %v438 = vmax.f32 %v406, 0.0
      %v439 = vmax.f32 %v407, 0.0
      %v440 = vmax.f32 %v408, 0.0
      %v441 = vmax.f32 %v409, 0.0
      %v442 = vmax.f32 %v410, 0.0
      %v443 = vmax.f32 %v411, 0.0
      %v444 = vpack.c.bf16 %v413, %v412
      %v445 = vpack.c.bf16 %v415, %v414
      %v446 = vpack.c.bf16 %v417, %v416
      %v447 = vpack.c.bf16 %v419, %v418
      %v448 = vpack.c.bf16 %v421, %v420
      %v449 = vpack.c.bf16 %v423, %v422
      %v450 = vpack.c.bf16 %v425, %v424
      %v451 = vpack.c.bf16 %v427, %v426
      %v452 = vpack.c.bf16 %v429, %v428
      %v453 = vpack.c.bf16 %v431, %v430
      %v454 = vpack.c.bf16 %v433, %v432
      %v455 = vpack.c.bf16 %v435, %v434
      %v456 = vpack.c.bf16 %v437, %v436
      %v457 = vpack.c.bf16 %v439, %v438
      %v458 = vpack.c.bf16 %v441, %v440
      %v459 = vpack.c.bf16 %v443, %v442
      %v460 = vld [vmem:[%s3] sm:$0xf]
      %vm461 = vcmask 64512
      %v463 = vsel %vm461, %v444, 0
      %v466 = vsel %vm461, %v445, 0
      %v469 = vsel %vm461, %v446, 0
      %v472 = vsel %vm461, %v447, 0
      %v475 = vsel %vm461, %v448, 0
      %v478 = vsel %vm461, %v449, 0
      %v481 = vsel %vm461, %v450, 0
      %v484 = vsel %vm461, %v451, 0
      %v487 = vsel %vm461, %v452, 0
      %v490 = vsel %vm461, %v453, 0
      %v493 = vsel %vm461, %v454, 0
      %v496 = vsel %vm461, %v455, 0
      %v499 = vsel %vm461, %v456, 0
      %v502 = vsel %vm461, %v457, 0
      %v505 = vsel %vm461, %v458, 0
      %v508 = vsel %vm461, %v459, 0
      %vm510 = vcmask 1043456
      %v512 = vsel %vm510, %v460, 0
      %514 = vmatprep.subr.bf16.mxu0 0
      %515 = vmatpush1.bf16.msra.mxu0 %v512
      %516 = vmatprep.subr.bf16.mxu0 0
      %517 = vmatpush1.bf16.msra.mxu0 0
      %518 = vmatprep.subr.bf16.mxu0 0
      %519 = vmatpush1.bf16.msra.mxu0 0
      %520 = vmatprep.subr.bf16.mxu0 0
      %521 = vmatpush1.bf16.msra.mxu0 0
      %522 = vmatprep.subr.bf16.mxu0 0
      %523 = vmatpush1.bf16.msra.mxu0 0
      %524 = vmatprep.subr.bf16.mxu0 0
      %525 = vmatpush1.bf16.msra.mxu0 0
      %526 = vmatprep.subr.bf16.mxu0 0
      %527 = vmatpush1.bf16.msra.mxu0 0
      %528 = vmatprep.subr.bf16.mxu0 0
      %529 = vmatpush1.bf16.msra.mxu0 0
      %530 = vmatprep.subr.bf16.mxu0 0
      %531 = vmatpush1.bf16.msra.mxu0 0
      %532 = vmatprep.subr.bf16.mxu0 0
      %533 = vmatpush1.bf16.msra.mxu0 0
      %534 = vmatprep.subr.bf16.mxu0 0
      %535 = vmatpush1.bf16.msra.mxu0 0
      %536 = vmatprep.subr.bf16.mxu0 0
      %537 = vmatpush1.bf16.msra.mxu0 0
      %538 = vmatprep.subr.bf16.mxu0 0
      %539 = vmatpush1.bf16.msra.mxu0 0
      %540 = vmatprep.subr.bf16.mxu0 0
      %541 = vmatpush1.bf16.msra.mxu0 0
      %542 = vmatprep.subr.bf16.mxu0 0
      %543 = vmatpush1.bf16.msra.mxu0 0
      %544 = vmatprep.subr.bf16.mxu0 0
      %545 = vmatpush1.bf16.msra.mxu0 0
      %546 = vmatprep.mubr.bf16.mxu0 0
      %547 = vmatmul.mubr.bf16.gmra.mrb[0].mxu0 %v463
      %v548 = vpop.f32.mrb[0].mxu0
      %v549 = vadd.f32 0.0, %v548
      %v550 = vpop.f32.mrb[0].mxu0
      %v551 = vpop.f32.mrb[0].mxu0
      %v552 = vadd.f32 0.0, %v551
      %v553 = vpop.f32.mrb[0].mxu0
      %554 = vmatprep.mubr.bf16.mxu0 0
      %555 = vmatmul.mubr.bf16.gmra.mrb[0].mxu0 %v466
      %v556 = vpop.f32.mrb[0].mxu0
      %v557 = vadd.f32 0.0, %v556
      %v558 = vpop.f32.mrb[0].mxu0
      %v559 = vpop.f32.mrb[0].mxu0
      %v560 = vadd.f32 0.0, %v559
      %v561 = vpop.f32.mrb[0].mxu0
      %562 = vmatprep.mubr.bf16.mxu0 0
      %563 = vmatmul.mubr.bf16.gmra.mrb[0].mxu0 %v469
      %v564 = vpop.f32.mrb[0].mxu0
      %v565 = vadd.f32 0.0, %v564
      %v566 = vpop.f32.mrb[0].mxu0
      %v567 = vpop.f32.mrb[0].mxu0
      %v568 = vadd.f32 0.0, %v567
      %v569 = vpop.f32.mrb[0].mxu0
      %570 = vmatprep.mubr.bf16.mxu0 0
      %571 = vmatmul.mubr.bf16.gmra.mrb[0].mxu0 %v472
      %v572 = vpop.f32.mrb[0].mxu0
      %v573 = vadd.f32 0.0, %v572
      %v574 = vpop.f32.mrb[0].mxu0
      %v575 = vpop.f32.mrb[0].mxu0
      %v576 = vadd.f32 0.0, %v575
      %v577 = vpop.f32.mrb[0].mxu0
      %578 = vmatprep.mubr.bf16.mxu0 0
      %579 = vmatmul.mubr.bf16.gmra.mrb[0].mxu0 %v475
      %v580 = vpop.f32.mrb[0].mxu0
      %v581 = vadd.f32 0.0, %v580
      %v582 = vpop.f32.mrb[0].mxu0
      %v583 = vpop.f32.mrb[0].mxu0
      %v584 = vadd.f32 0.0, %v583
      %v585 = vpop.f32.mrb[0].mxu0
      %586 = vmatprep.mubr.bf16.mxu0 0
      %587 = vmatmul.mubr.bf16.gmra.mrb[0].mxu0 %v478
      %v588 = vpop.f32.mrb[0].mxu0
      %v589 = vadd.f32 0.0, %v588
      %v590 = vpop.f32.mrb[0].mxu0
      %v591 = vpop.f32.mrb[0].mxu0
      %v592 = vadd.f32 0.0, %v591
      %v593 = vpop.f32.mrb[0].mxu0
      %594 = vmatprep.mubr.bf16.mxu0 0
      %595 = vmatmul.mubr.bf16.gmra.mrb[0].mxu0 %v481
      %v596 = vpop.f32.mrb[0].mxu0
      %v597 = vadd.f32 0.0, %v596
      %v598 = vpop.f32.mrb[0].mxu0
      %v599 = vpop.f32.mrb[0].mxu0
      %v600 = vadd.f32 0.0, %v599
      %v601 = vpop.f32.mrb[0].mxu0
      %602 = vmatprep.mubr.bf16.mxu0 0
      %603 = vmatmul.mubr.bf16.gmra.mrb[0].mxu0 %v484
      %v604 = vpop.f32.mrb[0].mxu0
      %v605 = vadd.f32 0.0, %v604
      %v606 = vpop.f32.mrb[0].mxu0
      %v607 = vpop.f32.mrb[0].mxu0
      %v608 = vadd.f32 0.0, %v607
      %v609 = vpop.f32.mrb[0].mxu0
      %610 = vmatprep.mubr.bf16.mxu0 0
      %611 = vmatmul.mubr.bf16.gmra.mrb[0].mxu0 %v487
      %v612 = vpop.f32.mrb[0].mxu0
      %v613 = vadd.f32 0.0, %v612
      %v614 = vpop.f32.mrb[0].mxu0
      %v615 = vpop.f32.mrb[0].mxu0
      %v616 = vadd.f32 0.0, %v615
      %v617 = vpop.f32.mrb[0].mxu0
      %618 = vmatprep.mubr.bf16.mxu0 0
      %619 = vmatmul.mubr.bf16.gmra.mrb[0].mxu0 %v490
      %v620 = vpop.f32.mrb[0].mxu0
      %v621 = vadd.f32 0.0, %v620
      %v622 = vpop.f32.mrb[0].mxu0
      %v623 = vpop.f32.mrb[0].mxu0
      %v624 = vadd.f32 0.0, %v623
      %v625 = vpop.f32.mrb[0].mxu0
      %626 = vmatprep.mubr.bf16.mxu0 0
      %627 = vmatmul.mubr.bf16.gmra.mrb[0].mxu0 %v493
      %v628 = vpop.f32.mrb[0].mxu0
      %v629 = vadd.f32 0.0, %v628
      %v630 = vpop.f32.mrb[0].mxu0
      %v631 = vpop.f32.mrb[0].mxu0
      %v632 = vadd.f32 0.0, %v631
      %v633 = vpop.f32.mrb[0].mxu0
      %634 = vmatprep.mubr.bf16.mxu0 0
      %635 = vmatmul.mubr.bf16.gmra.mrb[0].mxu0 %v496
      %v636 = vpop.f32.mrb[0].mxu0
      %v637 = vadd.f32 0.0, %v636
      %v638 = vpop.f32.mrb[0].mxu0
      %v639 = vpop.f32.mrb[0].mxu0
      %v640 = vadd.f32 0.0, %v639
      %v641 = vpop.f32.mrb[0].mxu0
      %642 = vmatprep.mubr.bf16.mxu0 0
      %643 = vmatmul.mubr.bf16.gmra.mrb[0].mxu0 %v499
      %v644 = vpop.f32.mrb[0].mxu0
      %v645 = vadd.f32 0.0, %v644
      %v646 = vpop.f32.mrb[0].mxu0
      %v647 = vpop.f32.mrb[0].mxu0
      %v648 = vadd.f32 0.0, %v647
      %v649 = vpop.f32.mrb[0].mxu0
      %650 = vmatprep.mubr.bf16.mxu0 0
      %651 = vmatmul.mubr.bf16.gmra.mrb[0].mxu0 %v502
      %v652 = vpop.f32.mrb[0].mxu0
      %v653 = vadd.f32 0.0, %v652
      %v654 = vpop.f32.mrb[0].mxu0
      %v655 = vpop.f32.mrb[0].mxu0
      %v656 = vadd.f32 0.0, %v655
      %v657 = vpop.f32.mrb[0].mxu0
      %658 = vmatprep.mubr.bf16.mxu0 0
      %659 = vmatmul.mubr.bf16.gmra.mrb[0].mxu0 %v505
      %v660 = vpop.f32.mrb[0].mxu0
      %v661 = vadd.f32 0.0, %v660
      %v662 = vpop.f32.mrb[0].mxu0
      %v663 = vpop.f32.mrb[0].mxu0
      %v664 = vadd.f32 0.0, %v663
      %v665 = vpop.f32.mrb[0].mxu0
      %666 = vmatprep.mubr.bf16.mxu0 0
      %667 = vmatmul.mubr.bf16.gmra.mrb[0].mxu0 %v508
      %v668 = vpop.f32.mrb[0].mxu0
      %v669 = vadd.f32 0.0, %v668
      %v670 = vpop.f32.mrb[0].mxu0
      %v671 = vpop.f32.mrb[0].mxu0
      %v672 = vadd.f32 0.0, %v671
      %v673 = vpop.f32.mrb[0].mxu0
      %674 = vdwg.mxu0
      %v675 = vpack.c.bf16 %v552, %v549
      %v676 = vpack.c.bf16 %v560, %v557
      %v677 = vpack.c.bf16 %v568, %v565
      %v678 = vpack.c.bf16 %v576, %v573
      %v679 = vpack.c.bf16 %v584, %v581
      %v680 = vpack.c.bf16 %v592, %v589
      %v681 = vpack.c.bf16 %v600, %v597
      %v682 = vpack.c.bf16 %v608, %v605
      %v683 = vpack.c.bf16 %v616, %v613
      %v684 = vpack.c.bf16 %v624, %v621
      %v685 = vpack.c.bf16 %v632, %v629
      %v686 = vpack.c.bf16 %v640, %v637
      %v687 = vpack.c.bf16 %v648, %v645
      %v688 = vpack.c.bf16 %v656, %v653
      %v689 = vpack.c.bf16 %v664, %v661
      %v690 = vpack.c.bf16 %v672, %v669
      %v707 = vunpack.c.l.b16 %v675
      %v708 = vunpack.c.h.b16 %v675
      %v709 = vunpack.c.l.b16 %v676
      %v710 = vunpack.c.h.b16 %v676
      %v711 = vunpack.c.l.b16 %v677
      %v712 = vunpack.c.h.b16 %v677
      %v713 = vunpack.c.l.b16 %v678
      %v714 = vunpack.c.h.b16 %v678
      %v715 = vunpack.c.l.b16 %v679
      %v716 = vunpack.c.h.b16 %v679
      %v717 = vunpack.c.l.b16 %v680
      %v718 = vunpack.c.h.b16 %v680
      %v719 = vunpack.c.l.b16 %v681
      %v720 = vunpack.c.h.b16 %v681
      %v721 = vunpack.c.l.b16 %v682
      %v722 = vunpack.c.h.b16 %v682
      %v723 = vunpack.c.l.b16 %v683
      %v724 = vunpack.c.h.b16 %v683
      %v725 = vunpack.c.l.b16 %v684
      %v726 = vunpack.c.h.b16 %v684
      %v727 = vunpack.c.l.b16 %v685
      %v728 = vunpack.c.h.b16 %v685
      %v729 = vunpack.c.l.b16 %v686
      %v730 = vunpack.c.h.b16 %v686
      %v731 = vunpack.c.l.b16 %v687
      %v732 = vunpack.c.h.b16 %v687
      %v733 = vunpack.c.l.b16 %v688
      %v734 = vunpack.c.h.b16 %v688
      %v735 = vunpack.c.l.b16 %v689
      %v736 = vunpack.c.h.b16 %v689
      %v737 = vunpack.c.l.b16 %v690
      %v738 = vunpack.c.h.b16 %v690
      %v739 = vpack.c.b16 %v707, %v707
      %v740 = vpack.c.b16 %v708, %v708
      %v741 = vpack.c.b16 %v709, %v709
      %v742 = vpack.c.b16 %v710, %v710
      %v743 = vpack.c.b16 %v711, %v711
      %v744 = vpack.c.b16 %v712, %v712
      %v745 = vpack.c.b16 %v713, %v713
      %v746 = vpack.c.b16 %v714, %v714
      %v747 = vpack.c.b16 %v715, %v715
      %v748 = vpack.c.b16 %v716, %v716
      %v749 = vpack.c.b16 %v717, %v717
      %v750 = vpack.c.b16 %v718, %v718
      %v751 = vpack.c.b16 %v719, %v719
      %v752 = vpack.c.b16 %v720, %v720
      %v753 = vpack.c.b16 %v721, %v721
      %v754 = vpack.c.b16 %v722, %v722
      %v755 = vpack.c.b16 %v723, %v723
      %v756 = vpack.c.b16 %v724, %v724
      %v757 = vpack.c.b16 %v725, %v725
      %v758 = vpack.c.b16 %v726, %v726
      %v759 = vpack.c.b16 %v727, %v727
      %v760 = vpack.c.b16 %v728, %v728
      %v761 = vpack.c.b16 %v729, %v729
      %v762 = vpack.c.b16 %v730, %v730
      %v763 = vpack.c.b16 %v731, %v731
      %v764 = vpack.c.b16 %v732, %v732
      %v765 = vpack.c.b16 %v733, %v733
      %v766 = vpack.c.b16 %v734, %v734
      %v767 = vpack.c.b16 %v735, %v735
      %v768 = vpack.c.b16 %v736, %v736
      %v769 = vpack.c.b16 %v737, %v737
      %v770 = vpack.c.b16 %v738, %v738
      %vm803 = vcmask 257024
      %804 = vst.msk [vmem:[%s262] sm:$0xf] %vm803, %v739
      %805 = vst.msk [vmem:[%s262 + $0x4] sm:$0xf] %vm803, %v740
      %806 = vst.msk [vmem:[%s262 + $0x8] sm:$0xf] %vm803, %v741
      %807 = vst.msk [vmem:[%s262 + $0xc] sm:$0xf] %vm803, %v742
      %808 = vst.msk [vmem:[%s262 + $0x10] sm:$0xf] %vm803, %v743
      %809 = vst.msk [vmem:[%s262 + $0x14] sm:$0xf] %vm803, %v744
      %810 = vst.msk [vmem:[%s262 + $0x18] sm:$0xf] %vm803, %v745
      %811 = vst.msk [vmem:[%s262 + $0x1c] sm:$0xf] %vm803, %v746
      %812 = vst.msk [vmem:[%s262 + $0x20] sm:$0xf] %vm803, %v747
      %813 = vst.msk [vmem:[%s262 + $0x24] sm:$0xf] %vm803, %v748
      %814 = vst.msk [vmem:[%s262 + $0x28] sm:$0xf] %vm803, %v749
      %815 = vst.msk [vmem:[%s262 + $0x2c] sm:$0xf] %vm803, %v750
      %816 = vst.msk [vmem:[%s262 + $0x30] sm:$0xf] %vm803, %v751
      %817 = vst.msk [vmem:[%s262 + $0x34] sm:$0xf] %vm803, %v752
      %818 = vst.msk [vmem:[%s262 + $0x38] sm:$0xf] %vm803, %v753
      %819 = vst.msk [vmem:[%s262 + $0x3c] sm:$0xf] %vm803, %v754
      %820 = vst.msk [vmem:[%s262 + $0x40] sm:$0xf] %vm803, %v755
      %821 = vst.msk [vmem:[%s262 + $0x44] sm:$0xf] %vm803, %v756
      %822 = vst.msk [vmem:[%s262 + $0x48] sm:$0xf] %vm803, %v757
      %823 = vst.msk [vmem:[%s262 + $0x4c] sm:$0xf] %vm803, %v758
      %824 = vst.msk [vmem:[%s262 + $0x50] sm:$0xf] %vm803, %v759
      %825 = vst.msk [vmem:[%s262 + $0x54] sm:$0xf] %vm803, %v760
      %826 = vst.msk [vmem:[%s262 + $0x58] sm:$0xf] %vm803, %v761
      %827 = vst.msk [vmem:[%s262 + $0x5c] sm:$0xf] %vm803, %v762
      %828 = vst.msk [vmem:[%s262 + $0x60] sm:$0xf] %vm803, %v763
      %829 = vst.msk [vmem:[%s262 + $0x64] sm:$0xf] %vm803, %v764
      %830 = vst.msk [vmem:[%s262 + $0x68] sm:$0xf] %vm803, %v765
      %831 = vst.msk [vmem:[%s262 + $0x6c] sm:$0xf] %vm803, %v766
      %832 = vst.msk [vmem:[%s262 + $0x70] sm:$0xf] %vm803, %v767
      %833 = vst.msk [vmem:[%s262 + $0x74] sm:$0xf] %vm803, %v768
      %834 = vst.msk [vmem:[%s262 + $0x78] sm:$0xf] %vm803, %v769
      %835 = vst.msk [vmem:[%s262 + $0x7c] sm:$0xf] %vm803, %v770
      %vm836 = vcmask 261120
      %v837 = vsel %vm836, %v549, 0.0
      %v838 = vsel %vm836, %v552, 0.0
      %v839 = vadd.f32 %v837, %v838
      %v840 = vsel %vm836, %v557, 0.0
      %v841 = vadd.f32 %v839, %v840
      %v842 = vsel %vm836, %v560, 0.0
      %v843 = vadd.f32 %v841, %v842
      %v844 = vsel %vm836, %v565, 0.0
      %v845 = vadd.f32 %v843, %v844
      %v846 = vsel %vm836, %v568, 0.0
      %v847 = vadd.f32 %v845, %v846
      %v848 = vsel %vm836, %v573, 0.0
      %v849 = vadd.f32 %v847, %v848
      %v850 = vsel %vm836, %v576, 0.0
      %v851 = vadd.f32 %v849, %v850
      %v852 = vsel %vm836, %v581, 0.0
      %v853 = vadd.f32 %v851, %v852
      %v854 = vsel %vm836, %v584, 0.0
      %v855 = vadd.f32 %v853, %v854
      %v856 = vsel %vm836, %v589, 0.0
      %v857 = vadd.f32 %v855, %v856
      %v858 = vsel %vm836, %v592, 0.0
      %v859 = vadd.f32 %v857, %v858
      %v860 = vsel %vm836, %v597, 0.0
      %v861 = vadd.f32 %v859, %v860
      %v862 = vsel %vm836, %v600, 0.0
      %v863 = vadd.f32 %v861, %v862
      %v864 = vsel %vm836, %v605, 0.0
      %v865 = vadd.f32 %v863, %v864
      %v866 = vsel %vm836, %v608, 0.0
      %v867 = vadd.f32 %v865, %v866
      %v868 = vsel %vm836, %v613, 0.0
      %v869 = vadd.f32 %v867, %v868
      %v870 = vsel %vm836, %v616, 0.0
      %v871 = vadd.f32 %v869, %v870
      %v872 = vsel %vm836, %v621, 0.0
      %v873 = vadd.f32 %v871, %v872
      %v874 = vsel %vm836, %v624, 0.0
      %v875 = vadd.f32 %v873, %v874
      %v876 = vsel %vm836, %v629, 0.0
      %v877 = vadd.f32 %v875, %v876
      %v878 = vsel %vm836, %v632, 0.0
      %v879 = vadd.f32 %v877, %v878
      %v880 = vsel %vm836, %v637, 0.0
      %v881 = vadd.f32 %v879, %v880
      %v882 = vsel %vm836, %v640, 0.0
      %v883 = vadd.f32 %v881, %v882
      %v884 = vsel %vm836, %v645, 0.0
      %v885 = vadd.f32 %v883, %v884
      %v886 = vsel %vm836, %v648, 0.0
      %v887 = vadd.f32 %v885, %v886
      %v888 = vsel %vm836, %v653, 0.0
      %v889 = vadd.f32 %v887, %v888
      %v890 = vsel %vm836, %v656, 0.0
      %v891 = vadd.f32 %v889, %v890
      %v892 = vsel %vm836, %v661, 0.0
      %v893 = vadd.f32 %v891, %v892
      %v894 = vsel %vm836, %v664, 0.0
      %v895 = vadd.f32 %v893, %v894
      %v896 = vsel %vm836, %v669, 0.0
      %v897 = vadd.f32 %v895, %v896
      %v898 = vsel %vm836, %v672, 0.0
      %v899 = vadd.f32 %v897, %v898
      %v900 = vrot.slane %v899, 4
      %v901 = vadd.f32 %v899, %v900
      %v902 = vrot.slane %v901, 2
      %v903 = vadd.f32 %v901, %v902
      %v904 = vrot.slane %v903, 1
      %v905 = vadd.f32 %v903, %v904
      %vm906 = vcmask 253952
      %907 = vst.msk [vmem:[%s265] sm:$0x1] %vm906, %v905
      %v908 = vmul.f32 %v549, %v549
      %v909 = vmul.f32 %v552, %v552
      %v910 = vmul.f32 %v557, %v557
      %v911 = vmul.f32 %v560, %v560
      %v912 = vmul.f32 %v565, %v565
      %v913 = vmul.f32 %v568, %v568
      %v914 = vmul.f32 %v573, %v573
      %v915 = vmul.f32 %v576, %v576
      %v916 = vmul.f32 %v581, %v581
      %v917 = vmul.f32 %v584, %v584
      %v918 = vmul.f32 %v589, %v589
      %v919 = vmul.f32 %v592, %v592
      %v920 = vmul.f32 %v597, %v597
      %v921 = vmul.f32 %v600, %v600
      %v922 = vmul.f32 %v605, %v605
      %v923 = vmul.f32 %v608, %v608
      %v924 = vmul.f32 %v613, %v613
      %v925 = vmul.f32 %v616, %v616
      %v926 = vmul.f32 %v621, %v621
      %v927 = vmul.f32 %v624, %v624
      %v928 = vmul.f32 %v629, %v629
      %v929 = vmul.f32 %v632, %v632
      %v930 = vmul.f32 %v637, %v637
      %v931 = vmul.f32 %v640, %v640
      %v932 = vmul.f32 %v645, %v645
      %v933 = vmul.f32 %v648, %v648
      %v934 = vmul.f32 %v653, %v653
      %v935 = vmul.f32 %v656, %v656
      %v936 = vmul.f32 %v661, %v661
      %v937 = vmul.f32 %v664, %v664
      %v938 = vmul.f32 %v669, %v669
      %v939 = vmul.f32 %v672, %v672
      %v940 = vsel %vm836, %v908, 0.0
      %v941 = vsel %vm836, %v909, 0.0
      %v942 = vadd.f32 %v940, %v941
      %v943 = vsel %vm836, %v910, 0.0
      %v944 = vadd.f32 %v942, %v943
      %v945 = vsel %vm836, %v911, 0.0
      %v946 = vadd.f32 %v944, %v945
      %v947 = vsel %vm836, %v912, 0.0
      %v948 = vadd.f32 %v946, %v947
      %v949 = vsel %vm836, %v913, 0.0
      %v950 = vadd.f32 %v948, %v949
      %v951 = vsel %vm836, %v914, 0.0
      %v952 = vadd.f32 %v950, %v951
      %v953 = vsel %vm836, %v915, 0.0
      %v954 = vadd.f32 %v952, %v953
      %v955 = vsel %vm836, %v916, 0.0
      %v956 = vadd.f32 %v954, %v955
      %v957 = vsel %vm836, %v917, 0.0
      %v958 = vadd.f32 %v956, %v957
      %v959 = vsel %vm836, %v918, 0.0
      %v960 = vadd.f32 %v958, %v959
      %v961 = vsel %vm836, %v919, 0.0
      %v962 = vadd.f32 %v960, %v961
      %v963 = vsel %vm836, %v920, 0.0
      %v964 = vadd.f32 %v962, %v963
      %v965 = vsel %vm836, %v921, 0.0
      %v966 = vadd.f32 %v964, %v965
      %v967 = vsel %vm836, %v922, 0.0
      %v968 = vadd.f32 %v966, %v967
      %v969 = vsel %vm836, %v923, 0.0
      %v970 = vadd.f32 %v968, %v969
      %v971 = vsel %vm836, %v924, 0.0
      %v972 = vadd.f32 %v970, %v971
      %v973 = vsel %vm836, %v925, 0.0
      %v974 = vadd.f32 %v972, %v973
      %v975 = vsel %vm836, %v926, 0.0
      %v976 = vadd.f32 %v974, %v975
      %v977 = vsel %vm836, %v927, 0.0
      %v978 = vadd.f32 %v976, %v977
      %v979 = vsel %vm836, %v928, 0.0
      %v980 = vadd.f32 %v978, %v979
      %v981 = vsel %vm836, %v929, 0.0
      %v982 = vadd.f32 %v980, %v981
      %v983 = vsel %vm836, %v930, 0.0
      %v984 = vadd.f32 %v982, %v983
      %v985 = vsel %vm836, %v931, 0.0
      %v986 = vadd.f32 %v984, %v985
      %v987 = vsel %vm836, %v932, 0.0
      %v988 = vadd.f32 %v986, %v987
      %v989 = vsel %vm836, %v933, 0.0
      %v990 = vadd.f32 %v988, %v989
      %v991 = vsel %vm836, %v934, 0.0
      %v992 = vadd.f32 %v990, %v991
      %v993 = vsel %vm836, %v935, 0.0
      %v994 = vadd.f32 %v992, %v993
      %v995 = vsel %vm836, %v936, 0.0
      %v996 = vadd.f32 %v994, %v995
      %v997 = vsel %vm836, %v937, 0.0
      %v998 = vadd.f32 %v996, %v997
      %v999 = vsel %vm836, %v938, 0.0
      %v1000 = vadd.f32 %v998, %v999
      %v1001 = vsel %vm836, %v939, 0.0
      %v1002 = vadd.f32 %v1000, %v1001
      %v1003 = vrot.slane %v1002, 4
      %v1004 = vadd.f32 %v1002, %v1003
      %v1005 = vrot.slane %v1004, 2
      %v1006 = vadd.f32 %v1004, %v1005
      %v1007 = vrot.slane %v1006, 1
      %v1008 = vadd.f32 %v1006, %v1007
      %1009 = vst.msk [vmem:[%s268] sm:$0x1] %vm906, %v1008
      %p1010 = scmp.lt.s32.totalorder %s18, 1
      %s1011 = scalar_select %p1010, %s18, 1
      %s1012 = smul.addr %s1011, 32
      %s1013 = smul.addr %s1012, 4
      %s1014 = scalar_lea.vmem %s4, %s1013
      %p1015 = scmp.lt.s32.totalorder %s18, 1
      %s1016 = scalar_select %p1015, %s18, 1
      %s1017 = scalar_lea.vmem %s5, %s1016
      %p1018 = scmp.lt.s32.totalorder %s18, 1
      %s1019 = scalar_select %p1018, %s18, 1
      %s1020 = scalar_lea.vmem %s6, %s1019
      // Predicated region
      $region37: #{bottleneck_forward.6} parent=35 // pred_check
        %p1021 = pneg %p125
      $region38: #{bottleneck_forward.6} parent=35 // pred_check_branch
        %1023 = sbr.rel (%p1021) target = $region40
      $region39: #{bottleneck_forward.6} parent=35 // pred_region
        _
      $region40: #{bottleneck_forward.6} parent=35 // pred_fallthru
        _
      // Predicated region
      $region41: #{bottleneck_forward.6} parent=35 // pred_check
        %p1024 = pneg %p151
      $region42: #{bottleneck_forward.6} parent=35 // pred_check_branch
        %1026 = sbr.rel (%p1024) target = $region44
      $region43: #{bottleneck_forward.6} parent=35 // pred_region
        _
      $region44: #{bottleneck_forward.6} parent=35 // pred_fallthru
        _
      // Predicated region
      $region45: #{bottleneck_forward.6} parent=35 // pred_check
        %p1027 = pneg %p177
      $region46: #{bottleneck_forward.6} parent=35 // pred_check_branch
        %1029 = sbr.rel (%p1027) target = $region48
      $region47: #{bottleneck_forward.6} parent=35 // pred_region
        _
      $region48: #{bottleneck_forward.6} parent=35 // pred_fallthru
        _
    $region36: #{bottleneck_forward.6} parent=5 // pred_fallthru
      _
    %p1030 = scmp.le.s32.totalorder 2, %s13
    // Predicated region
    $region49: #{bottleneck_forward.6} parent=5 // pred_check
      %p1031 = pneg %p1030
    $region50: #{bottleneck_forward.6} parent=5 // pred_check_branch
      %1033 = sbr.rel (%p1031) target = $region52
    $region51: #{bottleneck_forward.6} parent=5 // pred_region
      %s1034 = ssub.s32 %s13, 2
      // Predicated region
      $region53: #{bottleneck_forward.6} parent=51 // pred_check
        %p1035 = pneg %p131
      $region54: #{bottleneck_forward.6} parent=51 // pred_check_branch
        %1037 = sbr.rel (%p1035) target = $region56
      $region55: #{bottleneck_forward.6} parent=51 // pred_region
        %p1038 = scmp.lt.s32.totalorder %s19, 1
        %s1039 = scalar_select %p1038, %s19, 1
        %s1040 = smul.addr %s1039, 32
        %s1041 = smul.addr %s1040, 4
        %s1042 = scalar_lea.vmem %s4, %s1041
      $region56: #{bottleneck_forward.6} parent=51 // pred_fallthru
        _
      // Predicated region
      $region57: #{bottleneck_forward.6} parent=51 // pred_check
        %p1043 = pneg %p157
      $region58: #{bottleneck_forward.6} parent=51 // pred_check_branch
        %1045 = sbr.rel (%p1043) target = $region60
      $region59: #{bottleneck_forward.6} parent=51 // pred_region
        %p1046 = scmp.lt.s32.totalorder %s19, 1
        %s1047 = scalar_select %p1046, %s19, 1
        %s1048 = scalar_lea.vmem %s5, %s1047
      $region60: #{bottleneck_forward.6} parent=51 // pred_fallthru
        _
      // Predicated region
      $region61: #{bottleneck_forward.6} parent=51 // pred_check
        %p1049 = pneg %p183
      $region62: #{bottleneck_forward.6} parent=51 // pred_check_branch
        %1051 = sbr.rel (%p1049) target = $region64
      $region63: #{bottleneck_forward.6} parent=51 // pred_region
        %p1052 = scmp.lt.s32.totalorder %s19, 1
        %s1053 = scalar_select %p1052, %s19, 1
        %s1054 = scalar_lea.vmem %s6, %s1053
      $region64: #{bottleneck_forward.6} parent=51 // pred_fallthru
        _
    $region52: #{bottleneck_forward.6} parent=5 // pred_fallthru
      _
  $region6: #{bottleneck_forward.6} parent=0 // loop_footer
    %s17 = sadd.s32 1, %s13
  $region7: #{bottleneck_forward.6} parent=0 // loop_footer_branch
    %12 = sbr.rel target = $region3
  $region8: #{bottleneck_forward.6} parent=0 // loop_exit
    _

// kernel: bottleneck_forward.5
$region0: #{bottleneck_forward.5}
  #allocation0 [shape = 'u32[]', space=smem, size = 0x4, offset = 0x4, fixed_abs, tag = 'smem constant byte address 0x4 - core index']
  #allocation1 [shape = 'u32[144,128]{1,0:T(1,128)}', space=vmem, size = 0x12000, scoped, tag = 'internal scratch']
  #allocation2 [shape = 'bf16[1,18,18,8]{3,2,1,0:T(8,128)(2,1)}', space=vmem, size = 0x1b000, scoped, tag = 'scratch operand']
  %s0 = inlined_call_operand.vmem [shape: bf16[2,16,16,8], index: 0, kind: input, shape index: {}]
  %s1 = inlined_call_operand.vmem [shape: f32[1,8], index: 1, kind: input, shape index: {}]
  %s2 = inlined_call_operand.vmem [shape: f32[1,8], index: 2, kind: input, shape index: {}]
  %s3 = inlined_call_operand.vmem [shape: bf16[3,24,8], index: 3, kind: input, shape index: {}]
  %s4 = inlined_call_operand.vmem [shape: bf16[2,16,16,8], index: 4, kind: output, shape index: {0}]
  %s5 = inlined_call_operand.vmem [shape: f32[2,1,8], index: 5, kind: output, shape index: {1}]
  %s6 = inlined_call_operand.vmem [shape: f32[2,1,8], index: 6, kind: output, shape index: {2}]
  %7 = xla_tuple %s4, %s5, %s6
  %s8 = sld [smem:[#allocation0]]
  $region65: #{bottleneck_forward.5} parent=0
    _
  %s10 = ssub.s32 1, %s8
  %s11 = scalar_select 0, %s10, %s8
  loop: start=0, step=1, limit=4
  $region2: #{bottleneck_forward.5} parent=0 // loop_pre_header
    _
  $region3: #{bottleneck_forward.5} parent=0 // loop_header
    %s13 = sphi 0, %s17
    %p14 = scmp.ge.s32.totalorder %s13, 4
    %s23 = sphi 0, %s25
    %s26 = sphi 0, %s23
    %s27 = sphi 0, %s26
    %s43 = sphi 0, %s27
    %s47 = sphi 0, %s47
    %s49 = sphi 0, %s47
    %s50 = sphi 0, %s49
    %s64 = sphi 0, %s50
    %s68 = sphi 0, %s68
    %s70 = sphi 0, %s68
    %s71 = sphi 0, %s70
    %s85 = sphi 0, %s71
    %s89 = sphi 0, %s89
    %s91 = sphi 0, %s89
    %s92 = sphi 0, %s91
    %s106 = sphi 0, %s92
    %s112 = sphi 0, %s114
    %s115 = sphi 0, %s112
    %s116 = sphi 0, %s115
    %s132 = sphi 0, %s116
    %s138 = sphi 0, %s140
    %s141 = sphi 0, %s138
    %s142 = sphi 0, %s141
    %s158 = sphi 0, %s142
    %s164 = sphi 0, %s166
    %s167 = sphi 0, %s164
    %s168 = sphi 0, %s167
    %s184 = sphi 0, %s168
  $region4: #{bottleneck_forward.5} parent=0 // loop_header_branch
    %16 = sbr.rel (%p14) target = $region8
  $region5: #{bottleneck_forward.5} parent=0 // loop_body
    %s18 = ssub.s32 %s13, 1
    %s19 = ssub.s32 %s13, 2
    %s20 = sadd.s32 %s13, 1
    %s21 = ssub.s32 %s13, %s20
    %p22 = scmp.eq.s32.totalorder %s21, 0
    %s24 = sadd.s32 %s23, 1
    %s25 = scalar_select %p22, %s23, %s24
    %p28 = pneg %p22
    %p29 = scmp.eq.s32.totalorder %s13, 1
    %p30 = por %p28, %p29
    %p31 = scmp.ne.s32.totalorder %s23, %s26
    %p32 = scmp.eq.s32.totalorder %s13, 0
    %p33 = por %p31, %p32
    %p34 = scmp.ne.s32.totalorder %s23, %s26
    %p35 = scmp.eq.s32.totalorder %s18, 1
    %p36 = por %p34, %p35
    %p37 = scmp.ne.s32.totalorder %s26, %s27
    %p38 = scmp.eq.s32.totalorder %s18, 0
    %p39 = por %p37, %p38
    %p40 = scmp.ne.s32.totalorder %s26, %s27
    %p41 = scmp.eq.s32.totalorder %s19, 1
    %p42 = por %p40, %p41
    %p44 = scmp.ne.s32.totalorder %s27, %s43
    %p45 = scmp.eq.s32.totalorder %s19, 0
    %p46 = por %p44, %p45
    %s48 = sadd.s32 %s47, 1
    %p51 = scmp.eq.s32.totalorder %s13, 1
    %p52 = scmp.ne.s32.totalorder %s47, %s49
    %p53 = scmp.eq.s32.totalorder %s13, 0
    %p54 = por %p52, %p53
    %p55 = scmp.ne.s32.totalorder %s47, %s49
    %p56 = scmp.eq.s32.totalorder %s18, 1
    %p57 = por %p55, %p56
    %p58 = scmp.ne.s32.totalorder %s49, %s50
    %p59 = scmp.eq.s32.totalorder %s18, 0
    %p60 = por %p58, %p59
    %p61 = scmp.ne.s32.totalorder %s49, %s50
    %p62 = scmp.eq.s32.totalorder %s19, 1
    %p63 = por %p61, %p62
    %p65 = scmp.ne.s32.totalorder %s50, %s64
    %p66 = scmp.eq.s32.totalorder %s19, 0
    %p67 = por %p65, %p66
    %s69 = sadd.s32 %s68, 1
    %p72 = scmp.eq.s32.totalorder %s13, 1
    %p73 = scmp.ne.s32.totalorder %s68, %s70
    %p74 = scmp.eq.s32.totalorder %s13, 0
    %p75 = por %p73, %p74
    %p76 = scmp.ne.s32.totalorder %s68, %s70
    %p77 = scmp.eq.s32.totalorder %s18, 1
    %p78 = por %p76, %p77
    %p79 = scmp.ne.s32.totalorder %s70, %s71
    %p80 = scmp.eq.s32.totalorder %s18, 0
    %p81 = por %p79, %p80
    %p82 = scmp.ne.s32.totalorder %s70, %s71
    %p83 = scmp.eq.s32.totalorder %s19, 1
    %p84 = por %p82, %p83
    %p86 = scmp.ne.s32.totalorder %s71, %s85
    %p87 = scmp.eq.s32.totalorder %s19, 0
    %p88 = por %p86, %p87
    %s90 = sadd.s32 %s89, 1
    %p93 = scmp.eq.s32.totalorder %s13, 1
    %p94 = scmp.ne.s32.totalorder %s89, %s91
    %p95 = scmp.eq.s32.totalorder %s13, 0
    %p96 = por %p94, %p95
    %p97 = scmp.ne.s32.totalorder %s89, %s91
    %p98 = scmp.eq.s32.totalorder %s18, 1
    %p99 = por %p97, %p98
    %p100 = scmp.ne.s32.totalorder %s91, %s92
    %p101 = scmp.eq.s32.totalorder %s18, 0
    %p102 = por %p100, %p101
    %p103 = scmp.ne.s32.totalorder %s91, %s92
    %p104 = scmp.eq.s32.totalorder %s19, 1
    %p105 = por %p103, %p104
    %p107 = scmp.ne.s32.totalorder %s92, %s106
    %p108 = scmp.eq.s32.totalorder %s19, 0
    %p109 = por %p107, %p108
    %s110 = ssub.s32 %s13, %s20
    %p111 = scmp.eq.s32.totalorder %s110, 0
    %s113 = sadd.s32 %s112, 1
    %s114 = scalar_select %p111, %s112, %s113
    %p117 = pneg %p111
    %p118 = scmp.eq.s32.totalorder %s13, 1
    %p119 = por %p117, %p118
    %p120 = scmp.ne.s32.totalorder %s112, %s115
    %p121 = scmp.eq.s32.totalorder %s13, 0
    %p122 = por %p120, %p121
    %p123 = scmp.ne.s32.totalorder %s112, %s115
    %p124 = scmp.eq.s32.totalorder %s18, 1
    %p125 = por %p123, %p124
    %p126 = scmp.ne.s32.totalorder %s115, %s116
    %p127 = scmp.eq.s32.totalorder %s18, 0
    %p128 = por %p126, %p127
    %p129 = scmp.ne.s32.totalorder %s115, %s116
    %p130 = scmp.eq.s32.totalorder %s19, 1
    %p131 = por %p129, %p130
    %p133 = scmp.ne.s32.totalorder %s116, %s132
    %p134 = scmp.eq.s32.totalorder %s19, 0
    %p135 = por %p133, %p134
    %s136 = ssub.s32 %s13, %s20
    %p137 = scmp.eq.s32.totalorder %s136, 0
    %s139 = sadd.s32 %s138, 1
    %s140 = scalar_select %p137, %s138, %s139
    %p143 = pneg %p137
    %p144 = scmp.eq.s32.totalorder %s13, 1
    %p145 = por %p143, %p144
    %p146 = scmp.ne.s32.totalorder %s138, %s141
    %p147 = scmp.eq.s32.totalorder %s13, 0
    %p148 = por %p146, %p147
    %p149 = scmp.ne.s32.totalorder %s138, %s141
    %p150 = scmp.eq.s32.totalorder %s18, 1
    %p151 = por %p149, %p150
    %p152 = scmp.ne.s32.totalorder %s141, %s142
    %p153 = scmp.eq.s32.totalorder %s18, 0
    %p154 = por %p152, %p153
    %p155 = scmp.ne.s32.totalorder %s141, %s142
    %p156 = scmp.eq.s32.totalorder %s19, 1
    %p157 = por %p155, %p156
    %p159 = scmp.ne.s32.totalorder %s142, %s158
    %p160 = scmp.eq.s32.totalorder %s19, 0
    %p161 = por %p159, %p160
    %s162 = ssub.s32 %s13, %s20
    %p163 = scmp.eq.s32.totalorder %s162, 0
    %s165 = sadd.s32 %s164, 1
    %s166 = scalar_select %p163, %s164, %s165
    %p169 = pneg %p163
    %p170 = scmp.eq.s32.totalorder %s13, 1
    %p171 = por %p169, %p170
    %p172 = scmp.ne.s32.totalorder %s164, %s167
    %p173 = scmp.eq.s32.totalorder %s13, 0
    %p174 = por %p172, %p173
    %p175 = scmp.ne.s32.totalorder %s164, %s167
    %p176 = scmp.eq.s32.totalorder %s18, 1
    %p177 = por %p175, %p176
    %p178 = scmp.ne.s32.totalorder %s167, %s168
    %p179 = scmp.eq.s32.totalorder %s18, 0
    %p180 = por %p178, %p179
    %p181 = scmp.ne.s32.totalorder %s167, %s168
    %p182 = scmp.eq.s32.totalorder %s19, 1
    %p183 = por %p181, %p182
    %p185 = scmp.ne.s32.totalorder %s168, %s184
    %p186 = scmp.eq.s32.totalorder %s19, 0
    %p187 = por %p185, %p186
    %p188 = scmp.le.s32.totalorder 1, %s13
    %p189 = scmp.lt.s32.totalorder %s13, 3
    %p190 = pnand %p188, %p189
    %p191 = pneg %p190
    // Predicated region
    $region9: #{bottleneck_forward.5} parent=5 // pred_check
      _
    $region10: #{bottleneck_forward.5} parent=5 // pred_check_branch
      %193 = sbr.rel (%p190) target = $region12
    $region11: #{bottleneck_forward.5} parent=5 // pred_region
      %s194 = ssub.s32 %s13, 1
      // Predicated region
      $region13: #{bottleneck_forward.5} parent=11 // pred_check
        %p195 = pneg %p60
      $region14: #{bottleneck_forward.5} parent=11 // pred_check_branch
        %197 = sbr.rel (%p195) target = $region16
      $region15: #{bottleneck_forward.5} parent=11 // pred_region
        _
      $region16: #{bottleneck_forward.5} parent=11 // pred_fallthru
        _
      // Predicated region
      $region17: #{bottleneck_forward.5} parent=11 // pred_check
        %p198 = pneg %p81
      $region18: #{bottleneck_forward.5} parent=11 // pred_check_branch
        %200 = sbr.rel (%p198) target = $region20
      $region19: #{bottleneck_forward.5} parent=11 // pred_region
        _
      $region20: #{bottleneck_forward.5} parent=11 // pred_fallthru
        _
      // Predicated region
      $region21: #{bottleneck_forward.5} parent=11 // pred_check
        %p201 = pneg %p102
      $region22: #{bottleneck_forward.5} parent=11 // pred_check_branch
        %203 = sbr.rel (%p201) target = $region24
      $region23: #{bottleneck_forward.5} parent=11 // pred_region
        _
      $region24: #{bottleneck_forward.5} parent=11 // pred_fallthru
        _
    $region12: #{bottleneck_forward.5} parent=5 // pred_fallthru
      _
    %p204 = scmp.lt.s32.totalorder %s13, 2
    // Predicated region
    $region25: #{bottleneck_forward.5} parent=5 // pred_check
      %p205 = pneg %p204
    $region26: #{bottleneck_forward.5} parent=5 // pred_check_branch
      %207 = sbr.rel (%p205) target = $region28
    $region27: #{bottleneck_forward.5} parent=5 // pred_region
      // Predicated region
      $region29: #{bottleneck_forward.5} parent=27 // pred_check
        %p208 = pneg %p33
      $region30: #{bottleneck_forward.5} parent=27 // pred_check_branch
        %210 = sbr.rel (%p208) target = $region32
      $region31: #{bottleneck_forward.5} parent=27 // pred_region
        %p211 = scmp.lt.s32.totalorder %s13, 1
        %s212 = scalar_select %p211, %s13, 1
        %s213 = smul.addr %s212, 32
        %s214 = smul.addr %s213, 4
        %s215 = scalar_lea.vmem %s0, %s214
      $region32: #{bottleneck_forward.5} parent=27 // pred_fallthru
        _
    $region28: #{bottleneck_forward.5} parent=5 // pred_fallthru
      _
    %p216 = scmp.le.s32.totalorder 1, %s13
    %p217 = scmp.lt.s32.totalorder %s13, 3
    %p218 = pnand %p216, %p217
    %p219 = pneg %p218
    // Predicated region
    $region33: #{bottleneck_forward.5} parent=5 // pred_check
      _
    $region34: #{bottleneck_forward.5} parent=5 // pred_check_branch
      %221 = sbr.rel (%p218) target = $region36
    $region35: #{bottleneck_forward.5} parent=5 // pred_region
      %s222 = ssub.s32 %s13, 1
      %p223 = scmp.lt.s32.totalorder %s18, 1
      %s224 = scalar_select %p223, %s18, 1
      %s225 = smul.addr %s224, 32
      %s226 = smul.addr %s225, 4
      %s227 = scalar_lea.vmem %s0, %s226
      %p228 = pneg %p39
      %p229 = pneg %p36
      %p230 = pneg %p60
      %p231 = pneg %p57
      %p232 = pneg %p81
      %p233 = pneg %p78
      %p234 = pneg %p102
      %p235 = pneg %p99
      %p236 = pneg %p128
      %p237 = pneg %p125
      %p238 = scmp.lt.s32.totalorder %s18, 1
      %s239 = scalar_select %p238, %s18, 1
      %s240 = smul.addr %s239, 32
      %s241 = smul.addr %s240, 4
      %s242 = scalar_lea.vmem %s4, %s241
      %p243 = pneg %p154
      %p244 = pneg %p151
      %p245 = scmp.lt.s32.totalorder %s18, 1
      %s246 = scalar_select %p245, %s18, 1
      %s247 = scalar_lea.vmem %s5, %s246
      %p248 = pneg %p180
      %p249 = pneg %p177
      %p250 = scmp.lt.s32.totalorder %s18, 1
      %s251 = scalar_select %p250, %s18, 1
      %s252 = scalar_lea.vmem %s6, %s251
      %p253 = scmp.lt.s32.totalorder %s18, 1
      %s254 = scalar_select %p253, %s18, 1
      %s255 = smul.addr %s254, 32
      %s256 = smul.addr %s255, 4
      %s257 = scalar_lea.vmem %s0, %s256
      %p258 = scmp.lt.s32.totalorder %s18, 1
      %s259 = scalar_select %p258, %s18, 1
      %s260 = smul.addr %s259, 32
      %s261 = smul.addr %s260, 4
      %s262 = scalar_lea.vmem %s4, %s261
      %p263 = scmp.lt.s32.totalorder %s18, 1
      %s264 = scalar_select %p263, %s18, 1
      %s265 = scalar_lea.vmem %s5, %s264
      %p266 = scmp.lt.s32.totalorder %s18, 1
      %s267 = scalar_select %p266, %s18, 1
      %s268 = scalar_lea.vmem %s6, %s267
      %vm270 = vcmask 60416
      %271 = vst.msk [vmem:[#allocation2] sm:$0xf] %vm270, 0
      %272 = vst.msk [vmem:[#allocation2 + $0x4] sm:$0xf] %vm270, 0
      %vm273 = vcmask 57344
      %274 = vst.msk [vmem:[#allocation2 + $0x8] sm:$0x1] %vm273, 0
      %s275 = scalar_lea.vmem [#allocation2], 204
      %276 = vst.msk [vmem:[%s275] sm:$0xf] %vm270, 0
      %277 = vst.msk [vmem:[%s275 + $0x4] sm:$0xf] %vm270, 0
      %278 = vst.msk [vmem:[%s275 + $0x8] sm:$0x1] %vm273, 0
      %s279 = scalar_lea.vmem [#allocation2], 12
      %vm280 = vcmask 57344
      %vm281 = vsmask.f32 256
      %vm282 = vmand %vm280, %vm281
      %v283 = vld [vmem:[%s279] sm:$0x1]
      %v284 = vsel %vm282, 0, %v283
      %285 = vst [vmem:[%s279] sm:$0x1] %v284
      %v286 = vld [vmem:[%s279 + $0xc] sm:$0x1]
      %v287 = vsel %vm282, 0, %v286
      %288 = vst [vmem:[%s279 + $0xc] sm:$0x1] %v287
      %v289 = vld [vmem:[%s279 + $0x18] sm:$0x1]
      %v290 = vsel %vm282, 0, %v289
      %291 = vst [vmem:[%s279 + $0x18] sm:$0x1] %v290
      %v292 = vld [vmem:[%s279 + $0x24] sm:$0x1]
      %v293 = vsel %vm282, 0, %v292
      %294 = vst [vmem:[%s279 + $0x24] sm:$0x1] %v293
      %v295 = vld [vmem:[%s279 + $0x30] sm:$0x1]
      %v296 = vsel %vm282, 0, %v295
      %297 = vst [vmem:[%s279 + $0x30] sm:$0x1] %v296
      %v298 = vld [vmem:[%s279 + $0x3c] sm:$0x1]
      %v299 = vsel %vm282, 0, %v298
      %300 = vst [vmem:[%s279 + $0x3c] sm:$0x1] %v299
      %v301 = vld [vmem:[%s279 + $0x48] sm:$0x1]
      %v302 = vsel %vm282, 0, %v301
      %303 = vst [vmem:[%s279 + $0x48] sm:$0x1] %v302
      %v304 = vld [vmem:[%s279 + $0x54] sm:$0x1]
      %v305 = vsel %vm282, 0, %v304
      %306 = vst [vmem:[%s279 + $0x54] sm:$0x1] %v305
      %v307 = vld [vmem:[%s279 + $0x60] sm:$0x1]
      %v308 = vsel %vm282, 0, %v307
      %309 = vst [vmem:[%s279 + $0x60] sm:$0x1] %v308
      %v310 = vld [vmem:[%s279 + $0x6c] sm:$0x1]
      %v311 = vsel %vm282, 0, %v310
      %312 = vst [vmem:[%s279 + $0x6c] sm:$0x1] %v311
      %v313 = vld [vmem:[%s279 + $0x78] sm:$0x1]
      %v314 = vsel %vm282, 0, %v313
      %315 = vst [vmem:[%s279 + $0x78] sm:$0x1] %v314
      %v316 = vld [vmem:[%s279 + $0x84] sm:$0x1]
      %v317 = vsel %vm282, 0, %v316
      %318 = vst [vmem:[%s279 + $0x84] sm:$0x1] %v317
      %v319 = vld [vmem:[%s279 + $0x90] sm:$0x1]
      %v320 = vsel %vm282, 0, %v319
      %321 = vst [vmem:[%s279 + $0x90] sm:$0x1] %v320
      %v322 = vld [vmem:[%s279 + $0x9c] sm:$0x1]
      %v323 = vsel %vm282, 0, %v322
      %324 = vst [vmem:[%s279 + $0x9c] sm:$0x1] %v323
      %v325 = vld [vmem:[%s279 + $0xa8] sm:$0x1]
      %v326 = vsel %vm282, 0, %v325
      %327 = vst [vmem:[%s279 + $0xa8] sm:$0x1] %v326
      %v328 = vld [vmem:[%s279 + $0xb4] sm:$0x1]
      %v329 = vsel %vm282, 0, %v328
      %330 = vst [vmem:[%s279 + $0xb4] sm:$0x1] %v329
      %vm331 = vsmask.f32 7938
      %vm332 = vmand %vm280, %vm331
      %v333 = vld [vmem:[%s279 + $0x8] sm:$0x1]
      %v334 = vsel %vm332, 0, %v333
      %335 = vst [vmem:[%s279 + $0x8] sm:$0x1] %v334
      %v336 = vld [vmem:[%s279 + $0x14] sm:$0x1]
      %v337 = vsel %vm332, 0, %v336
      %338 = vst [vmem:[%s279 + $0x14] sm:$0x1] %v337
      %v339 = vld [vmem:[%s279 + $0x20] sm:$0x1]
      %v340 = vsel %vm332, 0, %v339
      %341 = vst [vmem:[%s279 + $0x20] sm:$0x1] %v340
      %v342 = vld [vmem:[%s279 + $0x2c] sm:$0x1]
      %v343 = vsel %vm332, 0, %v342
      %344 = vst [vmem:[%s279 + $0x2c] sm:$0x1] %v343
      %v345 = vld [vmem:[%s279 + $0x38] sm:$0x1]
      %v346 = vsel %vm332, 0, %v345
      %347 = vst [vmem:[%s279 + $0x38] sm:$0x1] %v346
      %v348 = vld [vmem:[%s279 + $0x44] sm:$0x1]
      %v349 = vsel %vm332, 0, %v348
      %350 = vst [vmem:[%s279 + $0x44] sm:$0x1] %v349
      %v351 = vld [vmem:[%s279 + $0x50] sm:$0x1]
      %v352 = vsel %vm332, 0, %v351
      %353 = vst [vmem:[%s279 + $0x50] sm:$0x1] %v352
      %v354 = vld [vmem:[%s279 + $0x5c] sm:$0x1]
      %v355 = vsel %vm332, 0, %v354
      %356 = vst [vmem:[%s279 + $0x5c] sm:$0x1] %v355
      %v357 = vld [vmem:[%s279 + $0x68] sm:$0x1]
      %v358 = vsel %vm332, 0, %v357
      %359 = vst [vmem:[%s279 + $0x68] sm:$0x1] %v358
      %v360 = vld [vmem:[%s279 + $0x74] sm:$0x1]
      %v361 = vsel %vm332, 0, %v360
      %362 = vst [vmem:[%s279 + $0x74] sm:$0x1] %v361
      %v363 = vld [vmem:[%s279 + $0x80] sm:$0x1]
      %v364 = vsel %vm332, 0, %v363
      %365 = vst [vmem:[%s279 + $0x80] sm:$0x1] %v364
      %v366 = vld [vmem:[%s279 + $0x8c] sm:$0x1]
      %v367 = vsel %vm332, 0, %v366
      %368 = vst [vmem:[%s279 + $0x8c] sm:$0x1] %v367
      %v369 = vld [vmem:[%s279 + $0x98] sm:$0x1]
      %v370 = vsel %vm332, 0, %v369
      %371 = vst [vmem:[%s279 + $0x98] sm:$0x1] %v370
      %v372 = vld [vmem:[%s279 + $0xa4] sm:$0x1]
      %v373 = vsel %vm332, 0, %v372
      %374 = vst [vmem:[%s279 + $0xa4] sm:$0x1] %v373
      %v375 = vld [vmem:[%s279 + $0xb0] sm:$0x1]
      %v376 = vsel %vm332, 0, %v375
      %377 = vst [vmem:[%s279 + $0xb0] sm:$0x1] %v376
      %v378 = vld [vmem:[%s279 + $0xbc] sm:$0x1]
      %v379 = vsel %vm332, 0, %v378
      %380 = vst [vmem:[%s279 + $0xbc] sm:$0x1] %v379
      %v381 = vld [vmem:[%s1] sm:$0x1]
      %v382 = vld [vmem:[%s2] sm:$0x1]
      %v383 = vld [vmem:[%s257] sm:$0xf]
      %v384 = vld [vmem:[%s257 + $0x4] sm:$0xf]
      %v385 = vld [vmem:[%s257 + $0x8] sm:$0xf]
      %v386 = vld [vmem:[%s257 + $0xc] sm:$0xf]
      %v387 = vld [vmem:[%s257 + $0x10] sm:$0xf]
      %v388 = vld [vmem:[%s257 + $0x14] sm:$0xf]
      %v389 = vld [vmem:[%s257 + $0x18] sm:$0xf]
      %v390 = vld [vmem:[%s257 + $0x1c] sm:$0xf]
      %v391 = vld [vmem:[%s257 + $0x20] sm:$0xf]
      %v392 = vld [vmem:[%s257 + $0x24] sm:$0xf]
      %v393 = vld [vmem:[%s257 + $0x28] sm:$0xf]
      %v394 = vld [vmem:[%s257 + $0x2c] sm:$0xf]
      %v395 = vld [vmem:[%s257 + $0x30] sm:$0xf]
      %v396 = vld [vmem:[%s257 + $0x34] sm:$0xf]
      %v397 = vld [vmem:[%s257 + $0x38] sm:$0xf]
      %v398 = vld [vmem:[%s257 + $0x3c] sm:$0xf]
      %v399 = vld [vmem:[%s257 + $0x40] sm:$0xf]
      %v400 = vld [vmem:[%s257 + $0x44] sm:$0xf]
      %v401 = vld [vmem:[%s257 + $0x48] sm:$0xf]
      %v402 = vld [vmem:[%s257 + $0x4c] sm:$0xf]
      %v403 = vld [vmem:[%s257 + $0x50] sm:$0xf]
      %v404 = vld [vmem:[%s257 + $0x54] sm:$0xf]
      %v405 = vld [vmem:[%s257 + $0x58] sm:$0xf]
      %v406 = vld [vmem:[%s257 + $0x5c] sm:$0xf]
      %v407 = vld [vmem:[%s257 + $0x60] sm:$0xf]
      %v408 = vld [vmem:[%s257 + $0x64] sm:$0xf]
      %v409 = vld [vmem:[%s257 + $0x68] sm:$0xf]
      %v410 = vld [vmem:[%s257 + $0x6c] sm:$0xf]
      %v411 = vld [vmem:[%s257 + $0x70] sm:$0xf]
      %v412 = vld [vmem:[%s257 + $0x74] sm:$0xf]
      %v413 = vld [vmem:[%s257 + $0x78] sm:$0xf]
      %v414 = vld [vmem:[%s257 + $0x7c] sm:$0xf]
      %v415 = vunpack.c.l.bf16 %v383
      %v416 = vunpack.c.l.bf16 %v384
      %v417 = vunpack.c.l.bf16 %v385
      %v418 = vunpack.c.l.bf16 %v386
      %v419 = vunpack.c.l.bf16 %v387
      %v420 = vunpack.c.l.bf16 %v388
      %v421 = vunpack.c.l.bf16 %v389
      %v422 = vunpack.c.l.bf16 %v390
      %v423 = vunpack.c.l.bf16 %v391
      %v424 = vunpack.c.l.bf16 %v392
      %v425 = vunpack.c.l.bf16 %v393
      %v426 = vunpack.c.l.bf16 %v394
      %v427 = vunpack.c.l.bf16 %v395
      %v428 = vunpack.c.l.bf16 %v396
      %v429 = vunpack.c.l.bf16 %v397
      %v430 = vunpack.c.l.bf16 %v398
      %v431 = vunpack.c.l.bf16 %v399
      %v432 = vunpack.c.l.bf16 %v400
      %v433 = vunpack.c.l.bf16 %v401
      %v434 = vunpack.c.l.bf16 %v402
      %v435 = vunpack.c.l.bf16 %v403
      %v436 = vunpack.c.l.bf16 %v404
      %v437 = vunpack.c.l.bf16 %v405
      %v438 = vunpack.c.l.bf16 %v406
      %v439 = vunpack.c.l.bf16 %v407
      %v440 = vunpack.c.l.bf16 %v408
      %v441 = vunpack.c.l.bf16 %v409
      %v442 = vunpack.c.l.bf16 %v410
      %v443 = vunpack.c.l.bf16 %v411
      %v444 = vunpack.c.l.bf16 %v412
      %v445 = vunpack.c.l.bf16 %v413
      %v446 = vunpack.c.l.bf16 %v414
      %v448 = vlaneseq
      %v449 = vshrl.u32 %v448, 7
      %v450 = vsub.s32 0, %v449
      %v451 = vrot.slane %v381, %v450
      %v453 = vmul.f32 %v415, %v451
      %v454 = vmul.f32 %v416, %v451
      %v455 = vmul.f32 %v417, %v451
      %v456 = vmul.f32 %v418, %v451
      %v457 = vmul.f32 %v419, %v451
      %v458 = vmul.f32 %v420, %v451
      %v459 = vmul.f32 %v421, %v451
      %v460 = vmul.f32 %v422, %v451
      %v461 = vmul.f32 %v423, %v451
      %v462 = vmul.f32 %v424, %v451
      %v463 = vmul.f32 %v425, %v451
      %v464 = vmul.f32 %v426, %v451
      %v465 = vmul.f32 %v427, %v451
      %v466 = vmul.f32 %v428, %v451
      %v467 = vmul.f32 %v429, %v451
      %v468 = vmul.f32 %v430, %v451
      %v469 = vmul.f32 %v431, %v451
      %v470 = vmul.f32 %v432, %v451
      %v471 = vmul.f32 %v433, %v451
      %v472 = vmul.f32 %v434, %v451
      %v473 = vmul.f32 %v435, %v451
      %v474 = vmul.f32 %v436, %v451
      %v475 = vmul.f32 %v437, %v451
      %v476 = vmul.f32 %v438, %v451
      %v477 = vmul.f32 %v439, %v451
      %v478 = vmul.f32 %v440, %v451
      %v479 = vmul.f32 %v441, %v451
      %v480 = vmul.f32 %v442, %v451
      %v481 = vmul.f32 %v443, %v451
      %v482 = vmul.f32 %v444, %v451
      %v483 = vmul.f32 %v445, %v451
      %v484 = vmul.f32 %v446, %v451
      %v486 = vlaneseq
      %v487 = vshrl.u32 %v486, 7
      %v488 = vsub.s32 0, %v487
      %v489 = vrot.slane %v382, %v488
      %v491 = vadd.f32 %v453, %v489
      %v492 = vadd.f32 %v454, %v489
      %v493 = vadd.f32 %v455, %v489
      %v494 = vadd.f32 %v456, %v489
      %v495 = vadd.f32 %v457, %v489
      %v496 = vadd.f32 %v458, %v489
      %v497 = vadd.f32 %v459, %v489
      %v498 = vadd.f32 %v460, %v489
      %v499 = vadd.f32 %v461, %v489
      %v500 = vadd.f32 %v462, %v489
      %v501 = vadd.f32 %v463, %v489
      %v502 = vadd.f32 %v464, %v489
      %v503 = vadd.f32 %v465, %v489
      %v504 = vadd.f32 %v466, %v489
      %v505 = vadd.f32 %v467, %v489
      %v506 = vadd.f32 %v468, %v489
      %v507 = vadd.f32 %v469, %v489
      %v508 = vadd.f32 %v470, %v489
      %v509 = vadd.f32 %v471, %v489
      %v510 = vadd.f32 %v472, %v489
      %v511 = vadd.f32 %v473, %v489
      %v512 = vadd.f32 %v474, %v489
      %v513 = vadd.f32 %v475, %v489
      %v514 = vadd.f32 %v476, %v489
      %v515 = vadd.f32 %v477, %v489
      %v516 = vadd.f32 %v478, %v489
      %v517 = vadd.f32 %v479, %v489
      %v518 = vadd.f32 %v480, %v489
      %v519 = vadd.f32 %v481, %v489
      %v520 = vadd.f32 %v482, %v489
      %v521 = vadd.f32 %v483, %v489
      %v522 = vadd.f32 %v484, %v489
      %v523 = vmax.f32 %v491, 0.0
      %v524 = vmax.f32 %v492, 0.0
      %v525 = vmax.f32 %v493, 0.0
      %v526 = vmax.f32 %v494, 0.0
      %v527 = vmax.f32 %v495, 0.0
      %v528 = vmax.f32 %v496, 0.0
      %v529 = vmax.f32 %v497, 0.0
      %v530 = vmax.f32 %v498, 0.0
      %v531 = vmax.f32 %v499, 0.0
      %v532 = vmax.f32 %v500, 0.0
      %v533 = vmax.f32 %v501, 0.0
      %v534 = vmax.f32 %v502, 0.0
      %v535 = vmax.f32 %v503, 0.0
      %v536 = vmax.f32 %v504, 0.0
      %v537 = vmax.f32 %v505, 0.0
      %v538 = vmax.f32 %v506, 0.0
      %v539 = vmax.f32 %v507, 0.0
      %v540 = vmax.f32 %v508, 0.0
      %v541 = vmax.f32 %v509, 0.0
      %v542 = vmax.f32 %v510, 0.0
      %v543 = vmax.f32 %v511, 0.0
      %v544 = vmax.f32 %v512, 0.0
      %v545 = vmax.f32 %v513, 0.0
      %v546 = vmax.f32 %v514, 0.0
      %v547 = vmax.f32 %v515, 0.0
      %v548 = vmax.f32 %v516, 0.0
      %v549 = vmax.f32 %v517, 0.0
      %v550 = vmax.f32 %v518, 0.0
      %v551 = vmax.f32 %v519, 0.0
      %v552 = vmax.f32 %v520, 0.0
      %v553 = vmax.f32 %v521, 0.0
      %v554 = vmax.f32 %v522, 0.0
      %v555 = vpack.c.bf16 %v524, %v523
      %v556 = vpack.c.bf16 %v526, %v525
      %v557 = vpack.c.bf16 %v528, %v527
      %v558 = vpack.c.bf16 %v530, %v529
      %v559 = vpack.c.bf16 %v532, %v531
      %v560 = vpack.c.bf16 %v534, %v533
      %v561 = vpack.c.bf16 %v536, %v535
      %v562 = vpack.c.bf16 %v538, %v537
      %v563 = vpack.c.bf16 %v540, %v539
      %v564 = vpack.c.bf16 %v542, %v541
      %v565 = vpack.c.bf16 %v544, %v543
      %v566 = vpack.c.bf16 %v546, %v545
      %v567 = vpack.c.bf16 %v548, %v547
      %v568 = vpack.c.bf16 %v550, %v549
      %v569 = vpack.c.bf16 %v552, %v551
      %v570 = vpack.c.bf16 %v554, %v553
      %v587 = vunpack.c.l.b16 %v555
      %v588 = vunpack.c.h.b16 %v555
      %v589 = vunpack.c.l.b16 %v556
      %v590 = vunpack.c.h.b16 %v556
      %v591 = vunpack.c.l.b16 %v557
      %v592 = vunpack.c.h.b16 %v557
      %v593 = vunpack.c.l.b16 %v558
      %v594 = vunpack.c.h.b16 %v558
      %v595 = vunpack.c.l.b16 %v559
      %v596 = vunpack.c.h.b16 %v559
      %v597 = vunpack.c.l.b16 %v560
      %v598 = vunpack.c.h.b16 %v560
      %v599 = vunpack.c.l.b16 %v561
      %v600 = vunpack.c.h.b16 %v561
      %v601 = vunpack.c.l.b16 %v562
      %v602 = vunpack.c.h.b16 %v562
      %v603 = vunpack.c.l.b16 %v563
      %v604 = vunpack.c.h.b16 %v563
      %v605 = vunpack.c.l.b16 %v564
      %v606 = vunpack.c.h.b16 %v564
      %v607 = vunpack.c.l.b16 %v565
      %v608 = vunpack.c.h.b16 %v565
      %v609 = vunpack.c.l.b16 %v566
      %v610 = vunpack.c.h.b16 %v566
      %v611 = vunpack.c.l.b16 %v567
      %v612 = vunpack.c.h.b16 %v567
      %v613 = vunpack.c.l.b16 %v568
      %v614 = vunpack.c.h.b16 %v568
      %v615 = vunpack.c.l.b16 %v569
      %v616 = vunpack.c.h.b16 %v569
      %v617 = vunpack.c.l.b16 %v570
      %v618 = vunpack.c.h.b16 %v570
      %v619 = vpack.c.b16 %v587, %v587
      %v620 = vpack.c.b16 %v588, %v588
      %v621 = vpack.c.b16 %v589, %v589
      %v622 = vpack.c.b16 %v590, %v590
      %v623 = vpack.c.b16 %v591, %v591
      %v624 = vpack.c.b16 %v592, %v592
      %v625 = vpack.c.b16 %v593, %v593
      %v626 = vpack.c.b16 %v594, %v594
      %v627 = vpack.c.b16 %v595, %v595
      %v628 = vpack.c.b16 %v596, %v596
      %v629 = vpack.c.b16 %v597, %v597
      %v630 = vpack.c.b16 %v598, %v598
      %v631 = vpack.c.b16 %v599, %v599
      %v632 = vpack.c.b16 %v600, %v600
      %v633 = vpack.c.b16 %v601, %v601
      %v634 = vpack.c.b16 %v602, %v602
      %v635 = vpack.c.b16 %v603, %v603
      %v636 = vpack.c.b16 %v604, %v604
      %v637 = vpack.c.b16 %v605, %v605
      %v638 = vpack.c.b16 %v606, %v606
      %v639 = vpack.c.b16 %v607, %v607
      %v640 = vpack.c.b16 %v608, %v608
      %v641 = vpack.c.b16 %v609, %v609
      %v642 = vpack.c.b16 %v610, %v610
      %v643 = vpack.c.b16 %v611, %v611
      %v644 = vpack.c.b16 %v612, %v612
      %v645 = vpack.c.b16 %v613, %v613
      %v646 = vpack.c.b16 %v614, %v614
      %v647 = vpack.c.b16 %v615, %v615
      %v648 = vpack.c.b16 %v616, %v616
      %v649 = vpack.c.b16 %v617, %v617
      %v650 = vpack.c.b16 %v618, %v618
      %vm651 = vsmask.f32 4368
      %vm652 = vmor %vm281, %vm651
      %v654 = vshrl.u32 %v619, 16
      %v656 = vrot.slane %v654, 7
      %v657 = vshll.u32 %v619, 16
      %v659 = vor.u32 %v656, %v657
      %v660 = vrot.slane %v656, 4
      %v662 = vshrl.u32 %v620, 16
      %v664 = vrot.slane %v662, 7
      %v665 = vshll.u32 %v620, 16
      %v667 = vor.u32 %v664, %v665
      %v668 = vsel %vm652, %v660, %v667
      %v669 = vrot.slane %v664, 4
      %v671 = vshrl.u32 %v621, 16
      %v673 = vrot.slane %v671, 7
      %v674 = vshll.u32 %v621, 16
      %v676 = vor.u32 %v673, %v674
      %v677 = vrot.slane %v673, 4
      %v679 = vshrl.u32 %v622, 16
      %v681 = vrot.slane %v679, 7
      %v682 = vshll.u32 %v622, 16
      %v684 = vor.u32 %v681, %v682
      %v685 = vsel %vm652, %v677, %v684
      %v686 = vrot.slane %v681, 4
      %v688 = vshrl.u32 %v623, 16
      %v690 = vrot.slane %v688, 7
      %v691 = vshll.u32 %v623, 16
      %v693 = vor.u32 %v690, %v691
      %v694 = vrot.slane %v690, 4
      %v696 = vshrl.u32 %v624, 16
      %v698 = vrot.slane %v696, 7
      %v699 = vshll.u32 %v624, 16
      %v701 = vor.u32 %v698, %v699
      %v702 = vsel %vm652, %v694, %v701
      %v703 = vrot.slane %v698, 4
      %v705 = vshrl.u32 %v625, 16
      %v707 = vrot.slane %v705, 7
      %v708 = vshll.u32 %v625, 16
      %v710 = vor.u32 %v707, %v708
      %v711 = vrot.slane %v707, 4
      %v713 = vshrl.u32 %v626, 16
      %v715 = vrot.slane %v713, 7
      %v716 = vshll.u32 %v626, 16
      %v718 = vor.u32 %v715, %v716
      %v719 = vsel %vm652, %v711, %v718
      %v720 = vrot.slane %v715, 4
      %v722 = vshrl.u32 %v627, 16
      %v724 = vrot.slane %v722, 7
      %v725 = vshll.u32 %v627, 16
      %v727 = vor.u32 %v724, %v725
      %v728 = vrot.slane %v724, 4
      %v730 = vshrl.u32 %v628, 16
      %v732 = vrot.slane %v730, 7
      %v733 = vshll.u32 %v628, 16
      %v735 = vor.u32 %v732, %v733
      %v736 = vsel %vm652, %v728, %v735
      %v737 = vrot.slane %v732, 4
      %v739 = vshrl.u32 %v629, 16
      %v741 = vrot.slane %v739, 7
      %v742 = vshll.u32 %v629, 16
      %v744 = vor.u32 %v741, %v742
      %v745 = vrot.slane %v741, 4
      %v747 = vshrl.u32 %v630, 16
      %v749 = vrot.slane %v747, 7
      %v750 = vshll.u32 %v630, 16
      %v752 = vor.u32 %v749, %v750
      %v753 = vsel %vm652, %v745, %v752
      %v754 = vrot.slane %v749, 4
      %v756 = vshrl.u32 %v631, 16
      %v758 = vrot.slane %v756, 7
      %v759 = vshll.u32 %v631, 16
      %v761 = vor.u32 %v758, %v759
      %v762 = vrot.slane %v758, 4
      %v764 = vshrl.u32 %v632, 16
      %v766 = vrot.slane %v764, 7
      %v767 = vshll.u32 %v632, 16
      %v769 = vor.u32 %v766, %v767
      %v770 = vsel %vm652, %v762, %v769
      %v771 = vrot.slane %v766, 4
      %v773 = vshrl.u32 %v633, 16
      %v775 = vrot.slane %v773, 7
      %v776 = vshll.u32 %v633, 16
      %v778 = vor.u32 %v775, %v776
      %v779 = vrot.slane %v775, 4
      %v781 = vshrl.u32 %v634, 16
      %v783 = vrot.slane %v781, 7
      %v784 = vshll.u32 %v634, 16
      %v786 = vor.u32 %v783, %v784
      %v787 = vsel %vm652, %v779, %v786
      %v788 = vrot.slane %v783, 4
      %v790 = vshrl.u32 %v635, 16
      %v792 = vrot.slane %v790, 7
      %v793 = vshll.u32 %v635, 16
      %v795 = vor.u32 %v792, %v793
      %v796 = vrot.slane %v792, 4
      %v798 = vshrl.u32 %v636, 16
      %v800 = vrot.slane %v798, 7
      %v801 = vshll.u32 %v636, 16
      %v803 = vor.u32 %v800, %v801
      %v804 = vsel %vm652, %v796, %v803
      %v805 = vrot.slane %v800, 4
      %v807 = vshrl.u32 %v637, 16
      %v809 = vrot.slane %v807, 7
      %v810 = vshll.u32 %v637, 16
      %v812 = vor.u32 %v809, %v810
      %v813 = vrot.slane %v809, 4
      %v815 = vshrl.u32 %v638, 16
      %v817 = vrot.slane %v815, 7
      %v818 = vshll.u32 %v638, 16
      %v820 = vor.u32 %v817, %v818
      %v821 = vsel %vm652, %v813, %v820
      %v822 = vrot.slane %v817, 4
      %v824 = vshrl.u32 %v639, 16
      %v826 = vrot.slane %v824, 7
      %v827 = vshll.u32 %v639, 16
      %v829 = vor.u32 %v826, %v827
      %v830 = vrot.slane %v826, 4
      %v832 = vshrl.u32 %v640, 16
      %v834 = vrot.slane %v832, 7
      %v835 = vshll.u32 %v640, 16
      %v837 = vor.u32 %v834, %v835
      %v838 = vsel %vm652, %v830, %v837
      %v839 = vrot.slane %v834, 4
      %v841 = vshrl.u32 %v641, 16
      %v843 = vrot.slane %v841, 7
      %v844 = vshll.u32 %v641, 16
      %v846 = vor.u32 %v843, %v844
      %v847 = vrot.slane %v843, 4
      %v849 = vshrl.u32 %v642, 16
      %v851 = vrot.slane %v849, 7
      %v852 = vshll.u32 %v642, 16
      %v854 = vor.u32 %v851, %v852
      %v855 = vsel %vm652, %v847, %v854
      %v856 = vrot.slane %v851, 4
      %v858 = vshrl.u32 %v643, 16
      %v860 = vrot.slane %v858, 7
      %v861 = vshll.u32 %v643, 16
      %v863 = vor.u32 %v860, %v861
      %v864 = vrot.slane %v860, 4
      %v866 = vshrl.u32 %v644, 16
      %v868 = vrot.slane %v866, 7
      %v869 = vshll.u32 %v644, 16
      %v871 = vor.u32 %v868, %v869
      %v872 = vsel %vm652, %v864, %v871
      %v873 = vrot.slane %v868, 4
      %v875 = vshrl.u32 %v645, 16
      %v877 = vrot.slane %v875, 7
      %v878 = vshll.u32 %v645, 16
      %v880 = vor.u32 %v877, %v878
      %v881 = vrot.slane %v877, 4
      %v883 = vshrl.u32 %v646, 16
      %v885 = vrot.slane %v883, 7
      %v886 = vshll.u32 %v646, 16
      %v888 = vor.u32 %v885, %v886
      %v889 = vsel %vm652, %v881, %v888
      %v890 = vrot.slane %v885, 4
      %v892 = vshrl.u32 %v647, 16
      %v894 = vrot.slane %v892, 7
      %v895 = vshll.u32 %v647, 16
      %v897 = vor.u32 %v894, %v895
      %v898 = vrot.slane %v894, 4
      %v900 = vshrl.u32 %v648, 16
      %v902 = vrot.slane %v900, 7
      %v903 = vshll.u32 %v648, 16
      %v905 = vor.u32 %v902, %v903
      %v906 = vsel %vm652, %v898, %v905
      %v907 = vrot.slane %v902, 4
      %v909 = vshrl.u32 %v649, 16
      %v911 = vrot.slane %v909, 7
      %v912 = vshll.u32 %v649, 16
      %v914 = vor.u32 %v911, %v912
      %v915 = vrot.slane %v911, 4
      %v917 = vshrl.u32 %v650, 16
      %v919 = vrot.slane %v917, 7
      %v920 = vshll.u32 %v650, 16
      %v922 = vor.u32 %v919, %v920
      %v923 = vsel %vm652, %v915, %v922
      %v924 = vrot.slane %v919, 4
      %vm973 = vcmask 60416
      %vm974 = vmand %vm973, %vm331
      %v975 = vld [vmem:[%s279] sm:$0xf]
      %v976 = vsel %vm974, %v659, %v975
      %977 = vst [vmem:[%s279] sm:$0xf] %v976
      %978 = vst.msk [vmem:[%s279 + $0x4] sm:$0xf] %vm270, %v668
      %v979 = vld [vmem:[%s279 + $0x8] sm:$0x1]
      %v980 = vsel %vm282, %v669, %v979
      %981 = vst [vmem:[%s279 + $0x8] sm:$0x1] %v980
      %v982 = vld [vmem:[%s279 + $0xc] sm:$0xf]
      %v983 = vsel %vm974, %v676, %v982
      %984 = vst [vmem:[%s279 + $0xc] sm:$0xf] %v983
      %985 = vst.msk [vmem:[%s279 + $0x10] sm:$0xf] %vm270, %v685
      %v986 = vld [vmem:[%s279 + $0x14] sm:$0x1]
      %v987 = vsel %vm282, %v686, %v986
      %988 = vst [vmem:[%s279 + $0x14] sm:$0x1] %v987
      %v989 = vld [vmem:[%s279 + $0x18] sm:$0xf]
      %v990 = vsel %vm974, %v693, %v989
      %991 = vst [vmem:[%s279 + $0x18] sm:$0xf] %v990
      %992 = vst.msk [vmem:[%s279 + $0x1c] sm:$0xf] %vm270, %v702
      %v993 = vld [vmem:[%s279 + $0x20] sm:$0x1]
      %v994 = vsel %vm282, %v703, %v993
      %995 = vst [vmem:[%s279 + $0x20] sm:$0x1] %v994
      %v996 = vld [vmem:[%s279 + $0x24] sm:$0xf]
      %v997 = vsel %vm974, %v710, %v996
      %998 = vst [vmem:[%s279 + $0x24] sm:$0xf] %v997
      %999 = vst.msk [vmem:[%s279 + $0x28] sm:$0xf] %vm270, %v719
      %v1000 = vld [vmem:[%s279 + $0x2c] sm:$0x1]
      %v1001 = vsel %vm282, %v720, %v1000
      %1002 = vst [vmem:[%s279 + $0x2c] sm:$0x1] %v1001
      %v1003 = vld [vmem:[%s279 + $0x30] sm:$0xf]
      %v1004 = vsel %vm974, %v727, %v1003
      %1005 = vst [vmem:[%s279 + $0x30] sm:$0xf] %v1004
      %1006 = vst.msk [vmem:[%s279 + $0x34] sm:$0xf] %vm270, %v736
      %v1007 = vld [vmem:[%s279 + $0x38] sm:$0x1]
      %v1008 = vsel %vm282, %v737, %v1007
      %1009 = vst [vmem:[%s279 + $0x38] sm:$0x1] %v1008
      %v1010 = vld [vmem:[%s279 + $0x3c] sm:$0xf]
      %v1011 = vsel %vm974, %v744, %v1010
      %1012 = vst [vmem:[%s279 + $0x3c] sm:$0xf] %v1011
      %1013 = vst.msk [vmem:[%s279 + $0x40] sm:$0xf] %vm270, %v753
      %v1014 = vld [vmem:[%s279 + $0x44] sm:$0x1]
      %v1015 = vsel %vm282, %v754, %v1014
      %1016 = vst [vmem:[%s279 + $0x44] sm:$0x1] %v1015
      %v1017 = vld [vmem:[%s279 + $0x48] sm:$0xf]
      %v1018 = vsel %vm974, %v761, %v1017
      %1019 = vst [vmem:[%s279 + $0x48] sm:$0xf] %v1018
      %1020 = vst.msk [vmem:[%s279 + $0x4c] sm:$0xf] %vm270, %v770
      %v1021 = vld [vmem:[%s279 + $0x50] sm:$0x1]
      %v1022 = vsel %vm282, %v771, %v1021
      %1023 = vst [vmem:[%s279 + $0x50] sm:$0x1] %v1022
      %v1024 = vld [vmem:[%s279 + $0x54] sm:$0xf]
      %v1025 = vsel %vm974, %v778, %v1024
      %1026 = vst [vmem:[%s279 + $0x54] sm:$0xf] %v1025
      %1027 = vst.msk [vmem:[%s279 + $0x58] sm:$0xf] %vm270, %v787
      %v1028 = vld [vmem:[%s279 + $0x5c] sm:$0x1]
      %v1029 = vsel %vm282, %v788, %v1028
      %1030 = vst [vmem:[%s279 + $0x5c] sm:$0x1] %v1029
      %v1031 = vld [vmem:[%s279 + $0x60] sm:$0xf]
      %v1032 = vsel %vm974, %v795, %v1031
      %1033 = vst [vmem:[%s279 + $0x60] sm:$0xf] %v1032
      %1034 = vst.msk [vmem:[%s279 + $0x64] sm:$0xf] %vm270, %v804
      %v1035 = vld [vmem:[%s279 + $0x68] sm:$0x1]
      %v1036 = vsel %vm282, %v805, %v1035
      %1037 = vst [vmem:[%s279 + $0x68] sm:$0x1] %v1036
      %v1038 = vld [vmem:[%s279 + $0x6c] sm:$0xf]
      %v1039 = vsel %vm974, %v812, %v1038
      %1040 = vst [vmem:[%s279 + $0x6c] sm:$0xf] %v1039
      %1041 = vst.msk [vmem:[%s279 + $0x70] sm:$0xf] %vm270, %v821
      %v1042 = vld [vmem:[%s279 + $0x74] sm:$0x1]
      %v1043 = vsel %vm282, %v822, %v1042
      %1044 = vst [vmem:[%s279 + $0x74] sm:$0x1] %v1043
      %v1045 = vld [vmem:[%s279 + $0x78] sm:$0xf]
      %v1046 = vsel %vm974, %v829, %v1045
      %1047 = vst [vmem:[%s279 + $0x78] sm:$0xf] %v1046
      %1048 = vst.msk [vmem:[%s279 + $0x7c] sm:$0xf] %vm270, %v838
      %v1049 = vld [vmem:[%s279 + $0x80] sm:$0x1]
      %v1050 = vsel %vm282, %v839, %v1049
      %1051 = vst [vmem:[%s279 + $0x80] sm:$0x1] %v1050
      %v1052 = vld [vmem:[%s279 + $0x84] sm:$0xf]
      %v1053 = vsel %vm974, %v846, %v1052
      %1054 = vst [vmem:[%s279 + $0x84] sm:$0xf] %v1053
      %1055 = vst.msk [vmem:[%s279 + $0x88] sm:$0xf] %vm270, %v855
      %v1056 = vld [vmem:[%s279 + $0x8c] sm:$0x1]
      %v1057 = vsel %vm282, %v856, %v1056
      %1058 = vst [vmem:[%s279 + $0x8c] sm:$0x1] %v1057
      %v1059 = vld [vmem:[%s279 + $0x90] sm:$0xf]
      %v1060 = vsel %vm974, %v863, %v1059
      %1061 = vst [vmem:[%s279 + $0x90] sm:$0xf] %v1060
      %1062 = vst.msk [vmem:[%s279 + $0x94] sm:$0xf] %vm270, %v872
      %v1063 = vld [vmem:[%s279 + $0x98] sm:$0x1]
      %v1064 = vsel %vm282, %v873, %v1063
      %1065 = vst [vmem:[%s279 + $0x98] sm:$0x1] %v1064
      %v1066 = vld [vmem:[%s279 + $0x9c] sm:$0xf]
      %v1067 = vsel %vm974, %v880, %v1066
      %1068 = vst [vmem:[%s279 + $0x9c] sm:$0xf] %v1067
      %1069 = vst.msk [vmem:[%s279 + $0xa0] sm:$0xf] %vm270, %v889
      %v1070 = vld [vmem:[%s279 + $0xa4] sm:$0x1]
      %v1071 = vsel %vm282, %v890, %v1070
      %1072 = vst [vmem:[%s279 + $0xa4] sm:$0x1] %v1071
      %v1073 = vld [vmem:[%s279 + $0xa8] sm:$0xf]
      %v1074 = vsel %vm974, %v897, %v1073
      %1075 = vst [vmem:[%s279 + $0xa8] sm:$0xf] %v1074
      %1076 = vst.msk [vmem:[%s279 + $0xac] sm:$0xf] %vm270, %v906
      %v1077 = vld [vmem:[%s279 + $0xb0] sm:$0x1]
      %v1078 = vsel %vm282, %v907, %v1077
      %1079 = vst [vmem:[%s279 + $0xb0] sm:$0x1] %v1078
      %v1080 = vld [vmem:[%s279 + $0xb4] sm:$0xf]
      %v1081 = vsel %vm974, %v914, %v1080
      %1082 = vst [vmem:[%s279 + $0xb4] sm:$0xf] %v1081
      %1083 = vst.msk [vmem:[%s279 + $0xb8] sm:$0xf] %vm270, %v923
      %v1084 = vld [vmem:[%s279 + $0xbc] sm:$0x1]
      %v1085 = vsel %vm282, %v924, %v1084
      %1086 = vst [vmem:[%s279 + $0xbc] sm:$0x1] %v1085
      %v1087 = vld [vmem:[#allocation2] sm:$0xf]
      %v1088 = vld [vmem:[#allocation2 + $0x4] sm:$0xf]
      %v1089 = vld [vmem:[#allocation2 + $0x8] sm:$0x1]
      %v1090 = vld [vmem:[#allocation2 + $0xc] sm:$0xf]
      %v1091 = vld [vmem:[#allocation2 + $0x10] sm:$0xf]
      %v1092 = vld [vmem:[#allocation2 + $0x14] sm:$0x1]
      %v1093 = vld [vmem:[#allocation2 + $0x18] sm:$0xf]
      %v1094 = vld [vmem:[#allocation2 + $0x1c] sm:$0xf]
      %v1095 = vld [vmem:[#allocation2 + $0x20] sm:$0x1]
      %v1096 = vld [vmem:[#allocation2 + $0x24] sm:$0xf]
      %v1097 = vld [vmem:[#allocation2 + $0x28] sm:$0xf]
      %v1098 = vld [vmem:[#allocation2 + $0x2c] sm:$0x1]
      %v1099 = vld [vmem:[#allocation2 + $0x30] sm:$0xf]
      %v1100 = vld [vmem:[#allocation2 + $0x34] sm:$0xf]
      %v1101 = vld [vmem:[#allocation2 + $0x38] sm:$0x1]
      %v1102 = vld [vmem:[#allocation2 + $0x3c] sm:$0xf]
      %v1103 = vld [vmem:[#allocation2 + $0x40] sm:$0xf]
      %v1104 = vld [vmem:[#allocation2 + $0x44] sm:$0x1]
      %v1105 = vld [vmem:[#allocation2 + $0x48] sm:$0xf]
      %v1106 = vld [vmem:[#allocation2 + $0x4c] sm:$0xf]
      %v1107 = vld [vmem:[#allocation2 + $0x50] sm:$0x1]
      %v1108 = vld [vmem:[#allocation2 + $0x54] sm:$0xf]
      %v1109 = vld [vmem:[#allocation2 + $0x58] sm:$0xf]
      %v1110 = vld [vmem:[#allocation2 + $0x5c] sm:$0x1]
      %v1111 = vld [vmem:[#allocation2 + $0x60] sm:$0xf]
      %v1112 = vld [vmem:[#allocation2 + $0x64] sm:$0xf]
      %v1113 = vld [vmem:[#allocation2 + $0x68] sm:$0x1]
      %v1114 = vld [vmem:[#allocation2 + $0x6c] sm:$0xf]
      %v1115 = vld [vmem:[#allocation2 + $0x70] sm:$0xf]
      %v1116 = vld [vmem:[#allocation2 + $0x74] sm:$0x1]
      %v1117 = vld [vmem:[#allocation2 + $0x78] sm:$0xf]
      %v1118 = vld [vmem:[#allocation2 + $0x7c] sm:$0xf]
      %v1119 = vld [vmem:[#allocation2 + $0x80] sm:$0x1]
      %v1120 = vld [vmem:[#allocation2 + $0x84] sm:$0xf]
      %v1121 = vld [vmem:[#allocation2 + $0x88] sm:$0xf]
      %v1122 = vld [vmem:[#allocation2 + $0x8c] sm:$0x1]
      %v1123 = vld [vmem:[#allocation2 + $0x90] sm:$0xf]
      %v1124 = vld [vmem:[#allocation2 + $0x94] sm:$0xf]
      %v1125 = vld [vmem:[#allocation2 + $0x98] sm:$0x1]
      %v1126 = vld [vmem:[#allocation2 + $0x9c] sm:$0xf]
      %v1127 = vld [vmem:[#allocation2 + $0xa0] sm:$0xf]
      %v1128 = vld [vmem:[#allocation2 + $0xa4] sm:$0x1]
      %v1129 = vld [vmem:[#allocation2 + $0xa8] sm:$0xf]
      %v1130 = vld [vmem:[#allocation2 + $0xac] sm:$0xf]
      %v1131 = vld [vmem:[#allocation2 + $0xb0] sm:$0x1]
      %v1132 = vld [vmem:[#allocation2 + $0xb4] sm:$0xf]
      %v1133 = vld [vmem:[#allocation2 + $0xb8] sm:$0xf]
      %v1134 = vld [vmem:[#allocation2 + $0xbc] sm:$0x1]
      %v1167 = vunpack.c.l.b16 %v1087
      %v1168 = vunpack.c.l.b16 %v1088
      %v1169 = vunpack.c.l.b16 %v1090
      %v1170 = vunpack.c.l.b16 %v1091
      %v1171 = vunpack.c.l.b16 %v1093
      %v1172 = vunpack.c.l.b16 %v1094
      %v1173 = vunpack.c.l.b16 %v1096
      %v1174 = vunpack.c.l.b16 %v1097
      %v1175 = vunpack.c.l.b16 %v1099
      %v1176 = vunpack.c.l.b16 %v1100
      %v1177 = vunpack.c.l.b16 %v1102
      %v1178 = vunpack.c.l.b16 %v1103
      %v1179 = vunpack.c.l.b16 %v1105
      %v1180 = vunpack.c.l.b16 %v1106
      %v1181 = vunpack.c.l.b16 %v1108
      %v1182 = vunpack.c.l.b16 %v1109
      %v1183 = vunpack.c.l.b16 %v1111
      %v1184 = vunpack.c.l.b16 %v1112
      %v1185 = vunpack.c.l.b16 %v1114
      %v1186 = vunpack.c.l.b16 %v1115
      %v1187 = vunpack.c.l.b16 %v1117
      %v1188 = vunpack.c.l.b16 %v1118
      %v1189 = vunpack.c.l.b16 %v1120
      %v1190 = vunpack.c.l.b16 %v1121
      %v1191 = vunpack.c.l.b16 %v1123
      %v1192 = vunpack.c.l.b16 %v1124
      %v1193 = vunpack.c.l.b16 %v1126
      %v1194 = vunpack.c.l.b16 %v1127
      %v1195 = vunpack.c.l.b16 %v1129
      %v1196 = vunpack.c.l.b16 %v1130
      %v1197 = vunpack.c.l.b16 %v1132
      %v1198 = vunpack.c.l.b16 %v1133
      %v1199 = vpack.c.b16 %v1168, %v1167
      %v1200 = vpack.c.b16 %v1170, %v1169
      %v1201 = vpack.c.b16 %v1172, %v1171
      %v1202 = vpack.c.b16 %v1174, %v1173
      %v1203 = vpack.c.b16 %v1176, %v1175
      %v1204 = vpack.c.b16 %v1178, %v1177
      %v1205 = vpack.c.b16 %v1180, %v1179
      %v1206 = vpack.c.b16 %v1182, %v1181
      %v1207 = vpack.c.b16 %v1184, %v1183
      %v1208 = vpack.c.b16 %v1186, %v1185
      %v1209 = vpack.c.b16 %v1188, %v1187
      %v1210 = vpack.c.b16 %v1190, %v1189
      %v1211 = vpack.c.b16 %v1192, %v1191
      %v1212 = vpack.c.b16 %v1194, %v1193
      %v1213 = vpack.c.b16 %v1196, %v1195
      %v1214 = vpack.c.b16 %v1198, %v1197
      %v1231 = vunpack.c.l.b16 %v1089
      %v1232 = vunpack.c.l.b16 %v1092
      %v1233 = vunpack.c.l.b16 %v1095
      %v1234 = vunpack.c.l.b16 %v1098
      %v1235 = vunpack.c.l.b16 %v1101
      %v1236 = vunpack.c.l.b16 %v1104
      %v1237 = vunpack.c.l.b16 %v1107
      %v1238 = vunpack.c.l.b16 %v1110
      %v1239 = vunpack.c.l.b16 %v1113
      %v1240 = vunpack.c.l.b16 %v1116
      %v1241 = vunpack.c.l.b16 %v1119
      %v1242 = vunpack.c.l.b16 %v1122
      %v1243 = vunpack.c.l.b16 %v1125
      %v1244 = vunpack.c.l.b16 %v1128
      %v1245 = vunpack.c.l.b16 %v1131
      %v1246 = vunpack.c.l.b16 %v1134
      %v1247 = vpack.c.b16 %v1231, %v1231
      %v1248 = vpack.c.b16 %v1232, %v1232
      %v1249 = vpack.c.b16 %v1233, %v1233
      %v1250 = vpack.c.b16 %v1234, %v1234
      %v1251 = vpack.c.b16 %v1235, %v1235
      %v1252 = vpack.c.b16 %v1236, %v1236
      %v1253 = vpack.c.b16 %v1237, %v1237
      %v1254 = vpack.c.b16 %v1238, %v1238
      %v1255 = vpack.c.b16 %v1239, %v1239
      %v1256 = vpack.c.b16 %v1240, %v1240
      %v1257 = vpack.c.b16 %v1241, %v1241
      %v1258 = vpack.c.b16 %v1242, %v1242
      %v1259 = vpack.c.b16 %v1243, %v1243
      %v1260 = vpack.c.b16 %v1244, %v1244
      %v1261 = vpack.c.b16 %v1245, %v1245
      %v1262 = vpack.c.b16 %v1246, %v1246
      %vm1263 = vsmask.f32 7424
      %v1265 = vshrl.u32 %v1199, 16
      %v1267 = vshll.u32 %v1199, 16
      %v1269 = vrot.slane %v1267, 1
      %v1270 = vor.u32 %v1265, %v1269
      %v1272 = vshll.u32 %v1247, 16
      %v1274 = vrot.slane %v1272, 1
      %v1275 = vsel %vm1263, %v1270, %v1274
      %v1277 = vshrl.u32 %v1200, 16
      %v1279 = vshll.u32 %v1200, 16
      %v1281 = vrot.slane %v1279, 1
      %v1282 = vor.u32 %v1277, %v1281
      %v1284 = vshll.u32 %v1248, 16
      %v1286 = vrot.slane %v1284, 1
      %v1287 = vsel %vm1263, %v1282, %v1286
      %v1289 = vshrl.u32 %v1201, 16
      %v1291 = vshll.u32 %v1201, 16
      %v1293 = vrot.slane %v1291, 1
      %v1294 = vor.u32 %v1289, %v1293
      %v1296 = vshll.u32 %v1249, 16
      %v1298 = vrot.slane %v1296, 1
      %v1299 = vsel %vm1263, %v1294, %v1298
      %v1301 = vshrl.u32 %v1202, 16
      %v1303 = vshll.u32 %v1202, 16
      %v1305 = vrot.slane %v1303, 1
      %v1306 = vor.u32 %v1301, %v1305
      %v1308 = vshll.u32 %v1250, 16
      %v1310 = vrot.slane %v1308, 1
      %v1311 = vsel %vm1263, %v1306, %v1310
      %v1313 = vshrl.u32 %v1203, 16
      %v1315 = vshll.u32 %v1203, 16
      %v1317 = vrot.slane %v1315, 1
      %v1318 = vor.u32 %v1313, %v1317
      %v1320 = vshll.u32 %v1251, 16
      %v1322 = vrot.slane %v1320, 1
      %v1323 = vsel %vm1263, %v1318, %v1322
      %v1325 = vshrl.u32 %v1204, 16
      %v1327 = vshll.u32 %v1204, 16
      %v1329 = vrot.slane %v1327, 1
      %v1330 = vor.u32 %v1325, %v1329
      %v1332 = vshll.u32 %v1252, 16
      %v1334 = vrot.slane %v1332, 1
      %v1335 = vsel %vm1263, %v1330, %v1334
      %v1337 = vshrl.u32 %v1205, 16
      %v1339 = vshll.u32 %v1205, 16
      %v1341 = vrot.slane %v1339, 1
      %v1342 = vor.u32 %v1337, %v1341
      %v1344 = vshll.u32 %v1253, 16
      %v1346 = vrot.slane %v1344, 1
      %v1347 = vsel %vm1263, %v1342, %v1346
      %v1349 = vshrl.u32 %v1206, 16
      %v1351 = vshll.u32 %v1206, 16
      %v1353 = vrot.slane %v1351, 1
      %v1354 = vor.u32 %v1349, %v1353
      %v1356 = vshll.u32 %v1254, 16
      %v1358 = vrot.slane %v1356, 1
      %v1359 = vsel %vm1263, %v1354, %v1358
      %v1361 = vshrl.u32 %v1207, 16
      %v1363 = vshll.u32 %v1207, 16
      %v1365 = vrot.slane %v1363, 1
      %v1366 = vor.u32 %v1361, %v1365
      %v1368 = vshll.u32 %v1255, 16
      %v1370 = vrot.slane %v1368, 1
      %v1371 = vsel %vm1263, %v1366, %v1370
      %v1373 = vshrl.u32 %v1208, 16
      %v1375 = vshll.u32 %v1208, 16
      %v1377 = vrot.slane %v1375, 1
      %v1378 = vor.u32 %v1373, %v1377
      %v1380 = vshll.u32 %v1256, 16
      %v1382 = vrot.slane %v1380, 1
      %v1383 = vsel %vm1263, %v1378, %v1382
      %v1385 = vshrl.u32 %v1209, 16
      %v1387 = vshll.u32 %v1209, 16
      %v1389 = vrot.slane %v1387, 1
      %v1390 = vor.u32 %v1385, %v1389
      %v1392 = vshll.u32 %v1257, 16
      %v1394 = vrot.slane %v1392, 1
      %v1395 = vsel %vm1263, %v1390, %v1394
      %v1397 = vshrl.u32 %v1210, 16
      %v1399 = vshll.u32 %v1210, 16
      %v1401 = vrot.slane %v1399, 1
      %v1402 = vor.u32 %v1397, %v1401
      %v1404 = vshll.u32 %v1258, 16
      %v1406 = vrot.slane %v1404, 1
      %v1407 = vsel %vm1263, %v1402, %v1406
      %v1409 = vshrl.u32 %v1211, 16
      %v1411 = vshll.u32 %v1211, 16
      %v1413 = vrot.slane %v1411, 1
      %v1414 = vor.u32 %v1409, %v1413
      %v1416 = vshll.u32 %v1259, 16
      %v1418 = vrot.slane %v1416, 1
      %v1419 = vsel %vm1263, %v1414, %v1418
      %v1421 = vshrl.u32 %v1212, 16
      %v1423 = vshll.u32 %v1212, 16
      %v1425 = vrot.slane %v1423, 1
      %v1426 = vor.u32 %v1421, %v1425
      %v1428 = vshll.u32 %v1260, 16
      %v1430 = vrot.slane %v1428, 1
      %v1431 = vsel %vm1263, %v1426, %v1430
      %v1433 = vshrl.u32 %v1213, 16
      %v1435 = vshll.u32 %v1213, 16
      %v1437 = vrot.slane %v1435, 1
      %v1438 = vor.u32 %v1433, %v1437
      %v1440 = vshll.u32 %v1261, 16
      %v1442 = vrot.slane %v1440, 1
      %v1443 = vsel %vm1263, %v1438, %v1442
      %v1445 = vshrl.u32 %v1214, 16
      %v1447 = vshll.u32 %v1214, 16
      %v1449 = vrot.slane %v1447, 1
      %v1450 = vor.u32 %v1445, %v1449
      %v1452 = vshll.u32 %v1262, 16
      %v1454 = vrot.slane %v1452, 1
      %v1455 = vsel %vm1263, %v1450, %v1454
      %1456 = vrot.lane.b32.xlu0 %v1275, 8
      %v1457 = vpop.permute.xlu0 %1456
      %1458 = vrot.lane.b32.xlu0 %v1287, 8
      %v1459 = vpop.permute.xlu0 %1458
      %1460 = vrot.lane.b32.xlu0 %v1299, 8
      %v1461 = vpop.permute.xlu0 %1460
      %1462 = vrot.lane.b32.xlu0 %v1311, 8
      %v1463 = vpop.permute.xlu0 %1462
      %1464 = vrot.lane.b32.xlu0 %v1323, 8
      %v1465 = vpop.permute.xlu0 %1464
      %1466 = vrot.lane.b32.xlu0 %v1335, 8
      %v1467 = vpop.permute.xlu0 %1466
      %1468 = vrot.lane.b32.xlu0 %v1347, 8
      %v1469 = vpop.permute.xlu0 %1468
      %1470 = vrot.lane.b32.xlu0 %v1359, 8
      %v1471 = vpop.permute.xlu0 %1470
      %1472 = vrot.lane.b32.xlu0 %v1371, 8
      %v1473 = vpop.permute.xlu0 %1472
      %1474 = vrot.lane.b32.xlu0 %v1383, 8
      %v1475 = vpop.permute.xlu0 %1474
      %1476 = vrot.lane.b32.xlu0 %v1395, 8
      %v1477 = vpop.permute.xlu0 %1476
      %1478 = vrot.lane.b32.xlu0 %v1407, 8
      %v1479 = vpop.permute.xlu0 %1478
      %1480 = vrot.lane.b32.xlu0 %v1419, 8
      %v1481 = vpop.permute.xlu0 %1480
      %1482 = vrot.lane.b32.xlu0 %v1431, 8
      %v1483 = vpop.permute.xlu0 %1482
      %1484 = vrot.lane.b32.xlu0 %v1443, 8
      %v1485 = vpop.permute.xlu0 %1484
      %1486 = vrot.lane.b32.xlu0 %v1455, 8
      %v1487 = vpop.permute.xlu0 %1486
      %vm1488 = vcmask 1046528
      %v1489 = vrot.slane %v1199, 1
      %v1490 = vrot.slane %v1247, 1
      %v1491 = vsel %vm1488, %v1489, %v1490
      %v1492 = vrot.slane %v1200, 1
      %v1493 = vrot.slane %v1248, 1
      %v1494 = vsel %vm1488, %v1492, %v1493
      %v1495 = vrot.slane %v1201, 1
      %v1496 = vrot.slane %v1249, 1
      %v1497 = vsel %vm1488, %v1495, %v1496
      %v1498 = vrot.slane %v1202, 1
      %v1499 = vrot.slane %v1250, 1
      %v1500 = vsel %vm1488, %v1498, %v1499
      %v1501 = vrot.slane %v1203, 1
      %v1502 = vrot.slane %v1251, 1
      %v1503 = vsel %vm1488, %v1501, %v1502
      %v1504 = vrot.slane %v1204, 1
      %v1505 = vrot.slane %v1252, 1
      %v1506 = vsel %vm1488, %v1504, %v1505
      %v1507 = vrot.slane %v1205, 1
      %v1508 = vrot.slane %v1253, 1
      %v1509 = vsel %vm1488, %v1507, %v1508
      %v1510 = vrot.slane %v1206, 1
      %v1511 = vrot.slane %v1254, 1
      %v1512 = vsel %vm1488, %v1510, %v1511
      %v1513 = vrot.slane %v1207, 1
      %v1514 = vrot.slane %v1255, 1
      %v1515 = vsel %vm1488, %v1513, %v1514
      %v1516 = vrot.slane %v1208, 1
      %v1517 = vrot.slane %v1256, 1
      %v1518 = vsel %vm1488, %v1516, %v1517
      %v1519 = vrot.slane %v1209, 1
      %v1520 = vrot.slane %v1257, 1
      %v1521 = vsel %vm1488, %v1519, %v1520
      %v1522 = vrot.slane %v1210, 1
      %v1523 = vrot.slane %v1258, 1
      %v1524 = vsel %vm1488, %v1522, %v1523
      %v1525 = vrot.slane %v1211, 1
      %v1526 = vrot.slane %v1259, 1
      %v1527 = vsel %vm1488, %v1525, %v1526
      %v1528 = vrot.slane %v1212, 1
      %v1529 = vrot.slane %v1260, 1
      %v1530 = vsel %vm1488, %v1528, %v1529
      %v1531 = vrot.slane %v1213, 1
      %v1532 = vrot.slane %v1261, 1
      %v1533 = vsel %vm1488, %v1531, %v1532
      %v1534 = vrot.slane %v1214, 1
      %v1535 = vrot.slane %v1262, 1
      %v1536 = vsel %vm1488, %v1534, %v1535
      %1537 = vrot.lane.b32.xlu0 %v1491, 16
      %v1538 = vpop.permute.xlu0 %1537
      %1539 = vrot.lane.b32.xlu0 %v1494, 16
      %v1540 = vpop.permute.xlu0 %1539
      %1541 = vrot.lane.b32.xlu0 %v1497, 16
      %v1542 = vpop.permute.xlu0 %1541
      %1543 = vrot.lane.b32.xlu0 %v1500, 16
      %v1544 = vpop.permute.xlu0 %1543
      %1545 = vrot.lane.b32.xlu0 %v1503, 16
      %v1546 = vpop.permute.xlu0 %1545
      %1547 = vrot.lane.b32.xlu0 %v1506, 16
      %v1548 = vpop.permute.xlu0 %1547
      %1549 = vrot.lane.b32.xlu0 %v1509, 16
      %v1550 = vpop.permute.xlu0 %1549
      %1551 = vrot.lane.b32.xlu0 %v1512, 16
      %v1552 = vpop.permute.xlu0 %1551
      %1553 = vrot.lane.b32.xlu0 %v1515, 16
      %v1554 = vpop.permute.xlu0 %1553
      %1555 = vrot.lane.b32.xlu0 %v1518, 16
      %v1556 = vpop.permute.xlu0 %1555
      %1557 = vrot.lane.b32.xlu0 %v1521, 16
      %v1558 = vpop.permute.xlu0 %1557
      %1559 = vrot.lane.b32.xlu0 %v1524, 16
      %v1560 = vpop.permute.xlu0 %1559
      %1561 = vrot.lane.b32.xlu0 %v1527, 16
      %v1562 = vpop.permute.xlu0 %1561
      %1563 = vrot.lane.b32.xlu0 %v1530, 16
      %v1564 = vpop.permute.xlu0 %1563
      %1565 = vrot.lane.b32.xlu0 %v1533, 16
      %v1566 = vpop.permute.xlu0 %1565
      %1567 = vrot.lane.b32.xlu0 %v1536, 16
      %v1568 = vpop.permute.xlu0 %1567
      %vm1569 = vcmask 64512
      %v1571 = vsel %vm1569, %v1199, %v1457
      %v1573 = vsel %vm1569, %v1200, %v1459
      %v1575 = vsel %vm1569, %v1201, %v1461
      %v1577 = vsel %vm1569, %v1202, %v1463
      %v1579 = vsel %vm1569, %v1203, %v1465
      %v1581 = vsel %vm1569, %v1204, %v1467
      %v1583 = vsel %vm1569, %v1205, %v1469
      %v1585 = vsel %vm1569, %v1206, %v1471
      %v1587 = vsel %vm1569, %v1207, %v1473
      %v1589 = vsel %vm1569, %v1208, %v1475
      %v1591 = vsel %vm1569, %v1209, %v1477
      %v1593 = vsel %vm1569, %v1210, %v1479
      %v1595 = vsel %vm1569, %v1211, %v1481
      %v1597 = vsel %vm1569, %v1212, %v1483
      %v1599 = vsel %vm1569, %v1213, %v1485
      %v1601 = vsel %vm1569, %v1214, %v1487
      %vm1602 = vcmask 130048
      %v1604 = vsel %vm1602, %v1571, %v1538
      %v1606 = vsel %vm1602, %v1573, %v1540
      %v1608 = vsel %vm1602, %v1575, %v1542
      %v1610 = vsel %vm1602, %v1577, %v1544
      %v1612 = vsel %vm1602, %v1579, %v1546
      %v1614 = vsel %vm1602, %v1581, %v1548
      %v1616 = vsel %vm1602, %v1583, %v1550
      %v1618 = vsel %vm1602, %v1585, %v1552
      %v1620 = vsel %vm1602, %v1587, %v1554
      %v1622 = vsel %vm1602, %v1589, %v1556
      %v1624 = vsel %vm1602, %v1591, %v1558
      %v1626 = vsel %vm1602, %v1593, %v1560
      %v1628 = vsel %vm1602, %v1595, %v1562
      %v1630 = vsel %vm1602, %v1597, %v1564
      %v1632 = vsel %vm1602, %v1599, %v1566
      %v1634 = vsel %vm1602, %v1601, %v1568
      %v1635 = vld [vmem:[%s3] sm:$0xf]
      %v1636 = vld [vmem:[%s3 + $0x4] sm:$0xf]
      %v1637 = vld [vmem:[%s3 + $0x8] sm:$0xf]
      %v1638 = vld [vmem:[%s279] sm:$0xf]
      %v1639 = vld [vmem:[%s279 + $0x4] sm:$0xf]
      %v1640 = vld [vmem:[%s279 + $0x8] sm:$0x1]
      %v1641 = vld [vmem:[%s279 + $0xc] sm:$0xf]
      %v1642 = vld [vmem:[%s279 + $0x10] sm:$0xf]
      %v1643 = vld [vmem:[%s279 + $0x14] sm:$0x1]
      %v1644 = vld [vmem:[%s279 + $0x18] sm:$0xf]
      %v1645 = vld [vmem:[%s279 + $0x1c] sm:$0xf]
      %v1646 = vld [vmem:[%s279 + $0x20] sm:$0x1]
      %v1647 = vld [vmem:[%s279 + $0x24] sm:$0xf]
      %v1648 = vld [vmem:[%s279 + $0x28] sm:$0xf]
      %v1649 = vld [vmem:[%s279 + $0x2c] sm:$0x1]
      %v1650 = vld [vmem:[%s279 + $0x30] sm:$0xf]
      %v1651 = vld [vmem:[%s279 + $0x34] sm:$0xf]
      %v1652 = vld [vmem:[%s279 + $0x38] sm:$0x1]
      %v1653 = vld [vmem:[%s279 + $0x3c] sm:$0xf]
      %v1654 = vld [vmem:[%s279 + $0x40] sm:$0xf]
      %v1655 = vld [vmem:[%s279 + $0x44] sm:$0x1]
      %v1656 = vld [vmem:[%s279 + $0x48] sm:$0xf]
      %v1657 = vld [vmem:[%s279 + $0x4c] sm:$0xf]
      %v1658 = vld [vmem:[%s279 + $0x50] sm:$0x1]
      %v1659 = vld [vmem:[%s279 + $0x54] sm:$0xf]
      %v1660 = vld [vmem:[%s279 + $0x58] sm:$0xf]
      %v1661 = vld [vmem:[%s279 + $0x5c] sm:$0x1]
      %v1662 = vld [vmem:[%s279 + $0x60] sm:$0xf]
      %v1663 = vld [vmem:[%s279 + $0x64] sm:$0xf]
      %v1664 = vld [vmem:[%s279 + $0x68] sm:$0x1]
      %v1665 = vld [vmem:[%s279 + $0x6c] sm:$0xf]
      %v1666 = vld [vmem:[%s279 + $0x70] sm:$0xf]
      %v1667 = vld [vmem:[%s279 + $0x74] sm:$0x1]
      %v1668 = vld [vmem:[%s279 + $0x78] sm:$0xf]
      %v1669 = vld [vmem:[%s279 + $0x7c] sm:$0xf]
      %v1670 = vld [vmem:[%s279 + $0x80] sm:$0x1]
      %v1671 = vld [vmem:[%s279 + $0x84] sm:$0xf]
      %v1672 = vld [vmem:[%s279 + $0x88] sm:$0xf]
      %v1673 = vld [vmem:[%s279 + $0x8c] sm:$0x1]
      %v1674 = vld [vmem:[%s279 + $0x90] sm:$0xf]
      %v1675 = vld [vmem:[%s279 + $0x94] sm:$0xf]
      %v1676 = vld [vmem:[%s279 + $0x98] sm:$0x1]
      %v1677 = vld [vmem:[%s279 + $0x9c] sm:$0xf]
      %v1678 = vld [vmem:[%s279 + $0xa0] sm:$0xf]
      %v1679 = vld [vmem:[%s279 + $0xa4] sm:$0x1]
      %v1680 = vld [vmem:[%s279 + $0xa8] sm:$0xf]
      %v1681 = vld [vmem:[%s279 + $0xac] sm:$0xf]
      %v1682 = vld [vmem:[%s279 + $0xb0] sm:$0x1]
      %v1683 = vld [vmem:[%s279 + $0xb4] sm:$0xf]
      %v1684 = vld [vmem:[%s279 + $0xb8] sm:$0xf]
      %v1685 = vld [vmem:[%s279 + $0xbc] sm:$0x1]
      %v1718 = vunpack.c.l.b16 %v1638
      %v1719 = vunpack.c.l.b16 %v1639
      %v1720 = vunpack.c.l.b16 %v1641
      %v1721 = vunpack.c.l.b16 %v1642
      %v1722 = vunpack.c.l.b16 %v1644
      %v1723 = vunpack.c.l.b16 %v1645
      %v1724 = vunpack.c.l.b16 %v1647
      %v1725 = vunpack.c.l.b16 %v1648
      %v1726 = vunpack.c.l.b16 %v1650
      %v1727 = vunpack.c.l.b16 %v1651
      %v1728 = vunpack.c.l.b16 %v1653
      %v1729 = vunpack.c.l.b16 %v1654
      %v1730 = vunpack.c.l.b16 %v1656
      %v1731 = vunpack.c.l.b16 %v1657
      %v1732 = vunpack.c.l.b16 %v1659
      %v1733 = vunpack.c.l.b16 %v1660
      %v1734 = vunpack.c.l.b16 %v1662
      %v1735 = vunpack.c.l.b16 %v1663
      %v1736 = vunpack.c.l.b16 %v1665
      %v1737 = vunpack.c.l.b16 %v1666
      %v1738 = vunpack.c.l.b16 %v1668
      %v1739 = vunpack.c.l.b16 %v1669
      %v1740 = vunpack.c.l.b16 %v1671
      %v1741 = vunpack.c.l.b16 %v1672
      %v1742 = vunpack.c.l.b16 %v1674
      %v1743 = vunpack.c.l.b16 %v1675
      %v1744 = vunpack.c.l.b16 %v1677
      %v1745 = vunpack.c.l.b16 %v1678
      %v1746 = vunpack.c.l.b16 %v1680
      %v1747 = vunpack.c.l.b16 %v1681
      %v1748 = vunpack.c.l.b16 %v1683
      %v1749 = vunpack.c.l.b16 %v1684
      %v1750 = vpack.c.b16 %v1719, %v1718
      %v1751 = vpack.c.b16 %v1721, %v1720
      %v1752 = vpack.c.b16 %v1723, %v1722
      %v1753 = vpack.c.b16 %v1725, %v1724
      %v1754 = vpack.c.b16 %v1727, %v1726
      %v1755 = vpack.c.b16 %v1729, %v1728
      %v1756 = vpack.c.b16 %v1731, %v1730
      %v1757 = vpack.c.b16 %v1733, %v1732
      %v1758 = vpack.c.b16 %v1735, %v1734
      %v1759 = vpack.c.b16 %v1737, %v1736
      %v1760 = vpack.c.b16 %v1739, %v1738
      %v1761 = vpack.c.b16 %v1741, %v1740
      %v1762 = vpack.c.b16 %v1743, %v1742
      %v1763 = vpack.c.b16 %v1745, %v1744
      %v1764 = vpack.c.b16 %v1747, %v1746
      %v1765 = vpack.c.b16 %v1749, %v1748
      %v1782 = vunpack.c.l.b16 %v1640
      %v1783 = vunpack.c.l.b16 %v1643
      %v1784 = vunpack.c.l.b16 %v1646
      %v1785 = vunpack.c.l.b16 %v1649
      %v1786 = vunpack.c.l.b16 %v1652
      %v1787 = vunpack.c.l.b16 %v1655
      %v1788 = vunpack.c.l.b16 %v1658
      %v1789 = vunpack.c.l.b16 %v1661
      %v1790 = vunpack.c.l.b16 %v1664
      %v1791 = vunpack.c.l.b16 %v1667
      %v1792 = vunpack.c.l.b16 %v1670
      %v1793 = vunpack.c.l.b16 %v1673
      %v1794 = vunpack.c.l.b16 %v1676
      %v1795 = vunpack.c.l.b16 %v1679
      %v1796 = vunpack.c.l.b16 %v1682
      %v1797 = vunpack.c.l.b16 %v1685
      %v1798 = vpack.c.b16 %v1782, %v1782
      %v1799 = vpack.c.b16 %v1783, %v1783
      %v1800 = vpack.c.b16 %v1784, %v1784
      %v1801 = vpack.c.b16 %v1785, %v1785
      %v1802 = vpack.c.b16 %v1786, %v1786
      %v1803 = vpack.c.b16 %v1787, %v1787
      %v1804 = vpack.c.b16 %v1788, %v1788
      %v1805 = vpack.c.b16 %v1789, %v1789
      %v1806 = vpack.c.b16 %v1790, %v1790
      %v1807 = vpack.c.b16 %v1791, %v1791
      %v1808 = vpack.c.b16 %v1792, %v1792
      %v1809 = vpack.c.b16 %v1793, %v1793
      %v1810 = vpack.c.b16 %v1794, %v1794
      %v1811 = vpack.c.b16 %v1795, %v1795
      %v1812 = vpack.c.b16 %v1796, %v1796
      %v1813 = vpack.c.b16 %v1797, %v1797
      %v1815 = vshrl.u32 %v1750, 16
      %v1817 = vshll.u32 %v1750, 16
      %v1819 = vrot.slane %v1817, 1
      %v1820 = vor.u32 %v1815, %v1819
      %v1822 = vshll.u32 %v1798, 16
      %v1824 = vrot.slane %v1822, 1
      %v1825 = vsel %vm1263, %v1820, %v1824
      %v1827 = vshrl.u32 %v1751, 16
      %v1829 = vshll.u32 %v1751, 16
      %v1831 = vrot.slane %v1829, 1
      %v1832 = vor.u32 %v1827, %v1831
      %v1834 = vshll.u32 %v1799, 16
      %v1836 = vrot.slane %v1834, 1
      %v1837 = vsel %vm1263, %v1832, %v1836
      %v1839 = vshrl.u32 %v1752, 16
      %v1841 = vshll.u32 %v1752, 16
      %v1843 = vrot.slane %v1841, 1
      %v1844 = vor.u32 %v1839, %v1843
      %v1846 = vshll.u32 %v1800, 16
      %v1848 = vrot.slane %v1846, 1
      %v1849 = vsel %vm1263, %v1844, %v1848
      %v1851 = vshrl.u32 %v1753, 16
      %v1853 = vshll.u32 %v1753, 16
      %v1855 = vrot.slane %v1853, 1
      %v1856 = vor.u32 %v1851, %v1855
      %v1858 = vshll.u32 %v1801, 16
      %v1860 = vrot.slane %v1858, 1
      %v1861 = vsel %vm1263, %v1856, %v1860
      %v1863 = vshrl.u32 %v1754, 16
      %v1865 = vshll.u32 %v1754, 16
      %v1867 = vrot.slane %v1865, 1
      %v1868 = vor.u32 %v1863, %v1867
      %v1870 = vshll.u32 %v1802, 16
      %v1872 = vrot.slane %v1870, 1
      %v1873 = vsel %vm1263, %v1868, %v1872
      %v1875 = vshrl.u32 %v1755, 16
      %v1877 = vshll.u32 %v1755, 16
      %v1879 = vrot.slane %v1877, 1
      %v1880 = vor.u32 %v1875, %v1879
      %v1882 = vshll.u32 %v1803, 16
      %v1884 = vrot.slane %v1882, 1
      %v1885 = vsel %vm1263, %v1880, %v1884
      %v1887 = vshrl.u32 %v1756, 16
      %v1889 = vshll.u32 %v1756, 16
      %v1891 = vrot.slane %v1889, 1
      %v1892 = vor.u32 %v1887, %v1891
      %v1894 = vshll.u32 %v1804, 16
      %v1896 = vrot.slane %v1894, 1
      %v1897 = vsel %vm1263, %v1892, %v1896
      %v1899 = vshrl.u32 %v1757, 16
      %v1901 = vshll.u32 %v1757, 16
      %v1903 = vrot.slane %v1901, 1
      %v1904 = vor.u32 %v1899, %v1903
      %v1906 = vshll.u32 %v1805, 16
      %v1908 = vrot.slane %v1906, 1
      %v1909 = vsel %vm1263, %v1904, %v1908
      %v1911 = vshrl.u32 %v1758, 16
      %v1913 = vshll.u32 %v1758, 16
      %v1915 = vrot.slane %v1913, 1
      %v1916 = vor.u32 %v1911, %v1915
      %v1918 = vshll.u32 %v1806, 16
      %v1920 = vrot.slane %v1918, 1
      %v1921 = vsel %vm1263, %v1916, %v1920
      %v1923 = vshrl.u32 %v1759, 16
      %v1925 = vshll.u32 %v1759, 16
      %v1927 = vrot.slane %v1925, 1
      %v1928 = vor.u32 %v1923, %v1927
      %v1930 = vshll.u32 %v1807, 16
      %v1932 = vrot.slane %v1930, 1
      %v1933 = vsel %vm1263, %v1928, %v1932
      %v1935 = vshrl.u32 %v1760, 16
      %v1937 = vshll.u32 %v1760, 16
      %v1939 = vrot.slane %v1937, 1
      %v1940 = vor.u32 %v1935, %v1939
      %v1942 = vshll.u32 %v1808, 16
      %v1944 = vrot.slane %v1942, 1
      %v1945 = vsel %vm1263, %v1940, %v1944
      %v1947 = vshrl.u32 %v1761, 16
      %v1949 = vshll.u32 %v1761, 16
      %v1951 = vrot.slane %v1949, 1
      %v1952 = vor.u32 %v1947, %v1951
      %v1954 = vshll.u32 %v1809, 16
      %v1956 = vrot.slane %v1954, 1
      %v1957 = vsel %vm1263, %v1952, %v1956
      %v1959 = vshrl.u32 %v1762, 16
      %v1961 = vshll.u32 %v1762, 16
      %v1963 = vrot.slane %v1961, 1
      %v1964 = vor.u32 %v1959, %v1963
      %v1966 = vshll.u32 %v1810, 16
      %v1968 = vrot.slane %v1966, 1
      %v1969 = vsel %vm1263, %v1964, %v1968
      %v1971 = vshrl.u32 %v1763, 16
      %v1973 = vshll.u32 %v1763, 16
      %v1975 = vrot.slane %v1973, 1
      %v1976 = vor.u32 %v1971, %v1975
      %v1978 = vshll.u32 %v1811, 16
      %v1980 = vrot.slane %v1978, 1
      %v1981 = vsel %vm1263, %v1976, %v1980
      %v1983 = vshrl.u32 %v1764, 16
      %v1985 = vshll.u32 %v1764, 16
      %v1987 = vrot.slane %v1985, 1
      %v1988 = vor.u32 %v1983, %v1987
      %v1990 = vshll.u32 %v1812, 16
      %v1992 = vrot.slane %v1990, 1
      %v1993 = vsel %vm1263, %v1988, %v1992
      %v1995 = vshrl.u32 %v1765, 16
      %v1997 = vshll.u32 %v1765, 16
      %v1999 = vrot.slane %v1997, 1
      %v2000 = vor.u32 %v1995, %v1999
      %v2002 = vshll.u32 %v1813, 16
      %v2004 = vrot.slane %v2002, 1
      %v2005 = vsel %vm1263, %v2000, %v2004
      %2006 = vrot.lane.b32.xlu0 %v1825, 8
      %v2007 = vpop.permute.xlu0 %2006
      %2008 = vrot.lane.b32.xlu0 %v1837, 8
      %v2009 = vpop.permute.xlu0 %2008
      %2010 = vrot.lane.b32.xlu0 %v1849, 8
      %v2011 = vpop.permute.xlu0 %2010
      %2012 = vrot.lane.b32.xlu0 %v1861, 8
      %v2013 = vpop.permute.xlu0 %2012
      %2014 = vrot.lane.b32.xlu0 %v1873, 8
      %v2015 = vpop.permute.xlu0 %2014
      %2016 = vrot.lane.b32.xlu0 %v1885, 8
      %v2017 = vpop.permute.xlu0 %2016
      %2018 = vrot.lane.b32.xlu0 %v1897, 8
      %v2019 = vpop.permute.xlu0 %2018
      %2020 = vrot.lane.b32.xlu0 %v1909, 8
      %v2021 = vpop.permute.xlu0 %2020
      %2022 = vrot.lane.b32.xlu0 %v1921, 8
      %v2023 = vpop.permute.xlu0 %2022
      %2024 = vrot.lane.b32.xlu0 %v1933, 8
      %v2025 = vpop.permute.xlu0 %2024
      %2026 = vrot.lane.b32.xlu0 %v1945, 8
      %v2027 = vpop.permute.xlu0 %2026
      %2028 = vrot.lane.b32.xlu0 %v1957, 8
      %v2029 = vpop.permute.xlu0 %2028
      %2030 = vrot.lane.b32.xlu0 %v1969, 8
      %v2031 = vpop.permute.xlu0 %2030
      %2032 = vrot.lane.b32.xlu0 %v1981, 8
      %v2033 = vpop.permute.xlu0 %2032
      %2034 = vrot.lane.b32.xlu0 %v1993, 8
      %v2035 = vpop.permute.xlu0 %2034
      %2036 = vrot.lane.b32.xlu0 %v2005, 8
      %v2037 = vpop.permute.xlu0 %2036
      %v2038 = vrot.slane %v1750, 1
      %v2039 = vrot.slane %v1798, 1
      %v2040 = vsel %vm1488, %v2038, %v2039
      %v2041 = vrot.slane %v1751, 1
      %v2042 = vrot.slane %v1799, 1
      %v2043 = vsel %vm1488, %v2041, %v2042
      %v2044 = vrot.slane %v1752, 1
      %v2045 = vrot.slane %v1800, 1
      %v2046 = vsel %vm1488, %v2044, %v2045
      %v2047 = vrot.slane %v1753, 1
      %v2048 = vrot.slane %v1801, 1
      %v2049 = vsel %vm1488, %v2047, %v2048
      %v2050 = vrot.slane %v1754, 1
      %v2051 = vrot.slane %v1802, 1
      %v2052 = vsel %vm1488, %v2050, %v2051
      %v2053 = vrot.slane %v1755, 1
      %v2054 = vrot.slane %v1803, 1
      %v2055 = vsel %vm1488, %v2053, %v2054
      %v2056 = vrot.slane %v1756, 1
      %v2057 = vrot.slane %v1804, 1
      %v2058 = vsel %vm1488, %v2056, %v2057
      %v2059 = vrot.slane %v1757, 1
      %v2060 = vrot.slane %v1805, 1
      %v2061 = vsel %vm1488, %v2059, %v2060
      %v2062 = vrot.slane %v1758, 1
      %v2063 = vrot.slane %v1806, 1
      %v2064 = vsel %vm1488, %v2062, %v2063
      %v2065 = vrot.slane %v1759, 1
      %v2066 = vrot.slane %v1807, 1
      %v2067 = vsel %vm1488, %v2065, %v2066
      %v2068 = vrot.slane %v1760, 1
      %v2069 = vrot.slane %v1808, 1
      %v2070 = vsel %vm1488, %v2068, %v2069
      %v2071 = vrot.slane %v1761, 1
      %v2072 = vrot.slane %v1809, 1
      %v2073 = vsel %vm1488, %v2071, %v2072
      %v2074 = vrot.slane %v1762, 1
      %v2075 = vrot.slane %v1810, 1
      %v2076 = vsel %vm1488, %v2074, %v2075
      %v2077 = vrot.slane %v1763, 1
      %v2078 = vrot.slane %v1811, 1
      %v2079 = vsel %vm1488, %v2077, %v2078
      %v2080 = vrot.slane %v1764, 1
      %v2081 = vrot.slane %v1812, 1
      %v2082 = vsel %vm1488, %v2080, %v2081
      %v2083 = vrot.slane %v1765, 1
      %v2084 = vrot.slane %v1813, 1
      %v2085 = vsel %vm1488, %v2083, %v2084
      %2086 = vrot.lane.b32.xlu0 %v2040, 16
      %v2087 = vpop.permute.xlu0 %2086
      %2088 = vrot.lane.b32.xlu0 %v2043, 16
      %v2089 = vpop.permute.xlu0 %2088
      %2090 = vrot.lane.b32.xlu0 %v2046, 16
      %v2091 = vpop.permute.xlu0 %2090
      %2092 = vrot.lane.b32.xlu0 %v2049, 16
      %v2093 = vpop.permute.xlu0 %2092
      %2094 = vrot.lane.b32.xlu0 %v2052, 16
      %v2095 = vpop.permute.xlu0 %2094
      %2096 = vrot.lane.b32.xlu0 %v2055, 16
      %v2097 = vpop.permute.xlu0 %2096
      %2098 = vrot.lane.b32.xlu0 %v2058, 16
      %v2099 = vpop.permute.xlu0 %2098
      %2100 = vrot.lane.b32.xlu0 %v2061, 16
      %v2101 = vpop.permute.xlu0 %2100
      %2102 = vrot.lane.b32.xlu0 %v2064, 16
      %v2103 = vpop.permute.xlu0 %2102
      %2104 = vrot.lane.b32.xlu0 %v2067, 16
      %v2105 = vpop.permute.xlu0 %2104
      %2106 = vrot.lane.b32.xlu0 %v2070, 16
      %v2107 = vpop.permute.xlu0 %2106
      %2108 = vrot.lane.b32.xlu0 %v2073, 16
      %v2109 = vpop.permute.xlu0 %2108
      %2110 = vrot.lane.b32.xlu0 %v2076, 16
      %v2111 = vpop.permute.xlu0 %2110
      %2112 = vrot.lane.b32.xlu0 %v2079, 16
      %v2113 = vpop.permute.xlu0 %2112
      %2114 = vrot.lane.b32.xlu0 %v2082, 16
      %v2115 = vpop.permute.xlu0 %2114
      %2116 = vrot.lane.b32.xlu0 %v2085, 16
      %v2117 = vpop.permute.xlu0 %2116
      %v2119 = vsel %vm1569, %v1750, %v2007
      %v2121 = vsel %vm1569, %v1751, %v2009
      %v2123 = vsel %vm1569, %v1752, %v2011
      %v2125 = vsel %vm1569, %v1753, %v2013
      %v2127 = vsel %vm1569, %v1754, %v2015
      %v2129 = vsel %vm1569, %v1755, %v2017
      %v2131 = vsel %vm1569, %v1756, %v2019
      %v2133 = vsel %vm1569, %v1757, %v2021
      %v2135 = vsel %vm1569, %v1758, %v2023
      %v2137 = vsel %vm1569, %v1759, %v2025
      %v2139 = vsel %vm1569, %v1760, %v2027
      %v2141 = vsel %vm1569, %v1761, %v2029
      %v2143 = vsel %vm1569, %v1762, %v2031
      %v2145 = vsel %vm1569, %v1763, %v2033
      %v2147 = vsel %vm1569, %v1764, %v2035
      %v2149 = vsel %vm1569, %v1765, %v2037
      %v2151 = vsel %vm1602, %v2119, %v2087
      %v2153 = vsel %vm1602, %v2121, %v2089
      %v2155 = vsel %vm1602, %v2123, %v2091
      %v2157 = vsel %vm1602, %v2125, %v2093
      %v2159 = vsel %vm1602, %v2127, %v2095
      %v2161 = vsel %vm1602, %v2129, %v2097
      %v2163 = vsel %vm1602, %v2131, %v2099
      %v2165 = vsel %vm1602, %v2133, %v2101
      %v2167 = vsel %vm1602, %v2135, %v2103
      %v2169 = vsel %vm1602, %v2137, %v2105
      %v2171 = vsel %vm1602, %v2139, %v2107
      %v2173 = vsel %vm1602, %v2141, %v2109
      %v2175 = vsel %vm1602, %v2143, %v2111
      %v2177 = vsel %vm1602, %v2145, %v2113
      %v2179 = vsel %vm1602, %v2147, %v2115
      %v2181 = vsel %vm1602, %v2149, %v2117
      %s2182 = scalar_lea.vmem %s3, 12
      %v2183 = vld [vmem:[%s2182] sm:$0xf]
      %v2184 = vld [vmem:[%s2182 + $0x4] sm:$0xf]
      %v2185 = vld [vmem:[%s2182 + $0x8] sm:$0xf]
      %v2189 = vunpack.c.l.b16 %v2183
      %v2190 = vunpack.c.l.b16 %v2184
      %v2191 = vunpack.c.l.b16 %v2185
      %v2192 = vpack.c.b16 %v2190, %v2189
      %v2193 = vpack.c.b16 %v2191, %v2191
      %vm2195 = vcmask 195584
      %v2196 = vsel %vm2195, %v2151, 0
      %v2198 = vsel %vm2195, %v2153, 0
      %v2200 = vsel %vm2195, %v2155, 0
      %v2202 = vsel %vm2195, %v2157, 0
      %v2204 = vsel %vm2195, %v2159, 0
      %v2206 = vsel %vm2195, %v2161, 0
      %v2208 = vsel %vm2195, %v2163, 0
      %v2210 = vsel %vm2195, %v2165, 0
      %v2212 = vsel %vm2195, %v2167, 0
      %v2214 = vsel %vm2195, %v2169, 0
      %v2216 = vsel %vm2195, %v2171, 0
      %v2218 = vsel %vm2195, %v2173, 0
      %v2220 = vsel %vm2195, %v2175, 0
      %v2222 = vsel %vm2195, %v2177, 0
      %v2224 = vsel %vm2195, %v2179, 0
      %v2226 = vsel %vm2195, %v2181, 0
      %vm2228 = vcmask 1043456
      %v2230 = vsel %vm2228, %v2193, 0
      %2232 = vmatprep.subr.bf16.mxu0 0
      %2233 = vmatpush1.bf16.msra.mxu0 %v2192
      %2234 = vmatprep.subr.bf16.mxu0 0
      %2235 = vmatpush1.bf16.msra.mxu0 %v2230
      %2236 = vmatprep.subr.bf16.mxu0 0
      %2237 = vmatpush1.bf16.msra.mxu0 0
      %2238 = vmatprep.subr.bf16.mxu0 0
      %2239 = vmatpush1.bf16.msra.mxu0 0
      %2240 = vmatprep.subr.bf16.mxu0 0
      %2241 = vmatpush1.bf16.msra.mxu0 0
      %2242 = vmatprep.subr.bf16.mxu0 0
      %2243 = vmatpush1.bf16.msra.mxu0 0
      %2244 = vmatprep.subr.bf16.mxu0 0
      %2245 = vmatpush1.bf16.msra.mxu0 0
      %2246 = vmatprep.subr.bf16.mxu0 0
      %2247 = vmatpush1.bf16.msra.mxu0 0
      %2248 = vmatprep.subr.bf16.mxu0 0
      %2249 = vmatpush1.bf16.msra.mxu0 0
      %2250 = vmatprep.subr.bf16.mxu0 0
      %2251 = vmatpush1.bf16.msra.mxu0 0
      %2252 = vmatprep.subr.bf16.mxu0 0
      %2253 = vmatpush1.bf16.msra.mxu0 0
      %2254 = vmatprep.subr.bf16.mxu0 0
      %2255 = vmatpush1.bf16.msra.mxu0 0
      %2256 = vmatprep.subr.bf16.mxu0 0
      %2257 = vmatpush1.bf16.msra.mxu0 0
      %2258 = vmatprep.subr.bf16.mxu0 0
      %2259 = vmatpush1.bf16.msra.mxu0 0
      %2260 = vmatprep.subr.bf16.mxu0 0
      %2261 = vmatpush1.bf16.msra.mxu0 0
      %2262 = vmatprep.subr.bf16.mxu0 0
      %2263 = vmatpush1.bf16.msra.mxu0 0
      %2264 = vmatprep.mubr.bf16.mxu0 0
      %2265 = vmatmul.mubr.bf16.gmra.mrb[0].mxu0 %v2196
      %v2266 = vpop.f32.mrb[0].mxu0
      %v2267 = vadd.f32 0.0, %v2266
      %v2268 = vpop.f32.mrb[0].mxu0
      %v2269 = vpop.f32.mrb[0].mxu0
      %v2270 = vadd.f32 0.0, %v2269
      %v2271 = vpop.f32.mrb[0].mxu0
      %2272 = vmatprep.mubr.bf16.mxu0 0
      %2273 = vmatmul.mubr.bf16.gmra.mrb[0].mxu0 %v2198
      %v2274 = vpop.f32.mrb[0].mxu0
      %v2275 = vadd.f32 0.0, %v2274
      %v2276 = vpop.f32.mrb[0].mxu0
      %v2277 = vpop.f32.mrb[0].mxu0
      %v2278 = vadd.f32 0.0, %v2277
      %v2279 = vpop.f32.mrb[0].mxu0
      %2280 = vmatprep.mubr.bf16.mxu0 0
      %2281 = vmatmul.mubr.bf16.gmra.mrb[0].mxu0 %v2200
      %v2282 = vpop.f32.mrb[0].mxu0
      %v2283 = vadd.f32 0.0, %v2282
      %v2284 = vpop.f32.mrb[0].mxu0
      %v2285 = vpop.f32.mrb[0].mxu0
      %v2286 = vadd.f32 0.0, %v2285
      %v2287 = vpop.f32.mrb[0].mxu0
      %2288 = vmatprep.mubr.bf16.mxu0 0
      %2289 = vmatmul.mubr.bf16.gmra.mrb[0].mxu0 %v2202
      %v2290 = vpop.f32.mrb[0].mxu0
      %v2291 = vadd.f32 0.0, %v2290
      %v2292 = vpop.f32.mrb[0].mxu0
      %v2293 = vpop.f32.mrb[0].mxu0
      %v2294 = vadd.f32 0.0, %v2293
      %v2295 = vpop.f32.mrb[0].mxu0
      %2296 = vmatprep.mubr.bf16.mxu0 0
      %2297 = vmatmul.mubr.bf16.gmra.mrb[0].mxu0 %v2204
      %v2298 = vpop.f32.mrb[0].mxu0
      %v2299 = vadd.f32 0.0, %v2298
      %v2300 = vpop.f32.mrb[0].mxu0
      %v2301 = vpop.f32.mrb[0].mxu0
      %v2302 = vadd.f32 0.0, %v2301
      %v2303 = vpop.f32.mrb[0].mxu0
      %2304 = vmatprep.mubr.bf16.mxu0 0
      %2305 = vmatmul.mubr.bf16.gmra.mrb[0].mxu0 %v2206
      %v2306 = vpop.f32.mrb[0].mxu0
      %v2307 = vadd.f32 0.0, %v2306
      %v2308 = vpop.f32.mrb[0].mxu0
      %v2309 = vpop.f32.mrb[0].mxu0
      %v2310 = vadd.f32 0.0, %v2309
      %v2311 = vpop.f32.mrb[0].mxu0
      %2312 = vmatprep.mubr.bf16.mxu0 0
      %2313 = vmatmul.mubr.bf16.gmra.mrb[0].mxu0 %v2208
      %v2314 = vpop.f32.mrb[0].mxu0
      %v2315 = vadd.f32 0.0, %v2314
      %v2316 = vpop.f32.mrb[0].mxu0
      %v2317 = vpop.f32.mrb[0].mxu0
      %v2318 = vadd.f32 0.0, %v2317
      %v2319 = vpop.f32.mrb[0].mxu0
      %2320 = vmatprep.mubr.bf16.mxu0 0
      %2321 = vmatmul.mubr.bf16.gmra.mrb[0].mxu0 %v2210
      %v2322 = vpop.f32.mrb[0].mxu0
      %v2323 = vadd.f32 0.0, %v2322
      %v2324 = vpop.f32.mrb[0].mxu0
      %v2325 = vpop.f32.mrb[0].mxu0
      %v2326 = vadd.f32 0.0, %v2325
      %v2327 = vpop.f32.mrb[0].mxu0
      %2328 = vmatprep.mubr.bf16.mxu0 0
      %2329 = vmatmul.mubr.bf16.gmra.mrb[0].mxu0 %v2212
      %v2330 = vpop.f32.mrb[0].mxu0
      %v2331 = vadd.f32 0.0, %v2330
      %v2332 = vpop.f32.mrb[0].mxu0
      %v2333 = vpop.f32.mrb[0].mxu0
      %v2334 = vadd.f32 0.0, %v2333
      %v2335 = vpop.f32.mrb[0].mxu0
      %2336 = vmatprep.mubr.bf16.mxu0 0
      %2337 = vmatmul.mubr.bf16.gmra.mrb[0].mxu0 %v2214
      %v2338 = vpop.f32.mrb[0].mxu0
      %v2339 = vadd.f32 0.0, %v2338
      %v2340 = vpop.f32.mrb[0].mxu0
      %v2341 = vpop.f32.mrb[0].mxu0
      %v2342 = vadd.f32 0.0, %v2341
      %v2343 = vpop.f32.mrb[0].mxu0
      %2344 = vmatprep.mubr.bf16.mxu0 0
      %2345 = vmatmul.mubr.bf16.gmra.mrb[0].mxu0 %v2216
      %v2346 = vpop.f32.mrb[0].mxu0
      %v2347 = vadd.f32 0.0, %v2346
      %v2348 = vpop.f32.mrb[0].mxu0
      %v2349 = vpop.f32.mrb[0].mxu0
      %v2350 = vadd.f32 0.0, %v2349
      %v2351 = vpop.f32.mrb[0].mxu0
      %2352 = vmatprep.mubr.bf16.mxu0 0
      %2353 = vmatmul.mubr.bf16.gmra.mrb[0].mxu0 %v2218
      %v2354 = vpop.f32.mrb[0].mxu0
      %v2355 = vadd.f32 0.0, %v2354
      %v2356 = vpop.f32.mrb[0].mxu0
      %v2357 = vpop.f32.mrb[0].mxu0
      %v2358 = vadd.f32 0.0, %v2357
      %v2359 = vpop.f32.mrb[0].mxu0
      %2360 = vmatprep.mubr.bf16.mxu0 0
      %2361 = vmatmul.mubr.bf16.gmra.mrb[0].mxu0 %v2220
      %v2362 = vpop.f32.mrb[0].mxu0
      %v2363 = vadd.f32 0.0, %v2362
      %v2364 = vpop.f32.mrb[0].mxu0
      %v2365 = vpop.f32.mrb[0].mxu0
      %v2366 = vadd.f32 0.0, %v2365
      %v2367 = vpop.f32.mrb[0].mxu0
      %2368 = vmatprep.mubr.bf16.mxu0 0
      %2369 = vmatmul.mubr.bf16.gmra.mrb[0].mxu0 %v2222
      %v2370 = vpop.f32.mrb[0].mxu0
      %v2371 = vadd.f32 0.0, %v2370
      %v2372 = vpop.f32.mrb[0].mxu0
      %v2373 = vpop.f32.mrb[0].mxu0
      %v2374 = vadd.f32 0.0, %v2373
      %v2375 = vpop.f32.mrb[0].mxu0
      %2376 = vmatprep.mubr.bf16.mxu0 0
      %2377 = vmatmul.mubr.bf16.gmra.mrb[0].mxu0 %v2224
      %v2378 = vpop.f32.mrb[0].mxu0
      %v2379 = vadd.f32 0.0, %v2378
      %v2380 = vpop.f32.mrb[0].mxu0
      %v2381 = vpop.f32.mrb[0].mxu0
      %v2382 = vadd.f32 0.0, %v2381
      %v2383 = vpop.f32.mrb[0].mxu0
      %2384 = vmatprep.mubr.bf16.mxu0 0
      %2385 = vmatmul.mubr.bf16.gmra.mrb[0].mxu0 %v2226
      %v2386 = vpop.f32.mrb[0].mxu0
      %v2387 = vadd.f32 0.0, %v2386
      %v2388 = vpop.f32.mrb[0].mxu0
      %v2389 = vpop.f32.mrb[0].mxu0
      %v2390 = vadd.f32 0.0, %v2389
      %v2391 = vpop.f32.mrb[0].mxu0
      %2392 = vdwg.mxu0
      %s2393 = scalar_lea.vmem [#allocation2], 24
      %v2394 = vld [vmem:[%s2393] sm:$0xf]
      %v2395 = vld [vmem:[%s2393 + $0x4] sm:$0xf]
      %v2396 = vld [vmem:[%s2393 + $0x8] sm:$0x1]
      %v2397 = vld [vmem:[%s2393 + $0xc] sm:$0xf]
      %v2398 = vld [vmem:[%s2393 + $0x10] sm:$0xf]
      %v2399 = vld [vmem:[%s2393 + $0x14] sm:$0x1]
      %v2400 = vld [vmem:[%s2393 + $0x18] sm:$0xf]
      %v2401 = vld [vmem:[%s2393 + $0x1c] sm:$0xf]
      %v2402 = vld [vmem:[%s2393 + $0x20] sm:$0x1]
      %v2403 = vld [vmem:[%s2393 + $0x24] sm:$0xf]
      %v2404 = vld [vmem:[%s2393 + $0x28] sm:$0xf]
      %v2405 = vld [vmem:[%s2393 + $0x2c] sm:$0x1]
      %v2406 = vld [vmem:[%s2393 + $0x30] sm:$0xf]
      %v2407 = vld [vmem:[%s2393 + $0x34] sm:$0xf]
      %v2408 = vld [vmem:[%s2393 + $0x38] sm:$0x1]
      %v2409 = vld [vmem:[%s2393 + $0x3c] sm:$0xf]
      %v2410 = vld [vmem:[%s2393 + $0x40] sm:$0xf]
      %v2411 = vld [vmem:[%s2393 + $0x44] sm:$0x1]
      %v2412 = vld [vmem:[%s2393 + $0x48] sm:$0xf]
      %v2413 = vld [vmem:[%s2393 + $0x4c] sm:$0xf]
      %v2414 = vld [vmem:[%s2393 + $0x50] sm:$0x1]
      %v2415 = vld [vmem:[%s2393 + $0x54] sm:$0xf]
      %v2416 = vld [vmem:[%s2393 + $0x58] sm:$0xf]
      %v2417 = vld [vmem:[%s2393 + $0x5c] sm:$0x1]
      %v2418 = vld [vmem:[%s2393 + $0x60] sm:$0xf]
      %v2419 = vld [vmem:[%s2393 + $0x64] sm:$0xf]
      %v2420 = vld [vmem:[%s2393 + $0x68] sm:$0x1]
      %v2421 = vld [vmem:[%s2393 + $0x6c] sm:$0xf]
      %v2422 = vld [vmem:[%s2393 + $0x70] sm:$0xf]
      %v2423 = vld [vmem:[%s2393 + $0x74] sm:$0x1]
      %v2424 = vld [vmem:[%s2393 + $0x78] sm:$0xf]
      %v2425 = vld [vmem:[%s2393 + $0x7c] sm:$0xf]
      %v2426 = vld [vmem:[%s2393 + $0x80] sm:$0x1]
      %v2427 = vld [vmem:[%s2393 + $0x84] sm:$0xf]
      %v2428 = vld [vmem:[%s2393 + $0x88] sm:$0xf]
      %v2429 = vld [vmem:[%s2393 + $0x8c] sm:$0x1]
      %v2430 = vld [vmem:[%s2393 + $0x90] sm:$0xf]
      %v2431 = vld [vmem:[%s2393 + $0x94] sm:$0xf]
      %v2432 = vld [vmem:[%s2393 + $0x98] sm:$0x1]
      %v2433 = vld [vmem:[%s2393 + $0x9c] sm:$0xf]
      %v2434 = vld [vmem:[%s2393 + $0xa0] sm:$0xf]
      %v2435 = vld [vmem:[%s2393 + $0xa4] sm:$0x1]
      %v2436 = vld [vmem:[%s2393 + $0xa8] sm:$0xf]
      %v2437 = vld [vmem:[%s2393 + $0xac] sm:$0xf]
      %v2438 = vld [vmem:[%s2393 + $0xb0] sm:$0x1]
      %v2439 = vld [vmem:[%s2393 + $0xb4] sm:$0xf]
      %v2440 = vld [vmem:[%s2393 + $0xb8] sm:$0xf]
      %v2441 = vld [vmem:[%s2393 + $0xbc] sm:$0x1]
      %v2474 = vunpack.c.l.b16 %v2394
      %v2475 = vunpack.c.l.b16 %v2395
      %v2476 = vunpack.c.l.b16 %v2397
      %v2477 = vunpack.c.l.b16 %v2398
      %v2478 = vunpack.c.l.b16 %v2400
      %v2479 = vunpack.c.l.b16 %v2401
      %v2480 = vunpack.c.l.b16 %v2403
      %v2481 = vunpack.c.l.b16 %v2404
      %v2482 = vunpack.c.l.b16 %v2406
      %v2483 = vunpack.c.l.b16 %v2407
      %v2484 = vunpack.c.l.b16 %v2409
      %v2485 = vunpack.c.l.b16 %v2410
      %v2486 = vunpack.c.l.b16 %v2412
      %v2487 = vunpack.c.l.b16 %v2413
      %v2488 = vunpack.c.l.b16 %v2415
      %v2489 = vunpack.c.l.b16 %v2416
      %v2490 = vunpack.c.l.b16 %v2418
      %v2491 = vunpack.c.l.b16 %v2419
      %v2492 = vunpack.c.l.b16 %v2421
      %v2493 = vunpack.c.l.b16 %v2422
      %v2494 = vunpack.c.l.b16 %v2424
      %v2495 = vunpack.c.l.b16 %v2425
      %v2496 = vunpack.c.l.b16 %v2427
      %v2497 = vunpack.c.l.b16 %v2428
      %v2498 = vunpack.c.l.b16 %v2430
      %v2499 = vunpack.c.l.b16 %v2431
      %v2500 = vunpack.c.l.b16 %v2433
      %v2501 = vunpack.c.l.b16 %v2434
      %v2502 = vunpack.c.l.b16 %v2436
      %v2503 = vunpack.c.l.b16 %v2437
      %v2504 = vunpack.c.l.b16 %v2439
      %v2505 = vunpack.c.l.b16 %v2440
      %v2506 = vpack.c.b16 %v2475, %v2474
      %v2507 = vpack.c.b16 %v2477, %v2476
      %v2508 = vpack.c.b16 %v2479, %v2478
      %v2509 = vpack.c.b16 %v2481, %v2480
      %v2510 = vpack.c.b16 %v2483, %v2482
      %v2511 = vpack.c.b16 %v2485, %v2484
      %v2512 = vpack.c.b16 %v2487, %v2486
      %v2513 = vpack.c.b16 %v2489, %v2488
      %v2514 = vpack.c.b16 %v2491, %v2490
      %v2515 = vpack.c.b16 %v2493, %v2492
      %v2516 = vpack.c.b16 %v2495, %v2494
      %v2517 = vpack.c.b16 %v2497, %v2496
      %v2518 = vpack.c.b16 %v2499, %v2498
      %v2519 = vpack.c.b16 %v2501, %v2500
      %v2520 = vpack.c.b16 %v2503, %v2502
      %v2521 = vpack.c.b16 %v2505, %v2504
      %v2538 = vunpack.c.l.b16 %v2396
      %v2539 = vunpack.c.l.b16 %v2399
      %v2540 = vunpack.c.l.b16 %v2402
      %v2541 = vunpack.c.l.b16 %v2405
      %v2542 = vunpack.c.l.b16 %v2408
      %v2543 = vunpack.c.l.b16 %v2411
      %v2544 = vunpack.c.l.b16 %v2414
      %v2545 = vunpack.c.l.b16 %v2417
      %v2546 = vunpack.c.l.b16 %v2420
      %v2547 = vunpack.c.l.b16 %v2423
      %v2548 = vunpack.c.l.b16 %v2426
      %v2549 = vunpack.c.l.b16 %v2429
      %v2550 = vunpack.c.l.b16 %v2432
      %v2551 = vunpack.c.l.b16 %v2435
      %v2552 = vunpack.c.l.b16 %v2438
      %v2553 = vunpack.c.l.b16 %v2441
      %v2554 = vpack.c.b16 %v2538, %v2538
      %v2555 = vpack.c.b16 %v2539, %v2539
      %v2556 = vpack.c.b16 %v2540, %v2540
      %v2557 = vpack.c.b16 %v2541, %v2541
      %v2558 = vpack.c.b16 %v2542, %v2542
      %v2559 = vpack.c.b16 %v2543, %v2543
      %v2560 = vpack.c.b16 %v2544, %v2544
      %v2561 = vpack.c.b16 %v2545, %v2545
      %v2562 = vpack.c.b16 %v2546, %v2546
      %v2563 = vpack.c.b16 %v2547, %v2547
      %v2564 = vpack.c.b16 %v2548, %v2548
      %v2565 = vpack.c.b16 %v2549, %v2549
      %v2566 = vpack.c.b16 %v2550, %v2550
      %v2567 = vpack.c.b16 %v2551, %v2551
      %v2568 = vpack.c.b16 %v2552, %v2552
      %v2569 = vpack.c.b16 %v2553, %v2553
      %v2571 = vshrl.u32 %v2506, 16
      %v2573 = vshll.u32 %v2506, 16
      %v2575 = vrot.slane %v2573, 1
      %v2576 = vor.u32 %v2571, %v2575
      %v2578 = vshll.u32 %v2554, 16
      %v2580 = vrot.slane %v2578, 1
      %v2581 = vsel %vm1263, %v2576, %v2580
      %v2583 = vshrl.u32 %v2507, 16
      %v2585 = vshll.u32 %v2507, 16
      %v2587 = vrot.slane %v2585, 1
      %v2588 = vor.u32 %v2583, %v2587
      %v2590 = vshll.u32 %v2555, 16
      %v2592 = vrot.slane %v2590, 1
      %v2593 = vsel %vm1263, %v2588, %v2592
      %v2595 = vshrl.u32 %v2508, 16
      %v2597 = vshll.u32 %v2508, 16
      %v2599 = vrot.slane %v2597, 1
      %v2600 = vor.u32 %v2595, %v2599
      %v2602 = vshll.u32 %v2556, 16
      %v2604 = vrot.slane %v2602, 1
      %v2605 = vsel %vm1263, %v2600, %v2604
      %v2607 = vshrl.u32 %v2509, 16
      %v2609 = vshll.u32 %v2509, 16
      %v2611 = vrot.slane %v2609, 1
      %v2612 = vor.u32 %v2607, %v2611
      %v2614 = vshll.u32 %v2557, 16
      %v2616 = vrot.slane %v2614, 1
      %v2617 = vsel %vm1263, %v2612, %v2616
      %v2619 = vshrl.u32 %v2510, 16
      %v2621 = vshll.u32 %v2510, 16
      %v2623 = vrot.slane %v2621, 1
      %v2624 = vor.u32 %v2619, %v2623
      %v2626 = vshll.u32 %v2558, 16
      %v2628 = vrot.slane %v2626, 1
      %v2629 = vsel %vm1263, %v2624, %v2628
      %v2631 = vshrl.u32 %v2511, 16
      %v2633 = vshll.u32 %v2511, 16
      %v2635 = vrot.slane %v2633, 1
      %v2636 = vor.u32 %v2631, %v2635
      %v2638 = vshll.u32 %v2559, 16
      %v2640 = vrot.slane %v2638, 1
      %v2641 = vsel %vm1263, %v2636, %v2640
      %v2643 = vshrl.u32 %v2512, 16
      %v2645 = vshll.u32 %v2512, 16
      %v2647 = vrot.slane %v2645, 1
      %v2648 = vor.u32 %v2643, %v2647
      %v2650 = vshll.u32 %v2560, 16
      %v2652 = vrot.slane %v2650, 1
      %v2653 = vsel %vm1263, %v2648, %v2652
      %v2655 = vshrl.u32 %v2513, 16
      %v2657 = vshll.u32 %v2513, 16
      %v2659 = vrot.slane %v2657, 1
      %v2660 = vor.u32 %v2655, %v2659
      %v2662 = vshll.u32 %v2561, 16
      %v2664 = vrot.slane %v2662, 1
      %v2665 = vsel %vm1263, %v2660, %v2664
      %v2667 = vshrl.u32 %v2514, 16
      %v2669 = vshll.u32 %v2514, 16
      %v2671 = vrot.slane %v2669, 1
      %v2672 = vor.u32 %v2667, %v2671
      %v2674 = vshll.u32 %v2562, 16
      %v2676 = vrot.slane %v2674, 1
      %v2677 = vsel %vm1263, %v2672, %v2676
      %v2679 = vshrl.u32 %v2515, 16
      %v2681 = vshll.u32 %v2515, 16
      %v2683 = vrot.slane %v2681, 1
      %v2684 = vor.u32 %v2679, %v2683
      %v2686 = vshll.u32 %v2563, 16
      %v2688 = vrot.slane %v2686, 1
      %v2689 = vsel %vm1263, %v2684, %v2688
      %v2691 = vshrl.u32 %v2516, 16
      %v2693 = vshll.u32 %v2516, 16
      %v2695 = vrot.slane %v2693, 1
      %v2696 = vor.u32 %v2691, %v2695
      %v2698 = vshll.u32 %v2564, 16
      %v2700 = vrot.slane %v2698, 1
      %v2701 = vsel %vm1263, %v2696, %v2700
      %v2703 = vshrl.u32 %v2517, 16
      %v2705 = vshll.u32 %v2517, 16
      %v2707 = vrot.slane %v2705, 1
      %v2708 = vor.u32 %v2703, %v2707
      %v2710 = vshll.u32 %v2565, 16
      %v2712 = vrot.slane %v2710, 1
      %v2713 = vsel %vm1263, %v2708, %v2712
      %v2715 = vshrl.u32 %v2518, 16
      %v2717 = vshll.u32 %v2518, 16
      %v2719 = vrot.slane %v2717, 1
      %v2720 = vor.u32 %v2715, %v2719
      %v2722 = vshll.u32 %v2566, 16
      %v2724 = vrot.slane %v2722, 1
      %v2725 = vsel %vm1263, %v2720, %v2724
      %v2727 = vshrl.u32 %v2519, 16
      %v2729 = vshll.u32 %v2519, 16
      %v2731 = vrot.slane %v2729, 1
      %v2732 = vor.u32 %v2727, %v2731
      %v2734 = vshll.u32 %v2567, 16
      %v2736 = vrot.slane %v2734, 1
      %v2737 = vsel %vm1263, %v2732, %v2736
      %v2739 = vshrl.u32 %v2520, 16
      %v2741 = vshll.u32 %v2520, 16
      %v2743 = vrot.slane %v2741, 1
      %v2744 = vor.u32 %v2739, %v2743
      %v2746 = vshll.u32 %v2568, 16
      %v2748 = vrot.slane %v2746, 1
      %v2749 = vsel %vm1263, %v2744, %v2748
      %v2751 = vshrl.u32 %v2521, 16
      %v2753 = vshll.u32 %v2521, 16
      %v2755 = vrot.slane %v2753, 1
      %v2756 = vor.u32 %v2751, %v2755
      %v2758 = vshll.u32 %v2569, 16
      %v2760 = vrot.slane %v2758, 1
      %v2761 = vsel %vm1263, %v2756, %v2760
      %2762 = vrot.lane.b32.xlu0 %v2581, 8
      %v2763 = vpop.permute.xlu0 %2762
      %2764 = vrot.lane.b32.xlu0 %v2593, 8
      %v2765 = vpop.permute.xlu0 %2764
      %2766 = vrot.lane.b32.xlu0 %v2605, 8
      %v2767 = vpop.permute.xlu0 %2766
      %2768 = vrot.lane.b32.xlu0 %v2617, 8
      %v2769 = vpop.permute.xlu0 %2768
      %2770 = vrot.lane.b32.xlu0 %v2629, 8
      %v2771 = vpop.permute.xlu0 %2770
      %2772 = vrot.lane.b32.xlu0 %v2641, 8
      %v2773 = vpop.permute.xlu0 %2772
      %2774 = vrot.lane.b32.xlu0 %v2653, 8
      %v2775 = vpop.permute.xlu0 %2774
      %2776 = vrot.lane.b32.xlu0 %v2665, 8
      %v2777 = vpop.permute.xlu0 %2776
      %2778 = vrot.lane.b32.xlu0 %v2677, 8
      %v2779 = vpop.permute.xlu0 %2778
      %2780 = vrot.lane.b32.xlu0 %v2689, 8
      %v2781 = vpop.permute.xlu0 %2780
      %2782 = vrot.lane.b32.xlu0 %v2701, 8
      %v2783 = vpop.permute.xlu0 %2782
      %2784 = vrot.lane.b32.xlu0 %v2713, 8
      %v2785 = vpop.permute.xlu0 %2784
      %2786 = vrot.lane.b32.xlu0 %v2725, 8
      %v2787 = vpop.permute.xlu0 %2786
      %2788 = vrot.lane.b32.xlu0 %v2737, 8
      %v2789 = vpop.permute.xlu0 %2788
      %2790 = vrot.lane.b32.xlu0 %v2749, 8
      %v2791 = vpop.permute.xlu0 %2790
      %2792 = vrot.lane.b32.xlu0 %v2761, 8
      %v2793 = vpop.permute.xlu0 %2792
      %v2794 = vrot.slane %v2506, 1
      %v2795 = vrot.slane %v2554, 1
      %v2796 = vsel %vm1488, %v2794, %v2795
      %v2797 = vrot.slane %v2507, 1
      %v2798 = vrot.slane %v2555, 1
      %v2799 = vsel %vm1488, %v2797, %v2798
      %v2800 = vrot.slane %v2508, 1
      %v2801 = vrot.slane %v2556, 1
      %v2802 = vsel %vm1488, %v2800, %v2801
      %v2803 = vrot.slane %v2509, 1
      %v2804 = vrot.slane %v2557, 1
      %v2805 = vsel %vm1488, %v2803, %v2804
      %v2806 = vrot.slane %v2510, 1
      %v2807 = vrot.slane %v2558, 1
      %v2808 = vsel %vm1488, %v2806, %v2807
      %v2809 = vrot.slane %v2511, 1
      %v2810 = vrot.slane %v2559, 1
      %v2811 = vsel %vm1488, %v2809, %v2810
      %v2812 = vrot.slane %v2512, 1
      %v2813 = vrot.slane %v2560, 1
      %v2814 = vsel %vm1488, %v2812, %v2813
      %v2815 = vrot.slane %v2513, 1
      %v2816 = vrot.slane %v2561, 1
      %v2817 = vsel %vm1488, %v2815, %v2816
      %v2818 = vrot.slane %v2514, 1
      %v2819 = vrot.slane %v2562, 1
      %v2820 = vsel %vm1488, %v2818, %v2819
      %v2821 = vrot.slane %v2515, 1
      %v2822 = vrot.slane %v2563, 1
      %v2823 = vsel %vm1488, %v2821, %v2822
      %v2824 = vrot.slane %v2516, 1
      %v2825 = vrot.slane %v2564, 1
      %v2826 = vsel %vm1488, %v2824, %v2825
      %v2827 = vrot.slane %v2517, 1
      %v2828 = vrot.slane %v2565, 1
      %v2829 = vsel %vm1488, %v2827, %v2828
      %v2830 = vrot.slane %v2518, 1
      %v2831 = vrot.slane %v2566, 1
      %v2832 = vsel %vm1488, %v2830, %v2831
      %v2833 = vrot.slane %v2519, 1
      %v2834 = vrot.slane %v2567, 1
      %v2835 = vsel %vm1488, %v2833, %v2834
      %v2836 = vrot.slane %v2520, 1
      %v2837 = vrot.slane %v2568, 1
      %v2838 = vsel %vm1488, %v2836, %v2837
      %v2839 = vrot.slane %v2521, 1
      %v2840 = vrot.slane %v2569, 1
      %v2841 = vsel %vm1488, %v2839, %v2840
      %2842 = vrot.lane.b32.xlu0 %v2796, 16
      %v2843 = vpop.permute.xlu0 %2842
      %2844 = vrot.lane.b32.xlu0 %v2799, 16
      %v2845 = vpop.permute.xlu0 %2844
      %2846 = vrot.lane.b32.xlu0 %v2802, 16
      %v2847 = vpop.permute.xlu0 %2846
      %2848 = vrot.lane.b32.xlu0 %v2805, 16
      %v2849 = vpop.permute.xlu0 %2848
      %2850 = vrot.lane.b32.xlu0 %v2808, 16
      %v2851 = vpop.permute.xlu0 %2850
      %2852 = vrot.lane.b32.xlu0 %v2811, 16
      %v2853 = vpop.permute.xlu0 %2852
      %2854 = vrot.lane.b32.xlu0 %v2814, 16
      %v2855 = vpop.permute.xlu0 %2854
      %2856 = vrot.lane.b32.xlu0 %v2817, 16
      %v2857 = vpop.permute.xlu0 %2856
      %2858 = vrot.lane.b32.xlu0 %v2820, 16
      %v2859 = vpop.permute.xlu0 %2858
      %2860 = vrot.lane.b32.xlu0 %v2823, 16
      %v2861 = vpop.permute.xlu0 %2860
      %2862 = vrot.lane.b32.xlu0 %v2826, 16
      %v2863 = vpop.permute.xlu0 %2862
      %2864 = vrot.lane.b32.xlu0 %v2829, 16
      %v2865 = vpop.permute.xlu0 %2864
      %2866 = vrot.lane.b32.xlu0 %v2832, 16
      %v2867 = vpop.permute.xlu0 %2866
      %2868 = vrot.lane.b32.xlu0 %v2835, 16
      %v2869 = vpop.permute.xlu0 %2868
      %2870 = vrot.lane.b32.xlu0 %v2838, 16
      %v2871 = vpop.permute.xlu0 %2870
      %2872 = vrot.lane.b32.xlu0 %v2841, 16
      %v2873 = vpop.permute.xlu0 %2872
      %v2875 = vsel %vm1569, %v2506, %v2763
      %v2877 = vsel %vm1569, %v2507, %v2765
      %v2879 = vsel %vm1569, %v2508, %v2767
      %v2881 = vsel %vm1569, %v2509, %v2769
      %v2883 = vsel %vm1569, %v2510, %v2771
      %v2885 = vsel %vm1569, %v2511, %v2773
      %v2887 = vsel %vm1569, %v2512, %v2775
      %v2889 = vsel %vm1569, %v2513, %v2777
      %v2891 = vsel %vm1569, %v2514, %v2779
      %v2893 = vsel %vm1569, %v2515, %v2781
      %v2895 = vsel %vm1569, %v2516, %v2783
      %v2897 = vsel %vm1569, %v2517, %v2785
      %v2899 = vsel %vm1569, %v2518, %v2787
      %v2901 = vsel %vm1569, %v2519, %v2789
      %v2903 = vsel %vm1569, %v2520, %v2791
      %v2905 = vsel %vm1569, %v2521, %v2793
      %v2907 = vsel %vm1602, %v2875, %v2843
      %v2909 = vsel %vm1602, %v2877, %v2845
      %v2911 = vsel %vm1602, %v2879, %v2847
      %v2913 = vsel %vm1602, %v2881, %v2849
      %v2915 = vsel %vm1602, %v2883, %v2851
      %v2917 = vsel %vm1602, %v2885, %v2853
      %v2919 = vsel %vm1602, %v2887, %v2855
      %v2921 = vsel %vm1602, %v2889, %v2857
      %v2923 = vsel %vm1602, %v2891, %v2859
      %v2925 = vsel %vm1602, %v2893, %v2861
      %v2927 = vsel %vm1602, %v2895, %v2863
      %v2929 = vsel %vm1602, %v2897, %v2865
      %v2931 = vsel %vm1602, %v2899, %v2867
      %v2933 = vsel %vm1602, %v2901, %v2869
      %v2935 = vsel %vm1602, %v2903, %v2871
      %v2937 = vsel %vm1602, %v2905, %v2873
      %s2938 = scalar_lea.vmem %s3, 24
      %v2939 = vld [vmem:[%s2938] sm:$0xf]
      %v2940 = vld [vmem:[%s2938 + $0x4] sm:$0xf]
      %v2941 = vld [vmem:[%s2938 + $0x8] sm:$0xf]
      %v2945 = vunpack.c.l.b16 %v2939
      %v2946 = vunpack.c.l.b16 %v2940
      %v2947 = vunpack.c.l.b16 %v2941
      %v2948 = vpack.c.b16 %v2946, %v2945
      %v2949 = vpack.c.b16 %v2947, %v2947
      %v2951 = vsel %vm2195, %v2907, 0
      %v2953 = vsel %vm2195, %v2909, 0
      %v2955 = vsel %vm2195, %v2911, 0
      %v2957 = vsel %vm2195, %v2913, 0
      %v2959 = vsel %vm2195, %v2915, 0
      %v2961 = vsel %vm2195, %v2917, 0
      %v2963 = vsel %vm2195, %v2919, 0
      %v2965 = vsel %vm2195, %v2921, 0
      %v2967 = vsel %vm2195, %v2923, 0
      %v2969 = vsel %vm2195, %v2925, 0
      %v2971 = vsel %vm2195, %v2927, 0
      %v2973 = vsel %vm2195, %v2929, 0
      %v2975 = vsel %vm2195, %v2931, 0
      %v2977 = vsel %vm2195, %v2933, 0
      %v2979 = vsel %vm2195, %v2935, 0
      %v2981 = vsel %vm2195, %v2937, 0
      %v2984 = vsel %vm2228, %v2949, 0
      %2986 = vmatprep.subr.bf16.mxu0 0
      %2987 = vmatpush1.bf16.msra.mxu0 %v2948
      %2988 = vmatprep.subr.bf16.mxu0 0
      %2989 = vmatpush1.bf16.msra.mxu0 %v2984
      %2990 = vmatprep.subr.bf16.mxu0 0
      %2991 = vmatpush1.bf16.msra.mxu0 0
      %2992 = vmatprep.subr.bf16.mxu0 0
      %2993 = vmatpush1.bf16.msra.mxu0 0
      %2994 = vmatprep.subr.bf16.mxu0 0
      %2995 = vmatpush1.bf16.msra.mxu0 0
      %2996 = vmatprep.subr.bf16.mxu0 0
      %2997 = vmatpush1.bf16.msra.mxu0 0
      %2998 = vmatprep.subr.bf16.mxu0 0
      %2999 = vmatpush1.bf16.msra.mxu0 0
      %3000 = vmatprep.subr.bf16.mxu0 0
      %3001 = vmatpush1.bf16.msra.mxu0 0
      %3002 = vmatprep.subr.bf16.mxu0 0
      %3003 = vmatpush1.bf16.msra.mxu0 0
      %3004 = vmatprep.subr.bf16.mxu0 0
      %3005 = vmatpush1.bf16.msra.mxu0 0
      %3006 = vmatprep.subr.bf16.mxu0 0
      %3007 = vmatpush1.bf16.msra.mxu0 0
      %3008 = vmatprep.subr.bf16.mxu0 0
      %3009 = vmatpush1.bf16.msra.mxu0 0
      %3010 = vmatprep.subr.bf16.mxu0 0
      %3011 = vmatpush1.bf16.msra.mxu0 0
      %3012 = vmatprep.subr.bf16.mxu0 0
      %3013 = vmatpush1.bf16.msra.mxu0 0
      %3014 = vmatprep.subr.bf16.mxu0 0
      %3015 = vmatpush1.bf16.msra.mxu0 0
      %3016 = vmatprep.subr.bf16.mxu0 0
      %3017 = vmatpush1.bf16.msra.mxu0 0
      %3018 = vmatprep.mubr.bf16.mxu0 0
      %3019 = vmatmul.mubr.bf16.gmra.mrb[0].mxu0 %v2951
      %v3020 = vpop.f32.mrb[0].mxu0
      %v3021 = vadd.f32 0.0, %v3020
      %v3022 = vpop.f32.mrb[0].mxu0
      %v3023 = vpop.f32.mrb[0].mxu0
      %v3024 = vadd.f32 0.0, %v3023
      %v3025 = vpop.f32.mrb[0].mxu0
      %3026 = vmatprep.mubr.bf16.mxu0 0
      %3027 = vmatmul.mubr.bf16.gmra.mrb[0].mxu0 %v2953
      %v3028 = vpop.f32.mrb[0].mxu0
      %v3029 = vadd.f32 0.0, %v3028
      %v3030 = vpop.f32.mrb[0].mxu0
      %v3031 = vpop.f32.mrb[0].mxu0
      %v3032 = vadd.f32 0.0, %v3031
      %v3033 = vpop.f32.mrb[0].mxu0
      %3034 = vmatprep.mubr.bf16.mxu0 0
      %3035 = vmatmul.mubr.bf16.gmra.mrb[0].mxu0 %v2955
      %v3036 = vpop.f32.mrb[0].mxu0
      %v3037 = vadd.f32 0.0, %v3036
      %v3038 = vpop.f32.mrb[0].mxu0
      %v3039 = vpop.f32.mrb[0].mxu0
      %v3040 = vadd.f32 0.0, %v3039
      %v3041 = vpop.f32.mrb[0].mxu0
      %3042 = vmatprep.mubr.bf16.mxu0 0
      %3043 = vmatmul.mubr.bf16.gmra.mrb[0].mxu0 %v2957
      %v3044 = vpop.f32.mrb[0].mxu0
      %v3045 = vadd.f32 0.0, %v3044
      %v3046 = vpop.f32.mrb[0].mxu0
      %v3047 = vpop.f32.mrb[0].mxu0
      %v3048 = vadd.f32 0.0, %v3047
      %v3049 = vpop.f32.mrb[0].mxu0
      %3050 = vmatprep.mubr.bf16.mxu0 0
      %3051 = vmatmul.mubr.bf16.gmra.mrb[0].mxu0 %v2959
      %v3052 = vpop.f32.mrb[0].mxu0
      %v3053 = vadd.f32 0.0, %v3052
      %v3054 = vpop.f32.mrb[0].mxu0
      %v3055 = vpop.f32.mrb[0].mxu0
      %v3056 = vadd.f32 0.0, %v3055
      %v3057 = vpop.f32.mrb[0].mxu0
      %3058 = vmatprep.mubr.bf16.mxu0 0
      %3059 = vmatmul.mubr.bf16.gmra.mrb[0].mxu0 %v2961
      %v3060 = vpop.f32.mrb[0].mxu0
      %v3061 = vadd.f32 0.0, %v3060
      %v3062 = vpop.f32.mrb[0].mxu0
      %v3063 = vpop.f32.mrb[0].mxu0
      %v3064 = vadd.f32 0.0, %v3063
      %v3065 = vpop.f32.mrb[0].mxu0
      %3066 = vmatprep.mubr.bf16.mxu0 0
      %3067 = vmatmul.mubr.bf16.gmra.mrb[0].mxu0 %v2963
      %v3068 = vpop.f32.mrb[0].mxu0
      %v3069 = vadd.f32 0.0, %v3068
      %v3070 = vpop.f32.mrb[0].mxu0
      %v3071 = vpop.f32.mrb[0].mxu0
      %v3072 = vadd.f32 0.0, %v3071
      %v3073 = vpop.f32.mrb[0].mxu0
      %3074 = vmatprep.mubr.bf16.mxu0 0
      %3075 = vmatmul.mubr.bf16.gmra.mrb[0].mxu0 %v2965
      %v3076 = vpop.f32.mrb[0].mxu0
      %v3077 = vadd.f32 0.0, %v3076
      %v3078 = vpop.f32.mrb[0].mxu0
      %v3079 = vpop.f32.mrb[0].mxu0
      %v3080 = vadd.f32 0.0, %v3079
      %v3081 = vpop.f32.mrb[0].mxu0
      %3082 = vmatprep.mubr.bf16.mxu0 0
      %3083 = vmatmul.mubr.bf16.gmra.mrb[0].mxu0 %v2967
      %v3084 = vpop.f32.mrb[0].mxu0
      %v3085 = vadd.f32 0.0, %v3084
      %v3086 = vpop.f32.mrb[0].mxu0
      %v3087 = vpop.f32.mrb[0].mxu0
      %v3088 = vadd.f32 0.0, %v3087
      %v3089 = vpop.f32.mrb[0].mxu0
      %3090 = vmatprep.mubr.bf16.mxu0 0
      %3091 = vmatmul.mubr.bf16.gmra.mrb[0].mxu0 %v2969
      %v3092 = vpop.f32.mrb[0].mxu0
      %v3093 = vadd.f32 0.0, %v3092
      %v3094 = vpop.f32.mrb[0].mxu0
      %v3095 = vpop.f32.mrb[0].mxu0
      %v3096 = vadd.f32 0.0, %v3095
      %v3097 = vpop.f32.mrb[0].mxu0
      %3098 = vmatprep.mubr.bf16.mxu0 0
      %3099 = vmatmul.mubr.bf16.gmra.mrb[0].mxu0 %v2971
      %v3100 = vpop.f32.mrb[0].mxu0
      %v3101 = vadd.f32 0.0, %v3100
      %v3102 = vpop.f32.mrb[0].mxu0
      %v3103 = vpop.f32.mrb[0].mxu0
      %v3104 = vadd.f32 0.0, %v3103
      %v3105 = vpop.f32.mrb[0].mxu0
      %3106 = vmatprep.mubr.bf16.mxu0 0
      %3107 = vmatmul.mubr.bf16.gmra.mrb[0].mxu0 %v2973
      %v3108 = vpop.f32.mrb[0].mxu0
      %v3109 = vadd.f32 0.0, %v3108
      %v3110 = vpop.f32.mrb[0].mxu0
      %v3111 = vpop.f32.mrb[0].mxu0
      %v3112 = vadd.f32 0.0, %v3111
      %v3113 = vpop.f32.mrb[0].mxu0
      %3114 = vmatprep.mubr.bf16.mxu0 0
      %3115 = vmatmul.mubr.bf16.gmra.mrb[0].mxu0 %v2975
      %v3116 = vpop.f32.mrb[0].mxu0
      %v3117 = vadd.f32 0.0, %v3116
      %v3118 = vpop.f32.mrb[0].mxu0
      %v3119 = vpop.f32.mrb[0].mxu0
      %v3120 = vadd.f32 0.0, %v3119
      %v3121 = vpop.f32.mrb[0].mxu0
      %3122 = vmatprep.mubr.bf16.mxu0 0
      %3123 = vmatmul.mubr.bf16.gmra.mrb[0].mxu0 %v2977
      %v3124 = vpop.f32.mrb[0].mxu0
      %v3125 = vadd.f32 0.0, %v3124
      %v3126 = vpop.f32.mrb[0].mxu0
      %v3127 = vpop.f32.mrb[0].mxu0
      %v3128 = vadd.f32 0.0, %v3127
      %v3129 = vpop.f32.mrb[0].mxu0
      %3130 = vmatprep.mubr.bf16.mxu0 0
      %3131 = vmatmul.mubr.bf16.gmra.mrb[0].mxu0 %v2979
      %v3132 = vpop.f32.mrb[0].mxu0
      %v3133 = vadd.f32 0.0, %v3132
      %v3134 = vpop.f32.mrb[0].mxu0
      %v3135 = vpop.f32.mrb[0].mxu0
      %v3136 = vadd.f32 0.0, %v3135
      %v3137 = vpop.f32.mrb[0].mxu0
      %3138 = vmatprep.mubr.bf16.mxu0 0
      %3139 = vmatmul.mubr.bf16.gmra.mrb[0].mxu0 %v2981
      %v3140 = vpop.f32.mrb[0].mxu0
      %v3141 = vadd.f32 0.0, %v3140
      %v3142 = vpop.f32.mrb[0].mxu0
      %v3143 = vpop.f32.mrb[0].mxu0
      %v3144 = vadd.f32 0.0, %v3143
      %v3145 = vpop.f32.mrb[0].mxu0
      %3146 = vdwg.mxu0
      %v3150 = vunpack.c.l.b16 %v1635
      %v3151 = vunpack.c.l.b16 %v1636
      %v3152 = vunpack.c.l.b16 %v1637
      %v3153 = vpack.c.b16 %v3151, %v3150
      %v3154 = vpack.c.b16 %v3152, %v3152
      %v3156 = vsel %vm2195, %v1604, 0
      %v3158 = vsel %vm2195, %v1606, 0
      %v3160 = vsel %vm2195, %v1608, 0
      %v3162 = vsel %vm2195, %v1610, 0
      %v3164 = vsel %vm2195, %v1612, 0
      %v3166 = vsel %vm2195, %v1614, 0
      %v3168 = vsel %vm2195, %v1616, 0
      %v3170 = vsel %vm2195, %v1618, 0
      %v3172 = vsel %vm2195, %v1620, 0
      %v3174 = vsel %vm2195, %v1622, 0
      %v3176 = vsel %vm2195, %v1624, 0
      %v3178 = vsel %vm2195, %v1626, 0
      %v3180 = vsel %vm2195, %v1628, 0
      %v3182 = vsel %vm2195, %v1630, 0
      %v3184 = vsel %vm2195, %v1632, 0
      %v3186 = vsel %vm2195, %v1634, 0
      %v3189 = vsel %vm2228, %v3154, 0
      %3191 = vmatprep.subr.bf16.mxu0 0
      %3192 = vmatpush1.bf16.msra.mxu0 %v3153
      %3193 = vmatprep.subr.bf16.mxu0 0
      %3194 = vmatpush1.bf16.msra.mxu0 %v3189
      %3195 = vmatprep.subr.bf16.mxu0 0
      %3196 = vmatpush1.bf16.msra.mxu0 0
      %3197 = vmatprep.subr.bf16.mxu0 0
      %3198 = vmatpush1.bf16.msra.mxu0 0
      %3199 = vmatprep.subr.bf16.mxu0 0
      %3200 = vmatpush1.bf16.msra.mxu0 0
      %3201 = vmatprep.subr.bf16.mxu0 0
      %3202 = vmatpush1.bf16.msra.mxu0 0
      %3203 = vmatprep.subr.bf16.mxu0 0
      %3204 = vmatpush1.bf16.msra.mxu0 0
      %3205 = vmatprep.subr.bf16.mxu0 0
      %3206 = vmatpush1.bf16.msra.mxu0 0
      %3207 = vmatprep.subr.bf16.mxu0 0
      %3208 = vmatpush1.bf16.msra.mxu0 0
      %3209 = vmatprep.subr.bf16.mxu0 0
      %3210 = vmatpush1.bf16.msra.mxu0 0
      %3211 = vmatprep.subr.bf16.mxu0 0
      %3212 = vmatpush1.bf16.msra.mxu0 0
      %3213 = vmatprep.subr.bf16.mxu0 0
      %3214 = vmatpush1.bf16.msra.mxu0 0
      %3215 = vmatprep.subr.bf16.mxu0 0
      %3216 = vmatpush1.bf16.msra.mxu0 0
      %3217 = vmatprep.subr.bf16.mxu0 0
      %3218 = vmatpush1.bf16.msra.mxu0 0
      %3219 = vmatprep.subr.bf16.mxu0 0
      %3220 = vmatpush1.bf16.msra.mxu0 0
      %3221 = vmatprep.subr.bf16.mxu0 0
      %3222 = vmatpush1.bf16.msra.mxu0 0
      %3223 = vmatprep.mubr.bf16.mxu0 0
      %3224 = vmatmul.mubr.bf16.gmra.mrb[0].mxu0 %v3156
      %v3225 = vpop.f32.mrb[0].mxu0
      %v3226 = vadd.f32 %v2267, %v3225
      %v3227 = vpop.f32.mrb[0].mxu0
      %v3228 = vpop.f32.mrb[0].mxu0
      %v3229 = vadd.f32 %v2270, %v3228
      %v3230 = vpop.f32.mrb[0].mxu0
      %3231 = vmatprep.mubr.bf16.mxu0 0
      %3232 = vmatmul.mubr.bf16.gmra.mrb[0].mxu0 %v3158
      %v3233 = vpop.f32.mrb[0].mxu0
      %v3234 = vadd.f32 %v2275, %v3233
      %v3235 = vpop.f32.mrb[0].mxu0
      %v3236 = vpop.f32.mrb[0].mxu0
      %v3237 = vadd.f32 %v2278, %v3236
      %v3238 = vpop.f32.mrb[0].mxu0
      %3239 = vmatprep.mubr.bf16.mxu0 0
      %3240 = vmatmul.mubr.bf16.gmra.mrb[0].mxu0 %v3160
      %v3241 = vpop.f32.mrb[0].mxu0
      %v3242 = vadd.f32 %v2283, %v3241
      %v3243 = vpop.f32.mrb[0].mxu0
      %v3244 = vpop.f32.mrb[0].mxu0
      %v3245 = vadd.f32 %v2286, %v3244
      %v3246 = vpop.f32.mrb[0].mxu0
      %3247 = vmatprep.mubr.bf16.mxu0 0
      %3248 = vmatmul.mubr.bf16.gmra.mrb[0].mxu0 %v3162
      %v3249 = vpop.f32.mrb[0].mxu0
      %v3250 = vadd.f32 %v2291, %v3249
      %v3251 = vpop.f32.mrb[0].mxu0
      %v3252 = vpop.f32.mrb[0].mxu0
      %v3253 = vadd.f32 %v2294, %v3252
      %v3254 = vpop.f32.mrb[0].mxu0
      %3255 = vmatprep.mubr.bf16.mxu0 0
      %3256 = vmatmul.mubr.bf16.gmra.mrb[0].mxu0 %v3164
      %v3257 = vpop.f32.mrb[0].mxu0
      %v3258 = vadd.f32 %v2299, %v3257
      %v3259 = vpop.f32.mrb[0].mxu0
      %v3260 = vpop.f32.mrb[0].mxu0
      %v3261 = vadd.f32 %v2302, %v3260
      %v3262 = vpop.f32.mrb[0].mxu0
      %3263 = vmatprep.mubr.bf16.mxu0 0
      %3264 = vmatmul.mubr.bf16.gmra.mrb[0].mxu0 %v3166
      %v3265 = vpop.f32.mrb[0].mxu0
      %v3266 = vadd.f32 %v2307, %v3265
      %v3267 = vpop.f32.mrb[0].mxu0
      %v3268 = vpop.f32.mrb[0].mxu0
      %v3269 = vadd.f32 %v2310, %v3268
      %v3270 = vpop.f32.mrb[0].mxu0
      %3271 = vmatprep.mubr.bf16.mxu0 0
      %3272 = vmatmul.mubr.bf16.gmra.mrb[0].mxu0 %v3168
      %v3273 = vpop.f32.mrb[0].mxu0
      %v3274 = vadd.f32 %v2315, %v3273
      %v3275 = vpop.f32.mrb[0].mxu0
      %v3276 = vpop.f32.mrb[0].mxu0
      %v3277 = vadd.f32 %v2318, %v3276
      %v3278 = vpop.f32.mrb[0].mxu0
      %3279 = vmatprep.mubr.bf16.mxu0 0
      %3280 = vmatmul.mubr.bf16.gmra.mrb[0].mxu0 %v3170
      %v3281 = vpop.f32.mrb[0].mxu0
      %v3282 = vadd.f32 %v2323, %v3281
      %v3283 = vpop.f32.mrb[0].mxu0
      %v3284 = vpop.f32.mrb[0].mxu0
      %v3285 = vadd.f32 %v2326, %v3284
      %v3286 = vpop.f32.mrb[0].mxu0
      %3287 = vmatprep.mubr.bf16.mxu0 0
      %3288 = vmatmul.mubr.bf16.gmra.mrb[0].mxu0 %v3172
      %v3289 = vpop.f32.mrb[0].mxu0
      %v3290 = vadd.f32 %v2331, %v3289
      %v3291 = vpop.f32.mrb[0].mxu0
      %v3292 = vpop.f32.mrb[0].mxu0
      %v3293 = vadd.f32 %v2334, %v3292
      %v3294 = vpop.f32.mrb[0].mxu0
      %3295 = vmatprep.mubr.bf16.mxu0 0
      %3296 = vmatmul.mubr.bf16.gmra.mrb[0].mxu0 %v3174
      %v3297 = vpop.f32.mrb[0].mxu0
      %v3298 = vadd.f32 %v2339, %v3297
      %v3299 = vpop.f32.mrb[0].mxu0
      %v3300 = vpop.f32.mrb[0].mxu0
      %v3301 = vadd.f32 %v2342, %v3300
      %v3302 = vpop.f32.mrb[0].mxu0
      %3303 = vmatprep.mubr.bf16.mxu0 0
      %3304 = vmatmul.mubr.bf16.gmra.mrb[0].mxu0 %v3176
      %v3305 = vpop.f32.mrb[0].mxu0
      %v3306 = vadd.f32 %v2347, %v3305
      %v3307 = vpop.f32.mrb[0].mxu0
      %v3308 = vpop.f32.mrb[0].mxu0
      %v3309 = vadd.f32 %v2350, %v3308
      %v3310 = vpop.f32.mrb[0].mxu0
      %3311 = vmatprep.mubr.bf16.mxu0 0
      %3312 = vmatmul.mubr.bf16.gmra.mrb[0].mxu0 %v3178
      %v3313 = vpop.f32.mrb[0].mxu0
      %v3314 = vadd.f32 %v2355, %v3313
      %v3315 = vpop.f32.mrb[0].mxu0
      %v3316 = vpop.f32.mrb[0].mxu0
      %v3317 = vadd.f32 %v2358, %v3316
      %v3318 = vpop.f32.mrb[0].mxu0
      %3319 = vmatprep.mubr.bf16.mxu0 0
      %3320 = vmatmul.mubr.bf16.gmra.mrb[0].mxu0 %v3180
      %v3321 = vpop.f32.mrb[0].mxu0
      %v3322 = vadd.f32 %v2363, %v3321
      %v3323 = vpop.f32.mrb[0].mxu0
      %v3324 = vpop.f32.mrb[0].mxu0
      %v3325 = vadd.f32 %v2366, %v3324
      %v3326 = vpop.f32.mrb[0].mxu0
      %3327 = vmatprep.mubr.bf16.mxu0 0
      %3328 = vmatmul.mubr.bf16.gmra.mrb[0].mxu0 %v3182
      %v3329 = vpop.f32.mrb[0].mxu0
      %v3330 = vadd.f32 %v2371, %v3329
      %v3331 = vpop.f32.mrb[0].mxu0
      %v3332 = vpop.f32.mrb[0].mxu0
      %v3333 = vadd.f32 %v2374, %v3332
      %v3334 = vpop.f32.mrb[0].mxu0
      %3335 = vmatprep.mubr.bf16.mxu0 0
      %3336 = vmatmul.mubr.bf16.gmra.mrb[0].mxu0 %v3184
      %v3337 = vpop.f32.mrb[0].mxu0
      %v3338 = vadd.f32 %v2379, %v3337
      %v3339 = vpop.f32.mrb[0].mxu0
      %v3340 = vpop.f32.mrb[0].mxu0
      %v3341 = vadd.f32 %v2382, %v3340
      %v3342 = vpop.f32.mrb[0].mxu0
      %3343 = vmatprep.mubr.bf16.mxu0 0
      %3344 = vmatmul.mubr.bf16.gmra.mrb[0].mxu0 %v3186
      %v3345 = vpop.f32.mrb[0].mxu0
      %v3346 = vadd.f32 %v2387, %v3345
      %v3347 = vpop.f32.mrb[0].mxu0
      %v3348 = vpop.f32.mrb[0].mxu0
      %v3349 = vadd.f32 %v2390, %v3348
      %v3350 = vpop.f32.mrb[0].mxu0
      %3351 = vdwg.mxu0
      %v3352 = vadd.f32 %v3226, %v3021
      %v3353 = vadd.f32 %v3229, %v3024
      %v3354 = vadd.f32 %v3234, %v3029
      %v3355 = vadd.f32 %v3237, %v3032
      %v3356 = vadd.f32 %v3242, %v3037
      %v3357 = vadd.f32 %v3245, %v3040
      %v3358 = vadd.f32 %v3250, %v3045
      %v3359 = vadd.f32 %v3253, %v3048
      %v3360 = vadd.f32 %v3258, %v3053
      %v3361 = vadd.f32 %v3261, %v3056
      %v3362 = vadd.f32 %v3266, %v3061
      %v3363 = vadd.f32 %v3269, %v3064
      %v3364 = vadd.f32 %v3274, %v3069
      %v3365 = vadd.f32 %v3277, %v3072
      %v3366 = vadd.f32 %v3282, %v3077
      %v3367 = vadd.f32 %v3285, %v3080
      %v3368 = vadd.f32 %v3290, %v3085
      %v3369 = vadd.f32 %v3293, %v3088
      %v3370 = vadd.f32 %v3298, %v3093
      %v3371 = vadd.f32 %v3301, %v3096
      %v3372 = vadd.f32 %v3306, %v3101
      %v3373 = vadd.f32 %v3309, %v3104
      %v3374 = vadd.f32 %v3314, %v3109
      %v3375 = vadd.f32 %v3317, %v3112
      %v3376 = vadd.f32 %v3322, %v3117
      %v3377 = vadd.f32 %v3325, %v3120
      %v3378 = vadd.f32 %v3330, %v3125
      %v3379 = vadd.f32 %v3333, %v3128
      %v3380 = vadd.f32 %v3338, %v3133
      %v3381 = vadd.f32 %v3341, %v3136
      %v3382 = vadd.f32 %v3346, %v3141
      %v3383 = vadd.f32 %v3349, %v3144
      %v3384 = vpack.c.bf16 %v3353, %v3352
      %v3385 = vpack.c.bf16 %v3355, %v3354
      %v3386 = vpack.c.bf16 %v3357, %v3356
      %v3387 = vpack.c.bf16 %v3359, %v3358
      %v3388 = vpack.c.bf16 %v3361, %v3360
      %v3389 = vpack.c.bf16 %v3363, %v3362
      %v3390 = vpack.c.bf16 %v3365, %v3364
      %v3391 = vpack.c.bf16 %v3367, %v3366
      %v3392 = vpack.c.bf16 %v3369, %v3368
      %v3393 = vpack.c.bf16 %v3371, %v3370
      %v3394 = vpack.c.bf16 %v3373, %v3372
      %v3395 = vpack.c.bf16 %v3375, %v3374
      %v3396 = vpack.c.bf16 %v3377, %v3376
      %v3397 = vpack.c.bf16 %v3379, %v3378
      %v3398 = vpack.c.bf16 %v3381, %v3380
      %v3399 = vpack.c.bf16 %v3383, %v3382
      %v3416 = vunpack.c.l.b16 %v3384
      %v3417 = vunpack.c.h.b16 %v3384
      %v3418 = vunpack.c.l.b16 %v3385
      %v3419 = vunpack.c.h.b16 %v3385
      %v3420 = vunpack.c.l.b16 %v3386
      %v3421 = vunpack.c.h.b16 %v3386
      %v3422 = vunpack.c.l.b16 %v3387
      %v3423 = vunpack.c.h.b16 %v3387
      %v3424 = vunpack.c.l.b16 %v3388
      %v3425 = vunpack.c.h.b16 %v3388
      %v3426 = vunpack.c.l.b16 %v3389
      %v3427 = vunpack.c.h.b16 %v3389
      %v3428 = vunpack.c.l.b16 %v3390
      %v3429 = vunpack.c.h.b16 %v3390
      %v3430 = vunpack.c.l.b16 %v3391
      %v3431 = vunpack.c.h.b16 %v3391
      %v3432 = vunpack.c.l.b16 %v3392
      %v3433 = vunpack.c.h.b16 %v3392
      %v3434 = vunpack.c.l.b16 %v3393
      %v3435 = vunpack.c.h.b16 %v3393
      %v3436 = vunpack.c.l.b16 %v3394
      %v3437 = vunpack.c.h.b16 %v3394
      %v3438 = vunpack.c.l.b16 %v3395
      %v3439 = vunpack.c.h.b16 %v3395
      %v3440 = vunpack.c.l.b16 %v3396
      %v3441 = vunpack.c.h.b16 %v3396
      %v3442 = vunpack.c.l.b16 %v3397
      %v3443 = vunpack.c.h.b16 %v3397
      %v3444 = vunpack.c.l.b16 %v3398
      %v3445 = vunpack.c.h.b16 %v3398
      %v3446 = vunpack.c.l.b16 %v3399
      %v3447 = vunpack.c.h.b16 %v3399
      %v3448 = vpack.c.b16 %v3416, %v3416
      %v3449 = vpack.c.b16 %v3417, %v3417
      %v3450 = vpack.c.b16 %v3418, %v3418
      %v3451 = vpack.c.b16 %v3419, %v3419
      %v3452 = vpack.c.b16 %v3420, %v3420
      %v3453 = vpack.c.b16 %v3421, %v3421
      %v3454 = vpack.c.b16 %v3422, %v3422
      %v3455 = vpack.c.b16 %v3423, %v3423
      %v3456 = vpack.c.b16 %v3424, %v3424
      %v3457 = vpack.c.b16 %v3425, %v3425
      %v3458 = vpack.c.b16 %v3426, %v3426
      %v3459 = vpack.c.b16 %v3427, %v3427
      %v3460 = vpack.c.b16 %v3428, %v3428
      %v3461 = vpack.c.b16 %v3429, %v3429
      %v3462 = vpack.c.b16 %v3430, %v3430
      %v3463 = vpack.c.b16 %v3431, %v3431
      %v3464 = vpack.c.b16 %v3432, %v3432
      %v3465 = vpack.c.b16 %v3433, %v3433
      %v3466 = vpack.c.b16 %v3434, %v3434
      %v3467 = vpack.c.b16 %v3435, %v3435
      %v3468 = vpack.c.b16 %v3436, %v3436
      %v3469 = vpack.c.b16 %v3437, %v3437
      %v3470 = vpack.c.b16 %v3438, %v3438
      %v3471 = vpack.c.b16 %v3439, %v3439
      %v3472 = vpack.c.b16 %v3440, %v3440
      %v3473 = vpack.c.b16 %v3441, %v3441
      %v3474 = vpack.c.b16 %v3442, %v3442
      %v3475 = vpack.c.b16 %v3443, %v3443
      %v3476 = vpack.c.b16 %v3444, %v3444
      %v3477 = vpack.c.b16 %v3445, %v3445
      %v3478 = vpack.c.b16 %v3446, %v3446
      %v3479 = vpack.c.b16 %v3447, %v3447
      %3512 = vst.msk [vmem:[%s262] sm:$0xf] %vm270, %v3448
      %3513 = vst.msk [vmem:[%s262 + $0x4] sm:$0xf] %vm270, %v3449
      %3514 = vst.msk [vmem:[%s262 + $0x8] sm:$0xf] %vm270, %v3450
      %3515 = vst.msk [vmem:[%s262 + $0xc] sm:$0xf] %vm270, %v3451
      %3516 = vst.msk [vmem:[%s262 + $0x10] sm:$0xf] %vm270, %v3452
      %3517 = vst.msk [vmem:[%s262 + $0x14] sm:$0xf] %vm270, %v3453
      %3518 = vst.msk [vmem:[%s262 + $0x18] sm:$0xf] %vm270, %v3454
      %3519 = vst.msk [vmem:[%s262 + $0x1c] sm:$0xf] %vm270, %v3455
      %3520 = vst.msk [vmem:[%s262 + $0x20] sm:$0xf] %vm270, %v3456
      %3521 = vst.msk [vmem:[%s262 + $0x24] sm:$0xf] %vm270, %v3457
      %3522 = vst.msk [vmem:[%s262 + $0x28] sm:$0xf] %vm270, %v3458
      %3523 = vst.msk [vmem:[%s262 + $0x2c] sm:$0xf] %vm270, %v3459
      %3524 = vst.msk [vmem:[%s262 + $0x30] sm:$0xf] %vm270, %v3460
      %3525 = vst.msk [vmem:[%s262 + $0x34] sm:$0xf] %vm270, %v3461
      %3526 = vst.msk [vmem:[%s262 + $0x38] sm:$0xf] %vm270, %v3462
      %3527 = vst.msk [vmem:[%s262 + $0x3c] sm:$0xf] %vm270, %v3463
      %3528 = vst.msk [vmem:[%s262 + $0x40] sm:$0xf] %vm270, %v3464
      %3529 = vst.msk [vmem:[%s262 + $0x44] sm:$0xf] %vm270, %v3465
      %3530 = vst.msk [vmem:[%s262 + $0x48] sm:$0xf] %vm270, %v3466
      %3531 = vst.msk [vmem:[%s262 + $0x4c] sm:$0xf] %vm270, %v3467
      %3532 = vst.msk [vmem:[%s262 + $0x50] sm:$0xf] %vm270, %v3468
      %3533 = vst.msk [vmem:[%s262 + $0x54] sm:$0xf] %vm270, %v3469
      %3534 = vst.msk [vmem:[%s262 + $0x58] sm:$0xf] %vm270, %v3470
      %3535 = vst.msk [vmem:[%s262 + $0x5c] sm:$0xf] %vm270, %v3471
      %3536 = vst.msk [vmem:[%s262 + $0x60] sm:$0xf] %vm270, %v3472
      %3537 = vst.msk [vmem:[%s262 + $0x64] sm:$0xf] %vm270, %v3473
      %3538 = vst.msk [vmem:[%s262 + $0x68] sm:$0xf] %vm270, %v3474
      %3539 = vst.msk [vmem:[%s262 + $0x6c] sm:$0xf] %vm270, %v3475
      %3540 = vst.msk [vmem:[%s262 + $0x70] sm:$0xf] %vm270, %v3476
      %3541 = vst.msk [vmem:[%s262 + $0x74] sm:$0xf] %vm270, %v3477
      %3542 = vst.msk [vmem:[%s262 + $0x78] sm:$0xf] %vm270, %v3478
      %3543 = vst.msk [vmem:[%s262 + $0x7c] sm:$0xf] %vm270, %v3479
      %v3544 = vsel %vm1569, %v3352, 0.0
      %v3545 = vsel %vm1569, %v3353, 0.0
      %v3546 = vadd.f32 %v3544, %v3545
      %v3547 = vsel %vm1569, %v3354, 0.0
      %v3548 = vadd.f32 %v3546, %v3547
      %v3549 = vsel %vm1569, %v3355, 0.0
      %v3550 = vadd.f32 %v3548, %v3549
      %v3551 = vsel %vm1569, %v3356, 0.0
      %v3552 = vadd.f32 %v3550, %v3551
      %v3553 = vsel %vm1569, %v3357, 0.0
      %v3554 = vadd.f32 %v3552, %v3553
      %v3555 = vsel %vm1569, %v3358, 0.0
      %v3556 = vadd.f32 %v3554, %v3555
      %v3557 = vsel %vm1569, %v3359, 0.0
      %v3558 = vadd.f32 %v3556, %v3557
      %v3559 = vsel %vm1569, %v3360, 0.0
      %v3560 = vadd.f32 %v3558, %v3559
      %v3561 = vsel %vm1569, %v3361, 0.0
      %v3562 = vadd.f32 %v3560, %v3561
      %v3563 = vsel %vm1569, %v3362, 0.0
      %v3564 = vadd.f32 %v3562, %v3563
      %v3565 = vsel %vm1569, %v3363, 0.0
      %v3566 = vadd.f32 %v3564, %v3565
      %v3567 = vsel %vm1569, %v3364, 0.0
      %v3568 = vadd.f32 %v3566, %v3567
      %v3569 = vsel %vm1569, %v3365, 0.0
      %v3570 = vadd.f32 %v3568, %v3569
      %v3571 = vsel %vm1569, %v3366, 0.0
      %v3572 = vadd.f32 %v3570, %v3571
      %v3573 = vsel %vm1569, %v3367, 0.0
      %v3574 = vadd.f32 %v3572, %v3573
      %v3575 = vsel %vm1569, %v3368, 0.0
      %v3576 = vadd.f32 %v3574, %v3575
      %v3577 = vsel %vm1569, %v3369, 0.0
      %v3578 = vadd.f32 %v3576, %v3577
      %v3579 = vsel %vm1569, %v3370, 0.0
      %v3580 = vadd.f32 %v3578, %v3579
      %v3581 = vsel %vm1569, %v3371, 0.0
      %v3582 = vadd.f32 %v3580, %v3581
      %v3583 = vsel %vm1569, %v3372, 0.0
      %v3584 = vadd.f32 %v3582, %v3583
      %v3585 = vsel %vm1569, %v3373, 0.0
      %v3586 = vadd.f32 %v3584, %v3585
      %v3587 = vsel %vm1569, %v3374, 0.0
      %v3588 = vadd.f32 %v3586, %v3587
      %v3589 = vsel %vm1569, %v3375, 0.0
      %v3590 = vadd.f32 %v3588, %v3589
      %v3591 = vsel %vm1569, %v3376, 0.0
      %v3592 = vadd.f32 %v3590, %v3591
      %v3593 = vsel %vm1569, %v3377, 0.0
      %v3594 = vadd.f32 %v3592, %v3593
      %v3595 = vsel %vm1569, %v3378, 0.0
      %v3596 = vadd.f32 %v3594, %v3595
      %v3597 = vsel %vm1569, %v3379, 0.0
      %v3598 = vadd.f32 %v3596, %v3597
      %v3599 = vsel %vm1569, %v3380, 0.0
      %v3600 = vadd.f32 %v3598, %v3599
      %v3601 = vsel %vm1569, %v3381, 0.0
      %v3602 = vadd.f32 %v3600, %v3601
      %v3603 = vsel %vm1569, %v3382, 0.0
      %v3604 = vadd.f32 %v3602, %v3603
      %v3605 = vsel %vm1569, %v3383, 0.0
      %v3606 = vadd.f32 %v3604, %v3605
      %v3607 = vrot.slane %v3606, 4
      %v3608 = vadd.f32 %v3606, %v3607
      %v3609 = vrot.slane %v3608, 2
      %v3610 = vadd.f32 %v3608, %v3609
      %v3611 = vrot.slane %v3610, 1
      %v3612 = vadd.f32 %v3610, %v3611
      %3613 = vst.msk [vmem:[%s265] sm:$0x1] %vm273, %v3612
      %v3614 = vmul.f32 %v3352, %v3352
      %v3615 = vmul.f32 %v3353, %v3353
      %v3616 = vmul.f32 %v3354, %v3354
      %v3617 = vmul.f32 %v3355, %v3355
      %v3618 = vmul.f32 %v3356, %v3356
      %v3619 = vmul.f32 %v3357, %v3357
      %v3620 = vmul.f32 %v3358, %v3358
      %v3621 = vmul.f32 %v3359, %v3359
      %v3622 = vmul.f32 %v3360, %v3360
      %v3623 = vmul.f32 %v3361, %v3361
      %v3624 = vmul.f32 %v3362, %v3362
      %v3625 = vmul.f32 %v3363, %v3363
      %v3626 = vmul.f32 %v3364, %v3364
      %v3627 = vmul.f32 %v3365, %v3365
      %v3628 = vmul.f32 %v3366, %v3366
      %v3629 = vmul.f32 %v3367, %v3367
      %v3630 = vmul.f32 %v3368, %v3368
      %v3631 = vmul.f32 %v3369, %v3369
      %v3632 = vmul.f32 %v3370, %v3370
      %v3633 = vmul.f32 %v3371, %v3371
      %v3634 = vmul.f32 %v3372, %v3372
      %v3635 = vmul.f32 %v3373, %v3373
      %v3636 = vmul.f32 %v3374, %v3374
      %v3637 = vmul.f32 %v3375, %v3375
      %v3638 = vmul.f32 %v3376, %v3376
      %v3639 = vmul.f32 %v3377, %v3377
      %v3640 = vmul.f32 %v3378, %v3378
      %v3641 = vmul.f32 %v3379, %v3379
      %v3642 = vmul.f32 %v3380, %v3380
      %v3643 = vmul.f32 %v3381, %v3381
      %v3644 = vmul.f32 %v3382, %v3382
      %v3645 = vmul.f32 %v3383, %v3383
      %v3646 = vsel %vm1569, %v3614, 0.0
      %v3647 = vsel %vm1569, %v3615, 0.0
      %v3648 = vadd.f32 %v3646, %v3647
      %v3649 = vsel %vm1569, %v3616, 0.0
      %v3650 = vadd.f32 %v3648, %v3649
      %v3651 = vsel %vm1569, %v3617, 0.0
      %v3652 = vadd.f32 %v3650, %v3651
      %v3653 = vsel %vm1569, %v3618, 0.0
      %v3654 = vadd.f32 %v3652, %v3653
      %v3655 = vsel %vm1569, %v3619, 0.0
      %v3656 = vadd.f32 %v3654, %v3655
      %v3657 = vsel %vm1569, %v3620, 0.0
      %v3658 = vadd.f32 %v3656, %v3657
      %v3659 = vsel %vm1569, %v3621, 0.0
      %v3660 = vadd.f32 %v3658, %v3659
      %v3661 = vsel %vm1569, %v3622, 0.0
      %v3662 = vadd.f32 %v3660, %v3661
      %v3663 = vsel %vm1569, %v3623, 0.0
      %v3664 = vadd.f32 %v3662, %v3663
      %v3665 = vsel %vm1569, %v3624, 0.0
      %v3666 = vadd.f32 %v3664, %v3665
      %v3667 = vsel %vm1569, %v3625, 0.0
      %v3668 = vadd.f32 %v3666, %v3667
      %v3669 = vsel %vm1569, %v3626, 0.0
      %v3670 = vadd.f32 %v3668, %v3669
      %v3671 = vsel %vm1569, %v3627, 0.0
      %v3672 = vadd.f32 %v3670, %v3671
      %v3673 = vsel %vm1569, %v3628, 0.0
      %v3674 = vadd.f32 %v3672, %v3673
      %v3675 = vsel %vm1569, %v3629, 0.0
      %v3676 = vadd.f32 %v3674, %v3675
      %v3677 = vsel %vm1569, %v3630, 0.0
      %v3678 = vadd.f32 %v3676, %v3677
      %v3679 = vsel %vm1569, %v3631, 0.0
      %v3680 = vadd.f32 %v3678, %v3679
      %v3681 = vsel %vm1569, %v3632, 0.0
      %v3682 = vadd.f32 %v3680, %v3681
      %v3683 = vsel %vm1569, %v3633, 0.0
      %v3684 = vadd.f32 %v3682, %v3683
      %v3685 = vsel %vm1569, %v3634, 0.0
      %v3686 = vadd.f32 %v3684, %v3685
      %v3687 = vsel %vm1569, %v3635, 0.0
      %v3688 = vadd.f32 %v3686, %v3687
      %v3689 = vsel %vm1569, %v3636, 0.0
      %v3690 = vadd.f32 %v3688, %v3689
      %v3691 = vsel %vm1569, %v3637, 0.0
      %v3692 = vadd.f32 %v3690, %v3691
      %v3693 = vsel %vm1569, %v3638, 0.0
      %v3694 = vadd.f32 %v3692, %v3693
      %v3695 = vsel %vm1569, %v3639, 0.0
      %v3696 = vadd.f32 %v3694, %v3695
      %v3697 = vsel %vm1569, %v3640, 0.0
      %v3698 = vadd.f32 %v3696, %v3697
      %v3699 = vsel %vm1569, %v3641, 0.0
      %v3700 = vadd.f32 %v3698, %v3699
      %v3701 = vsel %vm1569, %v3642, 0.0
      %v3702 = vadd.f32 %v3700, %v3701
      %v3703 = vsel %vm1569, %v3643, 0.0
      %v3704 = vadd.f32 %v3702, %v3703
      %v3705 = vsel %vm1569, %v3644, 0.0
      %v3706 = vadd.f32 %v3704, %v3705
      %v3707 = vsel %vm1569, %v3645, 0.0
      %v3708 = vadd.f32 %v3706, %v3707
      %v3709 = vrot.slane %v3708, 4
      %v3710 = vadd.f32 %v3708, %v3709
      %v3711 = vrot.slane %v3710, 2
      %v3712 = vadd.f32 %v3710, %v3711
      %v3713 = vrot.slane %v3712, 1
      %v3714 = vadd.f32 %v3712, %v3713
      %3715 = vst.msk [vmem:[%s268] sm:$0x1] %vm273, %v3714
      %p3716 = scmp.lt.s32.totalorder %s18, 1
      %s3717 = scalar_select %p3716, %s18, 1
      %s3718 = smul.addr %s3717, 32
      %s3719 = smul.addr %s3718, 4
      %s3720 = scalar_lea.vmem %s4, %s3719
      %p3721 = scmp.lt.s32.totalorder %s18, 1
      %s3722 = scalar_select %p3721, %s18, 1
      %s3723 = scalar_lea.vmem %s5, %s3722
      %p3724 = scmp.lt.s32.totalorder %s18, 1
      %s3725 = scalar_select %p3724, %s18, 1
      %s3726 = scalar_lea.vmem %s6, %s3725
      // Predicated region
      $region37: #{bottleneck_forward.5} parent=35 // pred_check
        %p3727 = pneg %p125
      $region38: #{bottleneck_forward.5} parent=35 // pred_check_branch
        %3729 = sbr.rel (%p3727) target = $region40
      $region39: #{bottleneck_forward.5} parent=35 // pred_region
        _
      $region40: #{bottleneck_forward.5} parent=35 // pred_fallthru
        _
      // Predicated region
      $region41: #{bottleneck_forward.5} parent=35 // pred_check
        %p3730 = pneg %p151
      $region42: #{bottleneck_forward.5} parent=35 // pred_check_branch
        %3732 = sbr.rel (%p3730) target = $region44
      $region43: #{bottleneck_forward.5} parent=35 // pred_region
        _
      $region44: #{bottleneck_forward.5} parent=35 // pred_fallthru
        _
      // Predicated region
      $region45: #{bottleneck_forward.5} parent=35 // pred_check
        %p3733 = pneg %p177
      $region46: #{bottleneck_forward.5} parent=35 // pred_check_branch
        %3735 = sbr.rel (%p3733) target = $region48
      $region47: #{bottleneck_forward.5} parent=35 // pred_region
        _
      $region48: #{bottleneck_forward.5} parent=35 // pred_fallthru
        _
    $region36: #{bottleneck_forward.5} parent=5 // pred_fallthru
      _
    %p3736 = scmp.le.s32.totalorder 2, %s13
    // Predicated region
    $region49: #{bottleneck_forward.5} parent=5 // pred_check
      %p3737 = pneg %p3736
    $region50: #{bottleneck_forward.5} parent=5 // pred_check_branch
      %3739 = sbr.rel (%p3737) target = $region52
    $region51: #{bottleneck_forward.5} parent=5 // pred_region
      %s3740 = ssub.s32 %s13, 2
      // Predicated region
      $region53: #{bottleneck_forward.5} parent=51 // pred_check
        %p3741 = pneg %p131
      $region54: #{bottleneck_forward.5} parent=51 // pred_check_branch
        %3743 = sbr.rel (%p3741) target = $region56
      $region55: #{bottleneck_forward.5} parent=51 // pred_region
        %p3744 = scmp.lt.s32.totalorder %s19, 1
        %s3745 = scalar_select %p3744, %s19, 1
        %s3746 = smul.addr %s3745, 32
        %s3747 = smul.addr %s3746, 4
        %s3748 = scalar_lea.vmem %s4, %s3747
      $region56: #{bottleneck_forward.5} parent=51 // pred_fallthru
        _
      // Predicated region
      $region57: #{bottleneck_forward.5} parent=51 // pred_check
        %p3749 = pneg %p157
      $region58: #{bottleneck_forward.5} parent=51 // pred_check_branch
        %3751 = sbr.rel (%p3749) target = $region60
      $region59: #{bottleneck_forward.5} parent=51 // pred_region
        %p3752 = scmp.lt.s32.totalorder %s19, 1
        %s3753 = scalar_select %p3752, %s19, 1
        %s3754 = scalar_lea.vmem %s5, %s3753
      $region60: #{bottleneck_forward.5} parent=51 // pred_fallthru
        _
      // Predicated region
      $region61: #{bottleneck_forward.5} parent=51 // pred_check
        %p3755 = pneg %p183
      $region62: #{bottleneck_forward.5} parent=51 // pred_check_branch
        %3757 = sbr.rel (%p3755) target = $region64
      $region63: #{bottleneck_forward.5} parent=51 // pred_region
        %p3758 = scmp.lt.s32.totalorder %s19, 1
        %s3759 = scalar_select %p3758, %s19, 1
        %s3760 = scalar_lea.vmem %s6, %s3759
      $region64: #{bottleneck_forward.5} parent=51 // pred_fallthru
        _
    $region52: #{bottleneck_forward.5} parent=5 // pred_fallthru
      _
  $region6: #{bottleneck_forward.5} parent=0 // loop_footer
    %s17 = sadd.s32 1, %s13
  $region7: #{bottleneck_forward.5} parent=0 // loop_footer_branch
    %12 = sbr.rel target = $region3
  $region8: #{bottleneck_forward.5} parent=0 // loop_exit
    _

</llo_original>
